<compile_context>
chip_gen: v6e
topology: v6e:2x2x1
jax: 0.10.0
libtpu: 0.0.40
codegen_flags: <defaults>
</compile_context>

<pallas_src>
import functools

import jax
import jax.numpy as jnp
from jax.experimental import pallas as pl
from jax.experimental.pallas import tpu as pltpu

EPS = 1e-5


def bilinear_upsample_matrix(n_in, n_out):
    """1-D bilinear interpolation matrix, align_corners=True: src = dst*(n_in-1)/(n_out-1)."""
    dst = jnp.arange(n_out, dtype=jnp.float32)
    src = dst * (n_in - 1) / (n_out - 1)
    i0 = jnp.clip(jnp.floor(src).astype(jnp.int32), 0, n_in - 1)
    i1 = jnp.clip(i0 + 1, 0, n_in - 1)
    frac = src - i0.astype(jnp.float32)
    m = jnp.zeros((n_out, n_in), jnp.float32)
    rows = jnp.arange(n_out)
    m = m.at[rows, i0].add(1.0 - frac)
    m = m.at[rows, i1].add(frac)
    return m


# ---------------------------------------------------------------------------
# Pass 1: separable bilinear upsample (bf16 MXU inputs, f32 accum) + BN1 stats.
# Grid: (N, C // c_blk), both parallel.
# ---------------------------------------------------------------------------
def upsample_stats_kernel(x_ref, ah_ref, awt_ref, u_ref, st_ref):
    # x_ref : (1, Cb, H, W)      channel-block of one sample, NCHW
    # ah_ref: (Hup, H)           H-direction interpolation matrix
    # awt_ref:(W, Wup)           W-direction interpolation matrix (transposed)
    # u_ref : (1, Cb, Hup, Wup)  upsampled activation, stored bf16
    # st_ref: (1, 2, Cb)         per-channel (sum, sum_sq) over this block's spatial dims
    _, Cb, H, W = x_ref.shape
    Hup = ah_ref.shape[0]
    Wup = awt_ref.shape[1]

    x = x_ref[0].astype(jnp.bfloat16)                        # (Cb, H, W)
    awt = awt_ref[...].astype(jnp.bfloat16)                  # (W, Wup)
    ah = ah_ref[...].astype(jnp.bfloat16)                    # (Hup, H)

    # W-direction upsample: one 2-D matmul, (Cb*H, W) @ (W, Wup).
    xw = jnp.dot(x.reshape(Cb * H, W), awt,
                 preferred_element_type=jnp.float32)         # (Cb*H, Wup) f32
    xw = xw.reshape(Cb, H, Wup).astype(jnp.bfloat16)

    # H-direction upsample: batched matmul over the (bounded) channel block.
    ah_b = jnp.broadcast_to(ah, (Cb, Hup, H))
    u = jax.lax.dot_general(ah_b, xw,
                            dimension_numbers=(((2,), (1,)), ((0,), (0,))),
                            preferred_element_type=jnp.float32)   # (Cb, Hup, Wup) f32

    # Store the activation in bf16 (stats below use the f32 value).
    u_ref[0] = u.astype(u_ref.dtype)

    # One-pass BN1 sufficient statistics in f32, channels-on-lanes layout (2, Cb).
    row = jnp.sum(u, axis=2)                                 # (Cb, Hup)
    s = jnp.sum(row, axis=1, keepdims=True)                  # (Cb, 1)
    row2 = jnp.sum(u * u, axis=2)
    ss = jnp.sum(row2, axis=1, keepdims=True)                # (Cb, 1)
    st_ref[0] = jnp.concatenate([s, ss], axis=1).T           # (2, Cb)


# ---------------------------------------------------------------------------
# Shared body for passes 2/3: BN1 (folded scale/shift) + 2x2 'same' conv as
# four accumulated (O,C)@(C,P) matmuls over roll-shifted taps.
# ---------------------------------------------------------------------------
def _bn1_conv2x2(u_ref, sc1_ref, sh1_ref, w_ref, b_ref, wup):
    # u_ref : (1, C, P) bf16, p = h*wup + w (row-major spatial flatten)
    # sc1_ref/sh1_ref: (C, 1) folded BN1 scale / shift
    # w_ref : (4, O, C) conv weights, tap k = kh*2 + kw
    # b_ref : (O, 1) conv bias
    _, C, P = u_ref.shape
    O = w_ref.shape[1]

    # BN1 apply in f32 (v5e VPU has no bf16 elementwise); cast to bf16 only at MXU input.
    un = u_ref[0].astype(jnp.float32) * sc1_ref[...] + sh1_ref[...]      # (C, P)

    # 'same' padding for k=2 pads 0 top/left and 1 bottom/right: tap(kh,kw)[c,p] =
    # un[c, p + kh*wup + kw], zero past the bottom/right edges.
    lane = jax.lax.broadcasted_iota(jnp.int32, (C, P), 1)
    keep_w = (lane % wup) != (wup - 1)        # w + 1 in bounds
    keep_h = lane < (P - wup)                 # h + 1 in bounds

    # pltpu.roll (jnp.roll semantics): result[p] = un[(p - shift) mod P]; with the positive
    # modular shift P - k this is un[(p + k) mod P]; wrapped entries are exactly the masked ones.
    t00 = un
    t01 = jnp.where(keep_w, pltpu.roll(un, P - 1, axis=1), 0.0)
    t10 = jnp.where(keep_h, pltpu.roll(un, P - wup, axis=1), 0.0)
    t11 = jnp.where(keep_h & keep_w, pltpu.roll(un, P - wup - 1, axis=1), 0.0)

    y = jnp.zeros((O, P), jnp.float32)
    for k, tap in enumerate((t00, t01, t10, t11)):
        y = y + jnp.dot(w_ref[k].astype(jnp.bfloat16), tap.astype(jnp.bfloat16),
                        preferred_element_type=jnp.float32)
    return y + b_ref[...]                                    # (O, P) f32


# Pass 2: BN1 + conv -> BN2 sufficient stats ONLY (no conv output written to HBM).
def conv_stats_kernel(u_ref, sc1_ref, sh1_ref, w_ref, b_ref, st_ref, *, wup):
    y = _bn1_conv2x2(u_ref, sc1_ref, sh1_ref, w_ref, b_ref, wup)
    s = jnp.sum(y, axis=1, keepdims=True)                    # (O, 1)
    ss = jnp.sum(y * y, axis=1, keepdims=True)               # (O, 1)
    st_ref[0] = jnp.concatenate([s, ss], axis=1).T           # (2, O)


# Pass 3: recompute BN1 + conv, apply folded BN2, write the final output once (lane-dense).
def conv_bn2_kernel(u_ref, sc1_ref, sh1_ref, w_ref, b_ref, sc2_ref, sh2_ref, o_ref, *, wup):
    y = _bn1_conv2x2(u_ref, sc1_ref, sh1_ref, w_ref, b_ref, wup)
    o_ref[0] = (y * sc2_ref[...] + sh2_ref[...]).astype(o_ref.dtype)


@jax.jit
def upconv(x, a_h, awt, w_taps, b_col, g1, be1, g2, be2):
    """x: (N, C, H, W) NCHW. a_h: (Hup, H). awt: (W, Wup). w_taps: (4, O, C). b_col: (O, 1).

    Returns (N, O, 2H, 2W).
    """
    N, C, H, W = x.shape
    Hup = a_h.shape[0]
    Wup = awt.shape[1]
    P = Hup * Wup
    O = w_taps.shape[1]
    itemsize = jnp.dtype(x.dtype).itemsize

    # Channel tile for pass 1 (upsample + per-channel stats are channel-independent).
    c_blk = C
    for cand in (128, 64, 32, 16, 8):
        if C % cand == 0:
            c_blk = cand
            break

    parallel1 = pltpu.CompilerParams(dimension_semantics=("parallel", "parallel"))
    parallel = pltpu.CompilerParams(dimension_semantics=("parallel",))

    # ---- pass 1: upsample + BN1 partial stats ----
    fl_up = 2 * N * C * H * W * Wup + 2 * N * C * Hup * H * Wup
    by_up = N * C * H * W * itemsize + N * C * P * 2 + N * 2 * C * 4 + (Hup * H + W * Wup) * 4
    u, st1 = pl.pallas_call(
        upsample_stats_kernel,
        out_shape=(jax.ShapeDtypeStruct((N, C, Hup, Wup), jnp.bfloat16),
                   jax.ShapeDtypeStruct((N, 2, C), jnp.float32)),
        grid=(N, C // c_blk),
        in_specs=[pl.BlockSpec((1, c_blk, H, W), lambda n, c: (n, c, 0, 0)),
                  pl.BlockSpec((Hup, H), lambda n, c: (0, 0)),
                  pl.BlockSpec((W, Wup), lambda n, c: (0, 0))],
        out_specs=[pl.BlockSpec((1, c_blk, Hup, Wup), lambda n, c: (n, c, 0, 0)),
                   pl.BlockSpec((1, 2, c_blk), lambda n, c: (n, 0, c))],
        compiler_params=parallel1,
        cost_estimate=pl.CostEstimate(flops=fl_up, transcendentals=0, bytes_accessed=by_up),
    )(x, a_h, awt)

    # Fold BN1 (training mode, biased variance) into per-channel scale/shift (tiny XLA ops).
    # TODO(synk): one-pass (sum, sum_sq) variance can lose precision when |mean| >> std at
    #             very large N*H*W; use a shifted/two-pass variance if that regime matters.
    inv1 = 1.0 / float(N * Hup * Wup)
    st1s = jnp.sum(st1, axis=0)                              # (2, C)
    mean1 = st1s[0] * inv1
    var1 = jnp.maximum(st1s[1] * inv1 - mean1 * mean1, 0.0)
    rstd1 = jax.lax.rsqrt(var1 + EPS)
    sc1 = (g1 * rstd1).reshape(C, 1)
    sh1 = (be1 - mean1 * g1 * rstd1).reshape(C, 1)

    # Free row-major reshape in XLA: spatial flattened onto lanes (P = Hup*Wup) for passes 2/3.
    u_flat = u.reshape(N, C, P)

    # ---- pass 2: BN1 + 2x2 conv -> BN2 partial stats (no y written to HBM) ----
    fl_conv = 2 * 4 * N * O * C * P
    by_st2 = N * C * P * 2 + N * 2 * O * 4 + (4 * O * C + 2 * C + O) * 4
    st2 = pl.pallas_call(
        functools.partial(conv_stats_kernel, wup=Wup),
        out_shape=jax.ShapeDtypeStruct((N, 2, O), jnp.float32),
        grid=(N,),
        in_specs=[pl.BlockSpec((1, C, P), lambda n: (n, 0, 0)),
                  pl.BlockSpec((C, 1), lambda n: (0, 0)),
                  pl.BlockSpec((C, 1), lambda n: (0, 0)),
                  pl.BlockSpec((4, O, C), lambda n: (0, 0, 0)),
                  pl.BlockSpec((O, 1), lambda n: (0, 0))],
        out_specs=pl.BlockSpec((1, 2, O), lambda n: (n, 0, 0)),
        compiler_params=parallel,
        cost_estimate=pl.CostEstimate(flops=fl_conv, transcendentals=0, bytes_accessed=by_st2),
    )(u_flat, sc1, sh1, w_taps, b_col)

    # Fold BN2 into per-out-channel scale/shift.
    inv2 = 1.0 / float(N * P)
    st2s = jnp.sum(st2, axis=0)                              # (2, O)
    mean2 = st2s[0] * inv2
    var2 = jnp.maximum(st2s[1] * inv2 - mean2 * mean2, 0.0)
    rstd2 = jax.lax.rsqrt(var2 + EPS)
    sc2 = (g2 * rstd2).reshape(O, 1)
    sh2 = (be2 - mean2 * g2 * rstd2).reshape(O, 1)

    # ---- pass 3: recompute conv from u, apply BN2, write final output (lane-dense) ----
    by_out = N * C * P * 2 + N * O * P * itemsize + (4 * O * C + 2 * C + 3 * O) * 4
    out = pl.pallas_call(
        functools.partial(conv_bn2_kernel, wup=Wup),
        out_shape=jax.ShapeDtypeStruct((N, O, P), x.dtype),
        grid=(N,),
        in_specs=[pl.BlockSpec((1, C, P), lambda n: (n, 0, 0)),
                  pl.BlockSpec((C, 1), lambda n: (0, 0)),
                  pl.BlockSpec((C, 1), lambda n: (0, 0)),
                  pl.BlockSpec((4, O, C), lambda n: (0, 0, 0)),
                  pl.BlockSpec((O, 1), lambda n: (0, 0)),
                  pl.BlockSpec((O, 1), lambda n: (0, 0)),
                  pl.BlockSpec((O, 1), lambda n: (0, 0))],
        out_specs=pl.BlockSpec((1, O, P), lambda n: (n, 0, 0)),
        compiler_params=parallel,
        cost_estimate=pl.CostEstimate(flops=fl_conv, transcendentals=0, bytes_accessed=by_out),
    )(u_flat, sc1, sh1, w_taps, b_col, sc2, sh2)

    # Row-major-preserving reshape back to NCHW.
    return out.reshape(N, O, Hup, Wup)


def upconv_reference(x, a_h, a_w, w_hwio, b, g1, be1, g2, be2):
    """Pure-JAX (XLA, f32/HIGHEST) reference of the same forward semantics, in NCHW."""
    N, C, H, W = x.shape
    O = w_hwio.shape[-1]
    hp = jax.lax.Precision.HIGHEST
    u = jnp.einsum('ah,nchw,bw->ncab', a_h, x, a_w, precision=hp)
    mean1 = u.mean(axis=(0, 2, 3), keepdims=True)
    var1 = u.var(axis=(0, 2, 3), keepdims=True)
    u = (u - mean1) / jnp.sqrt(var1 + EPS) * g1.reshape(1, C, 1, 1) + be1.reshape(1, C, 1, 1)
    u_pad = jnp.pad(u, ((0, 0), (0, 0), (0, 1), (0, 1)))
    w_oihw = jnp.transpose(w_hwio, (3, 2, 0, 1))
    y = jax.lax.conv_general_dilated(u_pad, w_oihw, (1, 1), 'VALID',
                                     dimension_numbers=('NCHW', 'OIHW', 'NCHW'),
                                     precision=hp)
    y = y + b.reshape(1, O, 1, 1)
    mean2 = y.mean(axis=(0, 2, 3), keepdims=True)
    var2 = y.var(axis=(0, 2, 3), keepdims=True)
    y = (y - mean2) / jnp.sqrt(var2 + EPS) * g2.reshape(1, O, 1, 1) + be2.reshape(1, O, 1, 1)
    return y


if __name__ == "__main__":
    key = jax.random.PRNGKey(0)
    N, C_in, C_out, H, W = 2, 4, 8, 16, 16
    ks = jax.random.split(key, 7)

    x = jax.random.normal(ks[0], (N, C_in, H, W), jnp.float32)

    # Conv2d(C_in, C_out, kernel_size=2) params (kaiming-uniform-style bound), HWIO layout.
    fan_in = C_in * 2 * 2
    bound = 1.0 / (fan_in ** 0.5)
    w_hwio = jax.random.uniform(ks[1], (2, 2, C_in, C_out), jnp.float32, -bound, bound)
    b = jax.random.uniform(ks[2], (C_out,), jnp.float32, -bound, bound)

    # BatchNorm affine params (perturbed around PyTorch defaults of 1 / 0).
    g1 = 1.0 + 0.1 * jax.random.normal(ks[3], (C_in,), jnp.float32)
    be1 = 0.1 * jax.random.normal(ks[4], (C_in,), jnp.float32)
    g2 = 1.0 + 0.1 * jax.random.normal(ks[5], (C_out,), jnp.float32)
    be2 = 0.1 * jax.random.normal(ks[6], (C_out,), jnp.float32)

    # Hoisted, call-invariant preprocessing (done once, outside the jitted kernel path).
    a_h = bilinear_upsample_matrix(H, 2 * H)                          # (Hup, H)
    a_w = bilinear_upsample_matrix(W, 2 * W)                          # (Wup, W)
    awt = a_w.T                                                       # (W, Wup)
    # Conv weight repacked per tap: w_taps[kh*2+kw, o, c] = w_hwio[kh, kw, c, o].
    w_taps = jnp.transpose(w_hwio, (0, 1, 3, 2)).reshape(4, C_out, C_in)
    b_col = b.reshape(C_out, 1)

    out = upconv(x, a_h, awt, w_taps, b_col, g1, be1, g2, be2)
    out = jax.block_until_ready(out)

    assert out.shape == (N, C_out, 2 * H, 2 * W), out.shape
    assert bool(jnp.all(jnp.isfinite(out)))

    # Kernel uses bf16 MXU inputs + a bf16-stored intermediate with f32 accumulation/stats;
    # reference is full f32/HIGHEST, so tolerances reflect bf16 rounding of the activations.
    ref = upconv_reference(x, a_h, a_w, w_hwio, b, g1, be1, g2, be2)
    err = jnp.abs(out - ref)
    max_err = float(jnp.max(err))
    mean_err = float(jnp.mean(err))
    assert max_err < 2e-1, f"max abs err vs reference: {max_err}"
    assert mean_err < 4e-2, f"mean abs err vs reference: {mean_err}"

    print("KERNEL_OK")
</pallas_src>

<mosaic_0001>
module attributes {stable_mosaic.version = 11 : i64} {
  func.func @upsample_stats_kernel(%arg0: i32, %arg1: i32, %arg2: memref<1x4x16x16xf32, #tpu.memory_space<vmem>>, %arg3: memref<32x16xf32, #tpu.memory_space<vmem>>, %arg4: memref<16x32xf32, #tpu.memory_space<vmem>>, %arg5: memref<1x4x32x32xbf16, #tpu.memory_space<vmem>>, %arg6: memref<1x2x4xf32, #tpu.memory_space<vmem>>) attributes {dimension_semantics = [#tpu.dimension_semantics<parallel>, #tpu.dimension_semantics<parallel>], iteration_bounds = array<i64: 2, 1>, scalar_prefetch = 0 : i64, scratch_operands = 0 : i64, tpu.core_type = #tpu.core_type<tc>, window_params = [{transform_indices = @transform_0, window_bounds = array<i64: 1, 4, 16, 16>}, {pipeline_mode = #tpu.pipeline_mode<synchronous>, transform_indices = @transform_1, window_bounds = array<i64: 32, 16>}, {pipeline_mode = #tpu.pipeline_mode<synchronous>, transform_indices = @transform_2, window_bounds = array<i64: 16, 32>}, {transform_indices = @transform_3, window_bounds = array<i64: 1, 4, 32, 32>}, {transform_indices = @transform_4, window_bounds = array<i64: 1, 2, 4>}]} {
    %c0 = arith.constant 0 : index
    %c0_0 = arith.constant 0 : index
    %c0_1 = arith.constant 0 : index
    %c0_2 = arith.constant 0 : index
    %0 = vector.load %arg2[%c0, %c0_0, %c0_1, %c0_2] : memref<1x4x16x16xf32, #tpu.memory_space<vmem>>, vector<1x4x16x16xf32>
    %1 = vector.shape_cast %0 : vector<1x4x16x16xf32> to vector<4x16x16xf32>
    %2 = arith.truncf %1 : vector<4x16x16xf32> to vector<4x16x16xbf16>
    %c0_3 = arith.constant 0 : index
    %c0_4 = arith.constant 0 : index
    %3 = vector.load %arg4[%c0_3, %c0_4] : memref<16x32xf32, #tpu.memory_space<vmem>>, vector<16x32xf32>
    %4 = arith.truncf %3 : vector<16x32xf32> to vector<16x32xbf16>
    %c0_5 = arith.constant 0 : index
    %c0_6 = arith.constant 0 : index
    %5 = vector.load %arg3[%c0_5, %c0_6] : memref<32x16xf32, #tpu.memory_space<vmem>>, vector<32x16xf32>
    %6 = arith.truncf %5 : vector<32x16xf32> to vector<32x16xbf16>
    %7 = vector.shape_cast %2 : vector<4x16x16xbf16> to vector<64x16xbf16>
    %cst = arith.constant dense<0.000000e+00> : vector<64x32xf32>
    %8 = tpu.matmul %7, %4, %cst {dimension_numbers = #tpu.dot_dimension_numbers<[1], [0], [0], [1], [0, 0, 1, 1], [], []>} : vector<64x16xbf16>, vector<16x32xbf16>, vector<64x32xf32> -> vector<64x32xf32>
    %9 = vector.shape_cast %8 : vector<64x32xf32> to vector<4x16x32xf32>
    %10 = arith.truncf %9 : vector<4x16x32xf32> to vector<4x16x32xbf16>
    %11 = vector.shape_cast %6 : vector<32x16xbf16> to vector<1x32x16xbf16>
    %12 = vector.broadcast %11 : vector<1x32x16xbf16> to vector<4x32x16xbf16>
    %cst_7 = arith.constant dense<0.000000e+00> : vector<4x32x32xf32>
    %13 = tpu.matmul %12, %10, %cst_7 {dimension_numbers = #tpu.dot_dimension_numbers<[2], [1], [1], [2], [0, 0, 0, 1, 1, 2], [0], [0]>} : vector<4x32x16xbf16>, vector<4x16x32xbf16>, vector<4x32x32xf32> -> vector<4x32x32xf32>
    %14 = arith.truncf %13 : vector<4x32x32xf32> to vector<4x32x32xbf16>
    %c0_8 = arith.constant 0 : index
    %c0_9 = arith.constant 0 : index
    %c0_10 = arith.constant 0 : index
    %c0_11 = arith.constant 0 : index
    %15 = vector.load %arg5[%c0_8, %c0_9, %c0_10, %c0_11] : memref<1x4x32x32xbf16, #tpu.memory_space<vmem>>, vector<1x4x32x32xbf16>
    %16 = vector.shape_cast %15 : vector<1x4x32x32xbf16> to vector<4x32x32xbf16>
    %17 = vector.shape_cast %14 : vector<4x32x32xbf16> to vector<1x4x32x32xbf16>
    tpu.vector_store %arg5[%c0_8, %c0_9, %c0_10, %c0_11], %17 {strides = array<i32>} : memref<1x4x32x32xbf16, #tpu.memory_space<vmem>>, vector<1x4x32x32xbf16>,
    %cst_12 = arith.constant dense<0.000000e+00> : vector<4x32xf32>
    %18 = vector.multi_reduction <add>, %13, %cst_12 [2] : vector<4x32x32xf32> to vector<4x32xf32>
    %cst_13 = arith.constant dense<0.000000e+00> : vector<4xf32>
    %19 = vector.multi_reduction <add>, %18, %cst_13 [1] : vector<4x32xf32> to vector<4xf32>
    %20 = vector.shape_cast %19 : vector<4xf32> to vector<4x1xf32>
    %21 = arith.mulf %13, %13 : vector<4x32x32xf32>
    %cst_14 = arith.constant dense<0.000000e+00> : vector<4x32xf32>
    %22 = vector.multi_reduction <add>, %21, %cst_14 [2] : vector<4x32x32xf32> to vector<4x32xf32>
    %cst_15 = arith.constant dense<0.000000e+00> : vector<4xf32>
    %23 = vector.multi_reduction <add>, %22, %cst_15 [1] : vector<4x32xf32> to vector<4xf32>
    %24 = vector.shape_cast %23 : vector<4xf32> to vector<4x1xf32>
    %25 = tpu.concatenate %20, %24 in 1 : vector<4x1xf32>, vector<4x1xf32> -> vector<4x2xf32>
    %26 = tpu.transpose %25, [1, 0] : vector<4x2xf32> -> vector<2x4xf32>
    %c0_16 = arith.constant 0 : index
    %c0_17 = arith.constant 0 : index
    %c0_18 = arith.constant 0 : index
    %27 = vector.load %arg6[%c0_16, %c0_17, %c0_18] : memref<1x2x4xf32, #tpu.memory_space<vmem>>, vector<1x2x4xf32>
    %28 = vector.shape_cast %27 : vector<1x2x4xf32> to vector<2x4xf32>
    %29 = vector.shape_cast %26 : vector<2x4xf32> to vector<1x2x4xf32>
    tpu.vector_store %arg6[%c0_16, %c0_17, %c0_18], %29 {strides = array<i32>} : memref<1x2x4xf32, #tpu.memory_space<vmem>>, vector<1x2x4xf32>,
    return
  }
  func.func @transform_0(%arg0: i32, %arg1: i32) -> (i32, i32, i32, i32) {
    %c0_i32 = arith.constant 0 : i32
    %c0_i32_0 = arith.constant 0 : i32
    %c0_i32_1 = arith.constant 0 : i32
    return %arg0, %arg1, %c0_i32, %c0_i32_0 : i32, i32, i32, i32
  }
  func.func @transform_1(%arg0: i32, %arg1: i32) -> (i32, i32) {
    %c0_i32 = arith.constant 0 : i32
    %c0_i32_0 = arith.constant 0 : i32
    %c0_i32_1 = arith.constant 0 : i32
    return %c0_i32, %c0_i32_0 : i32, i32
  }
  func.func @transform_2(%arg0: i32, %arg1: i32) -> (i32, i32) {
    %c0_i32 = arith.constant 0 : i32
    %c0_i32_0 = arith.constant 0 : i32
    %c0_i32_1 = arith.constant 0 : i32
    return %c0_i32, %c0_i32_0 : i32, i32
  }
  func.func @transform_3(%arg0: i32, %arg1: i32) -> (i32, i32, i32, i32) {
    %c0_i32 = arith.constant 0 : i32
    %c0_i32_0 = arith.constant 0 : i32
    %c0_i32_1 = arith.constant 0 : i32
    return %arg0, %arg1, %c0_i32, %c0_i32_0 : i32, i32, i32, i32
  }
  func.func @transform_4(%arg0: i32, %arg1: i32) -> (i32, i32, i32) {
    %c0_i32 = arith.constant 0 : i32
    %c0_i32_0 = arith.constant 0 : i32
    return %arg0, %c0_i32, %arg1 : i32, i32, i32
  }
}

module attributes {stable_mosaic.version = 11 : i64} {
  func.func @conv_stats_kernel(%arg0: i32, %arg1: memref<1x4x1024xbf16, #tpu.memory_space<vmem>>, %arg2: memref<4x1xf32, #tpu.memory_space<vmem>>, %arg3: memref<4x1xf32, #tpu.memory_space<vmem>>, %arg4: memref<4x8x4xf32, #tpu.memory_space<vmem>>, %arg5: memref<8x1xf32, #tpu.memory_space<vmem>>, %arg6: memref<1x2x8xf32, #tpu.memory_space<vmem>>) attributes {dimension_semantics = [#tpu.dimension_semantics<parallel>], iteration_bounds = array<i64: 2>, scalar_prefetch = 0 : i64, scratch_operands = 0 : i64, tpu.core_type = #tpu.core_type<tc>, window_params = [{transform_indices = @transform_0, window_bounds = array<i64: 1, 4, 1024>}, {pipeline_mode = #tpu.pipeline_mode<synchronous>, transform_indices = @transform_1, window_bounds = array<i64: 4, 1>}, {pipeline_mode = #tpu.pipeline_mode<synchronous>, transform_indices = @transform_2, window_bounds = array<i64: 4, 1>}, {pipeline_mode = #tpu.pipeline_mode<synchronous>, transform_indices = @transform_3, window_bounds = array<i64: 4, 8, 4>}, {pipeline_mode = #tpu.pipeline_mode<synchronous>, transform_indices = @transform_4, window_bounds = array<i64: 8, 1>}, {transform_indices = @transform_5, window_bounds = array<i64: 1, 2, 8>}]} {
    %c0 = arith.constant 0 : index
    %c0_0 = arith.constant 0 : index
    %c0_1 = arith.constant 0 : index
    %0 = vector.load %arg1[%c0, %c0_0, %c0_1] : memref<1x4x1024xbf16, #tpu.memory_space<vmem>>, vector<1x4x1024xbf16>
    %1 = vector.shape_cast %0 : vector<1x4x1024xbf16> to vector<4x1024xbf16>
    %2 = arith.extf %1 : vector<4x1024xbf16> to vector<4x1024xf32>
    %c0_2 = arith.constant 0 : index
    %c0_3 = arith.constant 0 : index
    %3 = vector.load %arg2[%c0_2, %c0_3] : memref<4x1xf32, #tpu.memory_space<vmem>>, vector<4x1xf32>
    %4 = vector.broadcast %3 : vector<4x1xf32> to vector<4x1024xf32>
    %5 = arith.mulf %2, %4 : vector<4x1024xf32>
    %c0_4 = arith.constant 0 : index
    %c0_5 = arith.constant 0 : index
    %6 = vector.load %arg3[%c0_4, %c0_5] : memref<4x1xf32, #tpu.memory_space<vmem>>, vector<4x1xf32>
    %7 = vector.broadcast %6 : vector<4x1xf32> to vector<4x1024xf32>
    %8 = arith.addf %5, %7 : vector<4x1024xf32>
    %9 = tpu.iota {dimensions = array<i32: 1>} : vector<4x1024xi32>
    %c32_i32 = arith.constant 32 : i32
    %c0_i32 = arith.constant 0 : i32
    %10 = arith.cmpi eq, %c32_i32, %c0_i32 : i32
    %c1_i32 = arith.constant 1 : i32
    %11 = arith.select %10, %c1_i32, %c32_i32 : i32
    %12 = vector.broadcast %11 : i32 to vector<4x1024xi32>
    %13 = arith.remsi %9, %12 : vector<4x1024xi32>
    %c0_i32_6 = arith.constant 0 : i32
    %14 = vector.broadcast %c0_i32_6 : i32 to vector<4x1024xi32>
    %15 = arith.cmpi ne, %13, %14 : vector<4x1024xi32>
    %c0_i32_7 = arith.constant 0 : i32
    %16 = vector.broadcast %c0_i32_7 : i32 to vector<4x1024xi32>
    %17 = arith.cmpi slt, %13, %16 : vector<4x1024xi32>
    %c0_i32_8 = arith.constant 0 : i32
    %18 = arith.cmpi slt, %11, %c0_i32_8 : i32
    %19 = vector.broadcast %18 : i1 to vector<4x1024xi1>
    %20 = vector.broadcast %19 : vector<4x1024xi1> to vector<4x1024xi1>
    %21 = arith.xori %17, %20 : vector<4x1024xi1>
    %22 = arith.andi %21, %15 : vector<4x1024xi1>
    %23 = vector.broadcast %11 : i32 to vector<4x1024xi32>
    %24 = arith.addi %13, %23 : vector<4x1024xi32>
    %25 = arith.select %22, %24, %13 : vector<4x1024xi1>, vector<4x1024xi32>
    %c31_i32 = arith.constant 31 : i32
    %26 = vector.broadcast %c31_i32 : i32 to vector<4x1024xi32>
    %27 = arith.cmpi ne, %25, %26 : vector<4x1024xi32>
    %c992_i32 = arith.constant 992 : i32
    %28 = vector.broadcast %c992_i32 : i32 to vector<4x1024xi32>
    %29 = arith.cmpi slt, %9, %28 : vector<4x1024xi32>
    %c1023_i32 = arith.constant 1023 : i32
    %30 = tpu.dynamic_rotate %8 by %c1023_i32 dim 1 : vector<4x1024xf32>, i32 -> vector<4x1024xf32>
    %cst = arith.constant 0.000000e+00 : f32
    %31 = vector.broadcast %cst : f32 to vector<4x1024xf32>
    %32 = arith.select %27, %30, %31 : vector<4x1024xi1>, vector<4x1024xf32>
    %c992_i32_9 = arith.constant 992 : i32
    %33 = tpu.dynamic_rotate %8 by %c992_i32_9 dim 1 : vector<4x1024xf32>, i32 -> vector<4x1024xf32>
    %cst_10 = arith.constant 0.000000e+00 : f32
    %34 = vector.broadcast %cst_10 : f32 to vector<4x1024xf32>
    %35 = arith.select %29, %33, %34 : vector<4x1024xi1>, vector<4x1024xf32>
    %36 = arith.andi %29, %27 : vector<4x1024xi1>
    %c991_i32 = arith.constant 991 : i32
    %37 = tpu.dynamic_rotate %8 by %c991_i32 dim 1 : vector<4x1024xf32>, i32 -> vector<4x1024xf32>
    %cst_11 = arith.constant 0.000000e+00 : f32
    %38 = vector.broadcast %cst_11 : f32 to vector<4x1024xf32>
    %39 = arith.select %36, %37, %38 : vector<4x1024xi1>, vector<4x1024xf32>
    %cst_12 = arith.constant 0.000000e+00 : f32
    %40 = vector.broadcast %cst_12 : f32 to vector<8x1024xf32>
    %c0_13 = arith.constant 0 : index
    %c0_14 = arith.constant 0 : index
    %c0_15 = arith.constant 0 : index
    %41 = vector.load %arg4[%c0_13, %c0_14, %c0_15] : memref<4x8x4xf32, #tpu.memory_space<vmem>>, vector<1x8x4xf32>
    %42 = vector.shape_cast %41 : vector<1x8x4xf32> to vector<8x4xf32>
    %43 = arith.truncf %42 : vector<8x4xf32> to vector<8x4xbf16>
    %44 = arith.truncf %8 : vector<4x1024xf32> to vector<4x1024xbf16>
    %cst_16 = arith.constant dense<0.000000e+00> : vector<8x1024xf32>
    %45 = tpu.matmul %43, %44, %cst_16 {dimension_numbers = #tpu.dot_dimension_numbers<[1], [0], [0], [1], [0, 0, 1, 1], [], []>} : vector<8x4xbf16>, vector<4x1024xbf16>, vector<8x1024xf32> -> vector<8x1024xf32>
    %46 = arith.addf %40, %45 : vector<8x1024xf32>
    %c1 = arith.constant 1 : index
    %c0_17 = arith.constant 0 : index
    %c0_18 = arith.constant 0 : index
    %47 = vector.load %arg4[%c1, %c0_17, %c0_18] : memref<4x8x4xf32, #tpu.memory_space<vmem>>, vector<1x8x4xf32>
    %48 = vector.shape_cast %47 : vector<1x8x4xf32> to vector<8x4xf32>
    %49 = arith.truncf %48 : vector<8x4xf32> to vector<8x4xbf16>
    %50 = arith.truncf %32 : vector<4x1024xf32> to vector<4x1024xbf16>
    %cst_19 = arith.constant dense<0.000000e+00> : vector<8x1024xf32>
    %51 = tpu.matmul %49, %50, %cst_19 {dimension_numbers = #tpu.dot_dimension_numbers<[1], [0], [0], [1], [0, 0, 1, 1], [], []>} : vector<8x4xbf16>, vector<4x1024xbf16>, vector<8x1024xf32> -> vector<8x1024xf32>
    %52 = arith.addf %46, %51 : vector<8x1024xf32>
    %c2 = arith.constant 2 : index
    %c0_20 = arith.constant 0 : index
    %c0_21 = arith.constant 0 : index
    %53 = vector.load %arg4[%c2, %c0_20, %c0_21] : memref<4x8x4xf32, #tpu.memory_space<vmem>>, vector<1x8x4xf32>
    %54 = vector.shape_cast %53 : vector<1x8x4xf32> to vector<8x4xf32>
    %55 = arith.truncf %54 : vector<8x4xf32> to vector<8x4xbf16>
    %56 = arith.truncf %35 : vector<4x1024xf32> to vector<4x1024xbf16>
    %cst_22 = arith.constant dense<0.000000e+00> : vector<8x1024xf32>
    %57 = tpu.matmul %55, %56, %cst_22 {dimension_numbers = #tpu.dot_dimension_numbers<[1], [0], [0], [1], [0, 0, 1, 1], [], []>} : vector<8x4xbf16>, vector<4x1024xbf16>, vector<8x1024xf32> -> vector<8x1024xf32>
    %58 = arith.addf %52, %57 : vector<8x1024xf32>
    %c3 = arith.constant 3 : index
    %c0_23 = arith.constant 0 : index
    %c0_24 = arith.constant 0 : index
    %59 = vector.load %arg4[%c3, %c0_23, %c0_24] : memref<4x8x4xf32, #tpu.memory_space<vmem>>, vector<1x8x4xf32>
    %60 = vector.shape_cast %59 : vector<1x8x4xf32> to vector<8x4xf32>
    %61 = arith.truncf %60 : vector<8x4xf32> to vector<8x4xbf16>
    %62 = arith.truncf %39 : vector<4x1024xf32> to vector<4x1024xbf16>
    %cst_25 = arith.constant dense<0.000000e+00> : vector<8x1024xf32>
    %63 = tpu.matmul %61, %62, %cst_25 {dimension_numbers = #tpu.dot_dimension_numbers<[1], [0], [0], [1], [0, 0, 1, 1], [], []>} : vector<8x4xbf16>, vector<4x1024xbf16>, vector<8x1024xf32> -> vector<8x1024xf32>
    %64 = arith.addf %58, %63 : vector<8x1024xf32>
    %c0_26 = arith.constant 0 : index
    %c0_27 = arith.constant 0 : index
    %65 = vector.load %arg5[%c0_26, %c0_27] : memref<8x1xf32, #tpu.memory_space<vmem>>, vector<8x1xf32>
    %66 = vector.broadcast %65 : vector<8x1xf32> to vector<8x1024xf32>
    %67 = arith.addf %64, %66 : vector<8x1024xf32>
    %cst_28 = arith.constant dense<0.000000e+00> : vector<8xf32>
    %68 = vector.multi_reduction <add>, %67, %cst_28 [1] : vector<8x1024xf32> to vector<8xf32>
    %69 = vector.shape_cast %68 : vector<8xf32> to vector<8x1xf32>
    %70 = arith.mulf %67, %67 : vector<8x1024xf32>
    %cst_29 = arith.constant dense<0.000000e+00> : vector<8xf32>
    %71 = vector.multi_reduction <add>, %70, %cst_29 [1] : vector<8x1024xf32> to vector<8xf32>
    %72 = vector.shape_cast %71 : vector<8xf32> to vector<8x1xf32>
    %73 = tpu.concatenate %69, %72 in 1 : vector<8x1xf32>, vector<8x1xf32> -> vector<8x2xf32>
    %74 = tpu.transpose %73, [1, 0] : vector<8x2xf32> -> vector<2x8xf32>
    %c0_30 = arith.constant 0 : index
    %c0_31 = arith.constant 0 : index
    %c0_32 = arith.constant 0 : index
    %75 = vector.load %arg6[%c0_30, %c0_31, %c0_32] : memref<1x2x8xf32, #tpu.memory_space<vmem>>, vector<1x2x8xf32>
    %76 = vector.shape_cast %75 : vector<1x2x8xf32> to vector<2x8xf32>
    %77 = vector.shape_cast %74 : vector<2x8xf32> to vector<1x2x8xf32>
    tpu.vector_store %arg6[%c0_30, %c0_31, %c0_32], %77 {strides = array<i32>} : memref<1x2x8xf32, #tpu.memory_space<vmem>>, vector<1x2x8xf32>,
    return
  }
  func.func @transform_0(%arg0: i32) -> (i32, i32, i32) {
    %c0_i32 = arith.constant 0 : i32
    %c0_i32_0 = arith.constant 0 : i32
    %c0_i32_1 = arith.constant 0 : i32
    return %arg0, %c0_i32, %c0_i32_0 : i32, i32, i32
  }
  func.func @transform_1(%arg0: i32) -> (i32, i32) {
    %c0_i32 = arith.constant 0 : i32
    %c0_i32_0 = arith.constant 0 : i32
    %c0_i32_1 = arith.constant 0 : i32
    return %c0_i32, %c0_i32_0 : i32, i32
  }
  func.func @transform_2(%arg0: i32) -> (i32, i32) {
    %c0_i32 = arith.constant 0 : i32
    %c0_i32_0 = arith.constant 0 : i32
    %c0_i32_1 = arith.constant 0 : i32
    return %c0_i32, %c0_i32_0 : i32, i32
  }
  func.func @transform_3(%arg0: i32) -> (i32, i32, i32) {
    %c0_i32 = arith.constant 0 : i32
    %c0_i32_0 = arith.constant 0 : i32
    %c0_i32_1 = arith.constant 0 : i32
    %c0_i32_2 = arith.constant 0 : i32
    return %c0_i32, %c0_i32_0, %c0_i32_1 : i32, i32, i32
  }
  func.func @transform_4(%arg0: i32) -> (i32, i32) {
    %c0_i32 = arith.constant 0 : i32
    %c0_i32_0 = arith.constant 0 : i32
    %c0_i32_1 = arith.constant 0 : i32
    return %c0_i32, %c0_i32_0 : i32, i32
  }
  func.func @transform_5(%arg0: i32) -> (i32, i32, i32) {
    %c0_i32 = arith.constant 0 : i32
    %c0_i32_0 = arith.constant 0 : i32
    %c0_i32_1 = arith.constant 0 : i32
    return %arg0, %c0_i32, %c0_i32_0 : i32, i32, i32
  }
}

module attributes {stable_mosaic.version = 11 : i64} {
  func.func @conv_bn2_kernel(%arg0: i32, %arg1: memref<1x4x1024xbf16, #tpu.memory_space<vmem>>, %arg2: memref<4x1xf32, #tpu.memory_space<vmem>>, %arg3: memref<4x1xf32, #tpu.memory_space<vmem>>, %arg4: memref<4x8x4xf32, #tpu.memory_space<vmem>>, %arg5: memref<8x1xf32, #tpu.memory_space<vmem>>, %arg6: memref<8x1xf32, #tpu.memory_space<vmem>>, %arg7: memref<8x1xf32, #tpu.memory_space<vmem>>, %arg8: memref<1x8x1024xf32, #tpu.memory_space<vmem>>) attributes {dimension_semantics = [#tpu.dimension_semantics<parallel>], iteration_bounds = array<i64: 2>, scalar_prefetch = 0 : i64, scratch_operands = 0 : i64, tpu.core_type = #tpu.core_type<tc>, window_params = [{transform_indices = @transform_0, window_bounds = array<i64: 1, 4, 1024>}, {pipeline_mode = #tpu.pipeline_mode<synchronous>, transform_indices = @transform_1, window_bounds = array<i64: 4, 1>}, {pipeline_mode = #tpu.pipeline_mode<synchronous>, transform_indices = @transform_2, window_bounds = array<i64: 4, 1>}, {pipeline_mode = #tpu.pipeline_mode<synchronous>, transform_indices = @transform_3, window_bounds = array<i64: 4, 8, 4>}, {pipeline_mode = #tpu.pipeline_mode<synchronous>, transform_indices = @transform_4, window_bounds = array<i64: 8, 1>}, {pipeline_mode = #tpu.pipeline_mode<synchronous>, transform_indices = @transform_5, window_bounds = array<i64: 8, 1>}, {pipeline_mode = #tpu.pipeline_mode<synchronous>, transform_indices = @transform_6, window_bounds = array<i64: 8, 1>}, {transform_indices = @transform_7, window_bounds = array<i64: 1, 8, 1024>}]} {
    %c0 = arith.constant 0 : index
    %c0_0 = arith.constant 0 : index
    %c0_1 = arith.constant 0 : index
    %0 = vector.load %arg1[%c0, %c0_0, %c0_1] : memref<1x4x1024xbf16, #tpu.memory_space<vmem>>, vector<1x4x1024xbf16>
    %1 = vector.shape_cast %0 : vector<1x4x1024xbf16> to vector<4x1024xbf16>
    %2 = arith.extf %1 : vector<4x1024xbf16> to vector<4x1024xf32>
    %c0_2 = arith.constant 0 : index
    %c0_3 = arith.constant 0 : index
    %3 = vector.load %arg2[%c0_2, %c0_3] : memref<4x1xf32, #tpu.memory_space<vmem>>, vector<4x1xf32>
    %4 = vector.broadcast %3 : vector<4x1xf32> to vector<4x1024xf32>
    %5 = arith.mulf %2, %4 : vector<4x1024xf32>
    %c0_4 = arith.constant 0 : index
    %c0_5 = arith.constant 0 : index
    %6 = vector.load %arg3[%c0_4, %c0_5] : memref<4x1xf32, #tpu.memory_space<vmem>>, vector<4x1xf32>
    %7 = vector.broadcast %6 : vector<4x1xf32> to vector<4x1024xf32>
    %8 = arith.addf %5, %7 : vector<4x1024xf32>
    %9 = tpu.iota {dimensions = array<i32: 1>} : vector<4x1024xi32>
    %c32_i32 = arith.constant 32 : i32
    %c0_i32 = arith.constant 0 : i32
    %10 = arith.cmpi eq, %c32_i32, %c0_i32 : i32
    %c1_i32 = arith.constant 1 : i32
    %11 = arith.select %10, %c1_i32, %c32_i32 : i32
    %12 = vector.broadcast %11 : i32 to vector<4x1024xi32>
    %13 = arith.remsi %9, %12 : vector<4x1024xi32>
    %c0_i32_6 = arith.constant 0 : i32
    %14 = vector.broadcast %c0_i32_6 : i32 to vector<4x1024xi32>
    %15 = arith.cmpi ne, %13, %14 : vector<4x1024xi32>
    %c0_i32_7 = arith.constant 0 : i32
    %16 = vector.broadcast %c0_i32_7 : i32 to vector<4x1024xi32>
    %17 = arith.cmpi slt, %13, %16 : vector<4x1024xi32>
    %c0_i32_8 = arith.constant 0 : i32
    %18 = arith.cmpi slt, %11, %c0_i32_8 : i32
    %19 = vector.broadcast %18 : i1 to vector<4x1024xi1>
    %20 = vector.broadcast %19 : vector<4x1024xi1> to vector<4x1024xi1>
    %21 = arith.xori %17, %20 : vector<4x1024xi1>
    %22 = arith.andi %21, %15 : vector<4x1024xi1>
    %23 = vector.broadcast %11 : i32 to vector<4x1024xi32>
    %24 = arith.addi %13, %23 : vector<4x1024xi32>
    %25 = arith.select %22, %24, %13 : vector<4x1024xi1>, vector<4x1024xi32>
    %c31_i32 = arith.constant 31 : i32
    %26 = vector.broadcast %c31_i32 : i32 to vector<4x1024xi32>
    %27 = arith.cmpi ne, %25, %26 : vector<4x1024xi32>
    %c992_i32 = arith.constant 992 : i32
    %28 = vector.broadcast %c992_i32 : i32 to vector<4x1024xi32>
    %29 = arith.cmpi slt, %9, %28 : vector<4x1024xi32>
    %c1023_i32 = arith.constant 1023 : i32
    %30 = tpu.dynamic_rotate %8 by %c1023_i32 dim 1 : vector<4x1024xf32>, i32 -> vector<4x1024xf32>
    %cst = arith.constant 0.000000e+00 : f32
    %31 = vector.broadcast %cst : f32 to vector<4x1024xf32>
    %32 = arith.select %27, %30, %31 : vector<4x1024xi1>, vector<4x1024xf32>
    %c992_i32_9 = arith.constant 992 : i32
    %33 = tpu.dynamic_rotate %8 by %c992_i32_9 dim 1 : vector<4x1024xf32>, i32 -> vector<4x1024xf32>
    %cst_10 = arith.constant 0.000000e+00 : f32
    %34 = vector.broadcast %cst_10 : f32 to vector<4x1024xf32>
    %35 = arith.select %29, %33, %34 : vector<4x1024xi1>, vector<4x1024xf32>
    %36 = arith.andi %29, %27 : vector<4x1024xi1>
    %c991_i32 = arith.constant 991 : i32
    %37 = tpu.dynamic_rotate %8 by %c991_i32 dim 1 : vector<4x1024xf32>, i32 -> vector<4x1024xf32>
    %cst_11 = arith.constant 0.000000e+00 : f32
    %38 = vector.broadcast %cst_11 : f32 to vector<4x1024xf32>
    %39 = arith.select %36, %37, %38 : vector<4x1024xi1>, vector<4x1024xf32>
    %cst_12 = arith.constant 0.000000e+00 : f32
    %40 = vector.broadcast %cst_12 : f32 to vector<8x1024xf32>
    %c0_13 = arith.constant 0 : index
    %c0_14 = arith.constant 0 : index
    %c0_15 = arith.constant 0 : index
    %41 = vector.load %arg4[%c0_13, %c0_14, %c0_15] : memref<4x8x4xf32, #tpu.memory_space<vmem>>, vector<1x8x4xf32>
    %42 = vector.shape_cast %41 : vector<1x8x4xf32> to vector<8x4xf32>
    %43 = arith.truncf %42 : vector<8x4xf32> to vector<8x4xbf16>
    %44 = arith.truncf %8 : vector<4x1024xf32> to vector<4x1024xbf16>
    %cst_16 = arith.constant dense<0.000000e+00> : vector<8x1024xf32>
    %45 = tpu.matmul %43, %44, %cst_16 {dimension_numbers = #tpu.dot_dimension_numbers<[1], [0], [0], [1], [0, 0, 1, 1], [], []>} : vector<8x4xbf16>, vector<4x1024xbf16>, vector<8x1024xf32> -> vector<8x1024xf32>
    %46 = arith.addf %40, %45 : vector<8x1024xf32>
    %c1 = arith.constant 1 : index
    %c0_17 = arith.constant 0 : index
    %c0_18 = arith.constant 0 : index
    %47 = vector.load %arg4[%c1, %c0_17, %c0_18] : memref<4x8x4xf32, #tpu.memory_space<vmem>>, vector<1x8x4xf32>
    %48 = vector.shape_cast %47 : vector<1x8x4xf32> to vector<8x4xf32>
    %49 = arith.truncf %48 : vector<8x4xf32> to vector<8x4xbf16>
    %50 = arith.truncf %32 : vector<4x1024xf32> to vector<4x1024xbf16>
    %cst_19 = arith.constant dense<0.000000e+00> : vector<8x1024xf32>
    %51 = tpu.matmul %49, %50, %cst_19 {dimension_numbers = #tpu.dot_dimension_numbers<[1], [0], [0], [1], [0, 0, 1, 1], [], []>} : vector<8x4xbf16>, vector<4x1024xbf16>, vector<8x1024xf32> -> vector<8x1024xf32>
    %52 = arith.addf %46, %51 : vector<8x1024xf32>
    %c2 = arith.constant 2 : index
    %c0_20 = arith.constant 0 : index
    %c0_21 = arith.constant 0 : index
    %53 = vector.load %arg4[%c2, %c0_20, %c0_21] : memref<4x8x4xf32, #tpu.memory_space<vmem>>, vector<1x8x4xf32>
    %54 = vector.shape_cast %53 : vector<1x8x4xf32> to vector<8x4xf32>
    %55 = arith.truncf %54 : vector<8x4xf32> to vector<8x4xbf16>
    %56 = arith.truncf %35 : vector<4x1024xf32> to vector<4x1024xbf16>
    %cst_22 = arith.constant dense<0.000000e+00> : vector<8x1024xf32>
    %57 = tpu.matmul %55, %56, %cst_22 {dimension_numbers = #tpu.dot_dimension_numbers<[1], [0], [0], [1], [0, 0, 1, 1], [], []>} : vector<8x4xbf16>, vector<4x1024xbf16>, vector<8x1024xf32> -> vector<8x1024xf32>
    %58 = arith.addf %52, %57 : vector<8x1024xf32>
    %c3 = arith.constant 3 : index
    %c0_23 = arith.constant 0 : index
    %c0_24 = arith.constant 0 : index
    %59 = vector.load %arg4[%c3, %c0_23, %c0_24] : memref<4x8x4xf32, #tpu.memory_space<vmem>>, vector<1x8x4xf32>
    %60 = vector.shape_cast %59 : vector<1x8x4xf32> to vector<8x4xf32>
    %61 = arith.truncf %60 : vector<8x4xf32> to vector<8x4xbf16>
    %62 = arith.truncf %39 : vector<4x1024xf32> to vector<4x1024xbf16>
    %cst_25 = arith.constant dense<0.000000e+00> : vector<8x1024xf32>
    %63 = tpu.matmul %61, %62, %cst_25 {dimension_numbers = #tpu.dot_dimension_numbers<[1], [0], [0], [1], [0, 0, 1, 1], [], []>} : vector<8x4xbf16>, vector<4x1024xbf16>, vector<8x1024xf32> -> vector<8x1024xf32>
    %64 = arith.addf %58, %63 : vector<8x1024xf32>
    %c0_26 = arith.constant 0 : index
    %c0_27 = arith.constant 0 : index
    %65 = vector.load %arg5[%c0_26, %c0_27] : memref<8x1xf32, #tpu.memory_space<vmem>>, vector<8x1xf32>
    %66 = vector.broadcast %65 : vector<8x1xf32> to vector<8x1024xf32>
    %67 = arith.addf %64, %66 : vector<8x1024xf32>
    %c0_28 = arith.constant 0 : index
    %c0_29 = arith.constant 0 : index
    %68 = vector.load %arg6[%c0_28, %c0_29] : memref<8x1xf32, #tpu.memory_space<vmem>>, vector<8x1xf32>
    %69 = vector.broadcast %68 : vector<8x1xf32> to vector<8x1024xf32>
    %70 = arith.mulf %67, %69 : vector<8x1024xf32>
    %c0_30 = arith.constant 0 : index
    %c0_31 = arith.constant 0 : index
    %71 = vector.load %arg7[%c0_30, %c0_31] : memref<8x1xf32, #tpu.memory_space<vmem>>, vector<8x1xf32>
    %72 = vector.broadcast %71 : vector<8x1xf32> to vector<8x1024xf32>
    %73 = arith.addf %70, %72 : vector<8x1024xf32>
    %c0_32 = arith.constant 0 : index
    %c0_33 = arith.constant 0 : index
    %c0_34 = arith.constant 0 : index
    %74 = vector.load %arg8[%c0_32, %c0_33, %c0_34] : memref<1x8x1024xf32, #tpu.memory_space<vmem>>, vector<1x8x1024xf32>
    %75 = vector.shape_cast %74 : vector<1x8x1024xf32> to vector<8x1024xf32>
    %76 = vector.shape_cast %73 : vector<8x1024xf32> to vector<1x8x1024xf32>
    tpu.vector_store %arg8[%c0_32, %c0_33, %c0_34], %76 {strides = array<i32>} : memref<1x8x1024xf32, #tpu.memory_space<vmem>>, vector<1x8x1024xf32>,
    return
  }
  func.func @transform_0(%arg0: i32) -> (i32, i32, i32) {
    %c0_i32 = arith.constant 0 : i32
    %c0_i32_0 = arith.constant 0 : i32
    %c0_i32_1 = arith.constant 0 : i32
    return %arg0, %c0_i32, %c0_i32_0 : i32, i32, i32
  }
  func.func @transform_1(%arg0: i32) -> (i32, i32) {
    %c0_i32 = arith.constant 0 : i32
    %c0_i32_0 = arith.constant 0 : i32
    %c0_i32_1 = arith.constant 0 : i32
    return %c0_i32, %c0_i32_0 : i32, i32
  }
  func.func @transform_2(%arg0: i32) -> (i32, i32) {
    %c0_i32 = arith.constant 0 : i32
    %c0_i32_0 = arith.constant 0 : i32
    %c0_i32_1 = arith.constant 0 : i32
    return %c0_i32, %c0_i32_0 : i32, i32
  }
  func.func @transform_3(%arg0: i32) -> (i32, i32, i32) {
    %c0_i32 = arith.constant 0 : i32
    %c0_i32_0 = arith.constant 0 : i32
    %c0_i32_1 = arith.constant 0 : i32
    %c0_i32_2 = arith.constant 0 : i32
    return %c0_i32, %c0_i32_0, %c0_i32_1 : i32, i32, i32
  }
  func.func @transform_4(%arg0: i32) -> (i32, i32) {
    %c0_i32 = arith.constant 0 : i32
    %c0_i32_0 = arith.constant 0 : i32
    %c0_i32_1 = arith.constant 0 : i32
    return %c0_i32, %c0_i32_0 : i32, i32
  }
  func.func @transform_5(%arg0: i32) -> (i32, i32) {
    %c0_i32 = arith.constant 0 : i32
    %c0_i32_0 = arith.constant 0 : i32
    %c0_i32_1 = arith.constant 0 : i32
    return %c0_i32, %c0_i32_0 : i32, i32
  }
  func.func @transform_6(%arg0: i32) -> (i32, i32) {
    %c0_i32 = arith.constant 0 : i32
    %c0_i32_0 = arith.constant 0 : i32
    %c0_i32_1 = arith.constant 0 : i32
    return %c0_i32, %c0_i32_0 : i32, i32
  }
  func.func @transform_7(%arg0: i32) -> (i32, i32, i32) {
    %c0_i32 = arith.constant 0 : i32
    %c0_i32_0 = arith.constant 0 : i32
    %c0_i32_1 = arith.constant 0 : i32
    return %arg0, %c0_i32, %c0_i32_0 : i32, i32, i32
  }
}

</mosaic_0001>

<llo_original>
// kernel: upconv.3
$region0: #{upconv.3}
  #allocation0 [shape = 'u32[]', space=smem, size = 0x4, offset = 0x4, fixed_abs, tag = 'smem constant byte address 0x4 - core index']
  #allocation1 [shape = 'u32[144,128]{1,0:T(1,128)}', space=vmem, size = 0x12000, scoped, tag = 'internal scratch']
  %s0 = inlined_call_operand.hbm [shape: f32[2,4,16,16], index: 0, kind: input, shape index: {}]
  %s1 = inlined_call_operand.vmem [shape: f32[32,16], index: 1, kind: input, shape index: {}]
  %s2 = inlined_call_operand.vmem [shape: f32[16,32], index: 2, kind: input, shape index: {}]
  %s3 = inlined_call_operand.vmem [shape: bf16[2,4,32,32], index: 3, kind: output, shape index: {0}]
  %s4 = inlined_call_operand.vmem [shape: f32[2,2,4], index: 4, kind: output, shape index: {1}]
  %5 = xla_tuple %s3, %s4
  %s6 = sld [smem:[#allocation0]]
  $region57: #{upconv.3} parent=0
    _
  %s8 = ssub.s32 1, %s6
  %s9 = scalar_select 0, %s8, %s6
  $region1: #{upconv.3} parent=0
    #allocation2 [shape = 'u8[65536]{0}', space=vmem, size = 0x10000, scoped, tag = 'input window, operand 0']
    #allocation3 [shape = 's32[2]{0}', space=sflag, size = 0x8, scoped, tag = 'scoped memory for upconv.3']
    %10 = vsyncpa [#allocation3], 0
    %s11 = scalar_lea.sflag [#allocation3], 1
    %12 = vsyncpa %s11, 0
    loop: start=0, step=1, limit=4
    $region2: #{upconv.3} parent=1 // loop_pre_header
      _
    $region3: #{upconv.3} parent=1 // loop_header
      %s14 = sphi 0, %s18
      %p15 = scmp.ge.s32.totalorder %s14, 4
      %s21 = sphi 0, %s33
      %s22 = sphi 0, %s29
      %s23 = sphi 0, %s21
      %s24 = sphi 0, %s22
      %s25 = sphi 0, %s23
      %s26 = sphi 0, %s24
      %s38 = sphi 0, %s40
      %s41 = sphi 0, %s38
      %s42 = sphi 0, %s41
      %s58 = sphi 0, %s42
      %s62 = sphi 0, %s62
      %s64 = sphi 0, %s62
      %s65 = sphi 0, %s64
      %s79 = sphi 0, %s65
      %s83 = sphi 0, %s83
      %s85 = sphi 0, %s83
      %s86 = sphi 0, %s85
      %s100 = sphi 0, %s86
      %s108 = sphi 0, %s110
      %s111 = sphi 0, %s108
      %s112 = sphi 0, %s111
      %s128 = sphi 0, %s112
      %s136 = sphi 0, %s138
      %s139 = sphi 0, %s136
      %s140 = sphi 0, %s139
      %s156 = sphi 0, %s140
    $region4: #{upconv.3} parent=1 // loop_header_branch
      %17 = sbr.rel (%p15) target = $region8
    $region5: #{upconv.3} parent=1 // loop_body
      %s19 = ssub.s32 %s14, 1
      %s20 = ssub.s32 %s14, 2
      %s27 = sadd.s32 1, %s22
      %p28 = scmp.ge.s32.totalorder %s27, 1
      %s29 = scalar_select %p28, 0, %s27
      %s30 = sadd.s32 1, %s21
      %s31 = scalar_select %p28, %s30, %s21
      %p32 = scmp.ge.s32.totalorder %s31, 2
      %s33 = scalar_select %p32, 0, %s31
      %s34 = ssub.s32 %s21, %s33
      %s35 = ssub.s32 %s22, %s29
      %s36 = sor.u32 %s34, %s35
      %p37 = scmp.eq.s32.totalorder %s36, 0
      %s39 = sadd.s32 %s38, 1
      %s40 = scalar_select %p37, %s38, %s39
      %p43 = pneg %p37
      %p44 = scmp.eq.s32.totalorder %s14, 1
      %p45 = por %p43, %p44
      %p46 = scmp.ne.s32.totalorder %s38, %s41
      %p47 = scmp.eq.s32.totalorder %s14, 0
      %p48 = por %p46, %p47
      %p49 = scmp.ne.s32.totalorder %s38, %s41
      %p50 = scmp.eq.s32.totalorder %s19, 1
      %p51 = por %p49, %p50
      %p52 = scmp.ne.s32.totalorder %s41, %s42
      %p53 = scmp.eq.s32.totalorder %s19, 0
      %p54 = por %p52, %p53
      %p55 = scmp.ne.s32.totalorder %s41, %s42
      %p56 = scmp.eq.s32.totalorder %s20, 1
      %p57 = por %p55, %p56
      %p59 = scmp.ne.s32.totalorder %s42, %s58
      %p60 = scmp.eq.s32.totalorder %s20, 0
      %p61 = por %p59, %p60
      %s63 = sadd.s32 %s62, 1
      %p66 = scmp.eq.s32.totalorder %s14, 1
      %p67 = scmp.ne.s32.totalorder %s62, %s64
      %p68 = scmp.eq.s32.totalorder %s14, 0
      %p69 = por %p67, %p68
      %p70 = scmp.ne.s32.totalorder %s62, %s64
      %p71 = scmp.eq.s32.totalorder %s19, 1
      %p72 = por %p70, %p71
      %p73 = scmp.ne.s32.totalorder %s64, %s65
      %p74 = scmp.eq.s32.totalorder %s19, 0
      %p75 = por %p73, %p74
      %p76 = scmp.ne.s32.totalorder %s64, %s65
      %p77 = scmp.eq.s32.totalorder %s20, 1
      %p78 = por %p76, %p77
      %p80 = scmp.ne.s32.totalorder %s65, %s79
      %p81 = scmp.eq.s32.totalorder %s20, 0
      %p82 = por %p80, %p81
      %s84 = sadd.s32 %s83, 1
      %p87 = scmp.eq.s32.totalorder %s14, 1
      %p88 = scmp.ne.s32.totalorder %s83, %s85
      %p89 = scmp.eq.s32.totalorder %s14, 0
      %p90 = por %p88, %p89
      %p91 = scmp.ne.s32.totalorder %s83, %s85
      %p92 = scmp.eq.s32.totalorder %s19, 1
      %p93 = por %p91, %p92
      %p94 = scmp.ne.s32.totalorder %s85, %s86
      %p95 = scmp.eq.s32.totalorder %s19, 0
      %p96 = por %p94, %p95
      %p97 = scmp.ne.s32.totalorder %s85, %s86
      %p98 = scmp.eq.s32.totalorder %s20, 1
      %p99 = por %p97, %p98
      %p101 = scmp.ne.s32.totalorder %s86, %s100
      %p102 = scmp.eq.s32.totalorder %s20, 0
      %p103 = por %p101, %p102
      %s104 = ssub.s32 %s21, %s33
      %s105 = ssub.s32 %s22, %s29
      %s106 = sor.u32 %s104, %s105
      %p107 = scmp.eq.s32.totalorder %s106, 0
      %s109 = sadd.s32 %s108, 1
      %s110 = scalar_select %p107, %s108, %s109
      %p113 = pneg %p107
      %p114 = scmp.eq.s32.totalorder %s14, 1
      %p115 = por %p113, %p114
      %p116 = scmp.ne.s32.totalorder %s108, %s111
      %p117 = scmp.eq.s32.totalorder %s14, 0
      %p118 = por %p116, %p117
      %p119 = scmp.ne.s32.totalorder %s108, %s111
      %p120 = scmp.eq.s32.totalorder %s19, 1
      %p121 = por %p119, %p120
      %p122 = scmp.ne.s32.totalorder %s111, %s112
      %p123 = scmp.eq.s32.totalorder %s19, 0
      %p124 = por %p122, %p123
      %p125 = scmp.ne.s32.totalorder %s111, %s112
      %p126 = scmp.eq.s32.totalorder %s20, 1
      %p127 = por %p125, %p126
      %p129 = scmp.ne.s32.totalorder %s112, %s128
      %p130 = scmp.eq.s32.totalorder %s20, 0
      %p131 = por %p129, %p130
      %s132 = ssub.s32 %s21, %s33
      %s133 = ssub.s32 %s22, %s29
      %s134 = sor.u32 %s132, %s133
      %p135 = scmp.eq.s32.totalorder %s134, 0
      %s137 = sadd.s32 %s136, 1
      %s138 = scalar_select %p135, %s136, %s137
      %p141 = pneg %p135
      %p142 = scmp.eq.s32.totalorder %s14, 1
      %p143 = por %p141, %p142
      %p144 = scmp.ne.s32.totalorder %s136, %s139
      %p145 = scmp.eq.s32.totalorder %s14, 0
      %p146 = por %p144, %p145
      %p147 = scmp.ne.s32.totalorder %s136, %s139
      %p148 = scmp.eq.s32.totalorder %s19, 1
      %p149 = por %p147, %p148
      %p150 = scmp.ne.s32.totalorder %s139, %s140
      %p151 = scmp.eq.s32.totalorder %s19, 0
      %p152 = por %p150, %p151
      %p153 = scmp.ne.s32.totalorder %s139, %s140
      %p154 = scmp.eq.s32.totalorder %s20, 1
      %p155 = por %p153, %p154
      %p157 = scmp.ne.s32.totalorder %s140, %s156
      %p158 = scmp.eq.s32.totalorder %s20, 0
      %p159 = por %p157, %p158
      %p160 = scmp.le.s32.totalorder 1, %s14
      %p161 = scmp.lt.s32.totalorder %s14, 3
      %p162 = pnand %p160, %p161
      %p163 = pneg %p162
      // Predicated region
      $region9: #{upconv.3} parent=5 // pred_check
        _
      $region10: #{upconv.3} parent=5 // pred_check_branch
        %165 = sbr.rel (%p162) target = $region12
      $region11: #{upconv.3} parent=5 // pred_region
        %s166 = ssub.s32 %s14, 1
        // Predicated region
        $region13: #{upconv.3} parent=11 // pred_check
          %p167 = pneg %p75
        $region14: #{upconv.3} parent=11 // pred_check_branch
          %169 = sbr.rel (%p167) target = $region16
        $region15: #{upconv.3} parent=11 // pred_region
          _
        $region16: #{upconv.3} parent=11 // pred_fallthru
          _
        // Predicated region
        $region17: #{upconv.3} parent=11 // pred_check
          %p170 = pneg %p96
        $region18: #{upconv.3} parent=11 // pred_check_branch
          %172 = sbr.rel (%p170) target = $region20
        $region19: #{upconv.3} parent=11 // pred_region
          _
        $region20: #{upconv.3} parent=11 // pred_fallthru
          _
      $region12: #{upconv.3} parent=5 // pred_fallthru
        _
      %p173 = scmp.lt.s32.totalorder %s14, 2
      // Predicated region
      $region21: #{upconv.3} parent=5 // pred_check
        %p174 = pneg %p173
      $region22: #{upconv.3} parent=5 // pred_check_branch
        %176 = sbr.rel (%p174) target = $region24
      $region23: #{upconv.3} parent=5 // pred_region
        // Predicated region
        $region25: #{upconv.3} parent=23 // pred_check
          %p177 = pneg %p48
        $region26: #{upconv.3} parent=23 // pred_check_branch
          %179 = sbr.rel (%p177) target = $region28
        $region27: #{upconv.3} parent=23 // pred_region
          %s180 = sand.u32 %s38, 1
          %s181 = scalar_lea.sflag [#allocation3], %s180
          %s182 = sand.u32 %s38, 1
          %s183 = smul.addr %s182, 64
          %s184 = scalar_lea.vmem [#allocation2], %s183
          %s185 = smul.u32 4, %s22
          %s187 = ssub.s32 1024, 1024
          %188 = vsyncadd %s181, %s187
          %s189 = smul.addr %s185, 2
          %s190 = smul.addr %s21, 8
          %s191 = sadd.s32 %s189, %s190
          %s192 = smul.addr %s191, 128
          %s193 = scalar_lea.hbm %s0, %s192
          %s194 = sshll.u32 %s184, 4
          %s195 = int_to_ptr.vmem [resolvable:$true] %s194
          %200 = dma.hbm_to_vmem [thread:$0]  %s193, 1024, %s195, %s181, 128, 128, 8
        $region28: #{upconv.3} parent=23 // pred_fallthru
          _
      $region24: #{upconv.3} parent=5 // pred_fallthru
        _
      %p201 = scmp.le.s32.totalorder 1, %s14
      %p202 = scmp.lt.s32.totalorder %s14, 3
      %p203 = pnand %p201, %p202
      %p204 = pneg %p203
      // Predicated region
      $region29: #{upconv.3} parent=5 // pred_check
        _
      $region30: #{upconv.3} parent=5 // pred_check_branch
        %206 = sbr.rel (%p203) target = $region32
      $region31: #{upconv.3} parent=5 // pred_region
        %s207 = ssub.s32 %s14, 1
        %s208 = sand.u32 %s41, 1
        %s209 = scalar_lea.sflag [#allocation3], %s208
        %s210 = sand.u32 %s41, 1
        %s211 = smul.addr %s210, 64
        %s212 = scalar_lea.vmem [#allocation2], %s211
        // Predicated region
        $region33: #{upconv.3} parent=31 // pred_check
          %p213 = pneg %p54
        $region34: #{upconv.3} parent=31 // pred_check_branch
          %215 = sbr.rel (%p213) target = $region36
        $region35: #{upconv.3} parent=31 // pred_region
          %216 = dma.done %s209, 1024
        $region36: #{upconv.3} parent=31 // pred_fallthru
          _
        %s217 = sand.u32 %s41, 1
        %s218 = scalar_lea.sflag [#allocation3], %s217
        %s219 = sand.u32 %s41, 1
        %s220 = smul.addr %s219, 64
        %s221 = scalar_lea.vmem [#allocation2], %s220
        %p222 = pneg %p54
        %p223 = pneg %p51
        %p224 = pneg %p75
        %p225 = pneg %p72
        %p226 = pneg %p96
        %p227 = pneg %p93
        %p228 = pneg %p124
        %p229 = pneg %p121
        %s230 = smul.u32 4, %s24
        %p231 = scmp.lt.s32.totalorder %s23, 1
        %s232 = scalar_select %p231, %s23, 1
        %p233 = scmp.lt.s32.totalorder %s230, 3
        %s234 = scalar_select %p233, %s230, 3
        %s235 = smul.addr %s234, 4
        %s236 = smul.addr %s232, 16
        %s237 = sadd.s32 %s235, %s236
        %s238 = smul.addr %s237, 4
        %s239 = scalar_lea.vmem %s3, %s238
        %p240 = pneg %p152
        %p241 = pneg %p149
        %p242 = scmp.lt.s32.totalorder %s23, 1
        %s243 = scalar_select %p242, %s23, 1
        %p244 = scmp.lt.s32.totalorder %s24, 0
        %s245 = scalar_select %p244, %s24, 0
        %s246 = sadd.s32 %s245, %s243
        %s247 = smul.addr %s246, 2
        %s248 = scalar_lea.vmem %s4, %s247
        %s249 = smul.u32 4, %s24
        %s250 = smul.u32 4, %s24
        %p251 = scmp.lt.s32.totalorder %s23, 1
        %s252 = scalar_select %p251, %s23, 1
        %p253 = scmp.lt.s32.totalorder %s250, 3
        %s254 = scalar_select %p253, %s250, 3
        %s255 = smul.addr %s254, 4
        %s256 = smul.addr %s252, 16
        %s257 = sadd.s32 %s255, %s256
        %s258 = smul.addr %s257, 4
        %s259 = scalar_lea.vmem %s3, %s258
        %s260 = smul.u32 4, %s24
        %p261 = scmp.lt.s32.totalorder %s23, 1
        %s262 = scalar_select %p261, %s23, 1
        %p263 = scmp.lt.s32.totalorder %s24, 0
        %s264 = scalar_select %p263, %s24, 0
        %s265 = sadd.s32 %s264, %s262
        %s266 = smul.addr %s265, 2
        %s267 = scalar_lea.vmem %s4, %s266
        %v269 = vld [vmem:[%s212] sm:$0xff]
        %v270 = vld [vmem:[%s212 + $0x8] sm:$0xff]
        %v271 = vld [vmem:[%s212 + $0x10] sm:$0xff]
        %v272 = vld [vmem:[%s212 + $0x18] sm:$0xff]
        %v273 = vld [vmem:[%s212 + $0x20] sm:$0xff]
        %v274 = vld [vmem:[%s212 + $0x28] sm:$0xff]
        %v275 = vld [vmem:[%s212 + $0x30] sm:$0xff]
        %v276 = vld [vmem:[%s212 + $0x38] sm:$0xff]
        %v277 = vpack.c.bf16 %v270, %v269
        %v278 = vpack.c.bf16 %v272, %v271
        %v279 = vpack.c.bf16 %v274, %v273
        %v280 = vpack.c.bf16 %v276, %v275
        %v281 = vld [vmem:[%s2] sm:$0xff]
        %v282 = vld [vmem:[%s2 + $0x8] sm:$0xff]
        %v283 = vpack.c.bf16 %v282, %v281
        %v284 = vld [vmem:[%s1] sm:$0xff]
        %v285 = vld [vmem:[%s1 + $0x8] sm:$0xff]
        %v286 = vld [vmem:[%s1 + $0x10] sm:$0xff]
        %v287 = vld [vmem:[%s1 + $0x18] sm:$0xff]
        %v288 = vpack.c.bf16 %v285, %v284
        %v289 = vpack.c.bf16 %v287, %v286
        %vm290 = vcmask 130048
        %v292 = vsel %vm290, %v277, 0
        %v295 = vsel %vm290, %v278, 0
        %v298 = vsel %vm290, %v279, 0
        %v301 = vsel %vm290, %v280, 0
        %303 = vmatprep.subr.bf16.mxu0 0
        %304 = vmatpush1.bf16.msra.mxu0 0
        %305 = vmatprep.subr.bf16.mxu0 0
        %306 = vmatpush1.bf16.msra.mxu0 0
        %307 = vmatprep.subr.bf16.mxu0 0
        %308 = vmatpush1.bf16.msra.mxu0 0
        %309 = vmatprep.subr.bf16.mxu0 0
        %310 = vmatpush1.bf16.msra.mxu0 0
        %311 = vmatprep.subr.bf16.mxu0 0
        %312 = vmatpush1.bf16.msra.mxu0 0
        %313 = vmatprep.subr.bf16.mxu0 0
        %314 = vmatpush1.bf16.msra.mxu0 0
        %315 = vmatprep.subr.bf16.mxu0 0
        %316 = vmatpush1.bf16.msra.mxu0 0
        %317 = vmatprep.subr.bf16.mxu0 0
        %318 = vmatpush1.bf16.msra.mxu0 %v283
        %319 = vmatprep.subr.bf16.mxu0 0
        %320 = vmatpush2.bf16.msra.mxu0 0
        %321 = vmatprep.subr.bf16.mxu0 0
        %322 = vmatpush2.bf16.msra.mxu0 0
        %323 = vmatprep.subr.bf16.mxu0 0
        %324 = vmatpush2.bf16.msra.mxu0 0
        %325 = vmatprep.subr.bf16.mxu0 0
        %326 = vmatpush2.bf16.msra.mxu0 0
        %327 = vmatprep.subr.bf16.mxu0 0
        %328 = vmatpush2.bf16.msra.mxu0 0
        %329 = vmatprep.subr.bf16.mxu0 0
        %330 = vmatpush2.bf16.msra.mxu0 0
        %331 = vmatprep.subr.bf16.mxu0 0
        %332 = vmatpush2.bf16.msra.mxu0 0
        %333 = vmatprep.subr.bf16.mxu0 0
        %334 = vmatpush2.bf16.msra.mxu0 0
        %335 = vmatprep.mubr.bf16.mxu0 0
        %336 = vmatmul.mubr.bf16.gmra.mxu0 %v292
        %v337 = vpop.f32.mrf.mxu0
        %v338 = vadd.f32 0.0, %v337
        %v339 = vpop.f32.mrf.mxu0
        %v340 = vpop.f32.mrf.mxu0
        %v341 = vadd.f32 0.0, %v340
        %v342 = vpop.f32.mrf.mxu0
        %343 = vmatprep.mubr.bf16.mxu0 0
        %344 = vmatmul.mubr.bf16.gmra.mxu0 %v295
        %v345 = vpop.f32.mrf.mxu0
        %v346 = vadd.f32 0.0, %v345
        %v347 = vpop.f32.mrf.mxu0
        %v348 = vpop.f32.mrf.mxu0
        %v349 = vadd.f32 0.0, %v348
        %v350 = vpop.f32.mrf.mxu0
        %351 = vmatprep.mubr.bf16.mxu0 0
        %352 = vmatmul.mubr.bf16.gmra.mxu0 %v298
        %v353 = vpop.f32.mrf.mxu0
        %v354 = vadd.f32 0.0, %v353
        %v355 = vpop.f32.mrf.mxu0
        %v356 = vpop.f32.mrf.mxu0
        %v357 = vadd.f32 0.0, %v356
        %v358 = vpop.f32.mrf.mxu0
        %359 = vmatprep.mubr.bf16.mxu0 0
        %360 = vmatmul.mubr.bf16.gmra.mxu0 %v301
        %v361 = vpop.f32.mrf.mxu0
        %v362 = vadd.f32 0.0, %v361
        %v363 = vpop.f32.mrf.mxu0
        %v364 = vpop.f32.mrf.mxu0
        %v365 = vadd.f32 0.0, %v364
        %v366 = vpop.f32.mrf.mxu0
        %367 = vdwg.mxu0
        %v368 = vpack.c.bf16 %v341, %v338
        %v369 = vpack.c.bf16 %v349, %v346
        %v370 = vpack.c.bf16 %v357, %v354
        %v371 = vpack.c.bf16 %v365, %v362
        %v373 = vsel %vm290, %v288, 0
        %v376 = vsel %vm290, %v289, 0
        %378 = vmatprep.subr.bf16.mxu0 0
        %379 = vmatpush1.bf16.msra.mxu0 0
        %380 = vmatprep.subr.bf16.mxu0 0
        %381 = vmatpush1.bf16.msra.mxu0 0
        %382 = vmatprep.subr.bf16.mxu0 0
        %383 = vmatpush1.bf16.msra.mxu0 0
        %384 = vmatprep.subr.bf16.mxu0 0
        %385 = vmatpush1.bf16.msra.mxu0 0
        %386 = vmatprep.subr.bf16.mxu0 0
        %387 = vmatpush1.bf16.msra.mxu0 0
        %388 = vmatprep.subr.bf16.mxu0 0
        %389 = vmatpush1.bf16.msra.mxu0 0
        %390 = vmatprep.subr.bf16.mxu0 0
        %391 = vmatpush1.bf16.msra.mxu0 0
        %392 = vmatprep.subr.bf16.mxu0 0
        %393 = vmatpush1.bf16.msra.mxu0 %v368
        %394 = vmatprep.subr.bf16.mxu0 0
        %395 = vmatpush2.bf16.msra.mxu0 0
        %396 = vmatprep.subr.bf16.mxu0 0
        %397 = vmatpush2.bf16.msra.mxu0 0
        %398 = vmatprep.subr.bf16.mxu0 0
        %399 = vmatpush2.bf16.msra.mxu0 0
        %400 = vmatprep.subr.bf16.mxu0 0
        %401 = vmatpush2.bf16.msra.mxu0 0
        %402 = vmatprep.subr.bf16.mxu0 0
        %403 = vmatpush2.bf16.msra.mxu0 0
        %404 = vmatprep.subr.bf16.mxu0 0
        %405 = vmatpush2.bf16.msra.mxu0 0
        %406 = vmatprep.subr.bf16.mxu0 0
        %407 = vmatpush2.bf16.msra.mxu0 0
        %408 = vmatprep.subr.bf16.mxu0 0
        %409 = vmatpush2.bf16.msra.mxu0 0
        %410 = vmatprep.mubr.bf16.mxu0 0
        %411 = vmatmul.mubr.bf16.gmra.mxu0 %v373
        %v412 = vpop.f32.mrf.mxu0
        %v413 = vadd.f32 0.0, %v412
        %v414 = vpop.f32.mrf.mxu0
        %v415 = vpop.f32.mrf.mxu0
        %v416 = vadd.f32 0.0, %v415
        %v417 = vpop.f32.mrf.mxu0
        %418 = vmatprep.mubr.bf16.mxu0 0
        %419 = vmatmul.mubr.bf16.gmra.mxu0 %v376
        %v420 = vpop.f32.mrf.mxu0
        %v421 = vadd.f32 0.0, %v420
        %v422 = vpop.f32.mrf.mxu0
        %v423 = vpop.f32.mrf.mxu0
        %v424 = vadd.f32 0.0, %v423
        %v425 = vpop.f32.mrf.mxu0
        %426 = vdwg.mxu0
        %427 = vmatprep.subr.bf16.mxu0 0
        %428 = vmatpush1.bf16.msra.mxu0 0
        %429 = vmatprep.subr.bf16.mxu0 0
        %430 = vmatpush1.bf16.msra.mxu0 0
        %431 = vmatprep.subr.bf16.mxu0 0
        %432 = vmatpush1.bf16.msra.mxu0 0
        %433 = vmatprep.subr.bf16.mxu0 0
        %434 = vmatpush1.bf16.msra.mxu0 0
        %435 = vmatprep.subr.bf16.mxu0 0
        %436 = vmatpush1.bf16.msra.mxu0 0
        %437 = vmatprep.subr.bf16.mxu0 0
        %438 = vmatpush1.bf16.msra.mxu0 0
        %439 = vmatprep.subr.bf16.mxu0 0
        %440 = vmatpush1.bf16.msra.mxu0 0
        %441 = vmatprep.subr.bf16.mxu0 0
        %442 = vmatpush1.bf16.msra.mxu0 %v369
        %443 = vmatprep.subr.bf16.mxu0 0
        %444 = vmatpush2.bf16.msra.mxu0 0
        %445 = vmatprep.subr.bf16.mxu0 0
        %446 = vmatpush2.bf16.msra.mxu0 0
        %447 = vmatprep.subr.bf16.mxu0 0
        %448 = vmatpush2.bf16.msra.mxu0 0
        %449 = vmatprep.subr.bf16.mxu0 0
        %450 = vmatpush2.bf16.msra.mxu0 0
        %451 = vmatprep.subr.bf16.mxu0 0
        %452 = vmatpush2.bf16.msra.mxu0 0
        %453 = vmatprep.subr.bf16.mxu0 0
        %454 = vmatpush2.bf16.msra.mxu0 0
        %455 = vmatprep.subr.bf16.mxu0 0
        %456 = vmatpush2.bf16.msra.mxu0 0
        %457 = vmatprep.subr.bf16.mxu0 0
        %458 = vmatpush2.bf16.msra.mxu0 0
        %459 = vmatprep.mubr.bf16.mxu0 0
        %460 = vmatmul.mubr.bf16.gmra.mxu0 %v373
        %v461 = vpop.f32.mrf.mxu0
        %v462 = vadd.f32 0.0, %v461
        %v463 = vpop.f32.mrf.mxu0
        %v464 = vpop.f32.mrf.mxu0
        %v465 = vadd.f32 0.0, %v464
        %v466 = vpop.f32.mrf.mxu0
        %467 = vmatprep.mubr.bf16.mxu0 0
        %468 = vmatmul.mubr.bf16.gmra.mxu0 %v376
        %v469 = vpop.f32.mrf.mxu0
        %v470 = vadd.f32 0.0, %v469
        %v471 = vpop.f32.mrf.mxu0
        %v472 = vpop.f32.mrf.mxu0
        %v473 = vadd.f32 0.0, %v472
        %v474 = vpop.f32.mrf.mxu0
        %475 = vdwg.mxu0
        %476 = vmatprep.subr.bf16.mxu0 0
        %477 = vmatpush1.bf16.msra.mxu0 0
        %478 = vmatprep.subr.bf16.mxu0 0
        %479 = vmatpush1.bf16.msra.mxu0 0
        %480 = vmatprep.subr.bf16.mxu0 0
        %481 = vmatpush1.bf16.msra.mxu0 0
        %482 = vmatprep.subr.bf16.mxu0 0
        %483 = vmatpush1.bf16.msra.mxu0 0
        %484 = vmatprep.subr.bf16.mxu0 0
        %485 = vmatpush1.bf16.msra.mxu0 0
        %486 = vmatprep.subr.bf16.mxu0 0
        %487 = vmatpush1.bf16.msra.mxu0 0
        %488 = vmatprep.subr.bf16.mxu0 0
        %489 = vmatpush1.bf16.msra.mxu0 0
        %490 = vmatprep.subr.bf16.mxu0 0
        %491 = vmatpush1.bf16.msra.mxu0 %v370
        %492 = vmatprep.subr.bf16.mxu0 0
        %493 = vmatpush2.bf16.msra.mxu0 0
        %494 = vmatprep.subr.bf16.mxu0 0
        %495 = vmatpush2.bf16.msra.mxu0 0
        %496 = vmatprep.subr.bf16.mxu0 0
        %497 = vmatpush2.bf16.msra.mxu0 0
        %498 = vmatprep.subr.bf16.mxu0 0
        %499 = vmatpush2.bf16.msra.mxu0 0
        %500 = vmatprep.subr.bf16.mxu0 0
        %501 = vmatpush2.bf16.msra.mxu0 0
        %502 = vmatprep.subr.bf16.mxu0 0
        %503 = vmatpush2.bf16.msra.mxu0 0
        %504 = vmatprep.subr.bf16.mxu0 0
        %505 = vmatpush2.bf16.msra.mxu0 0
        %506 = vmatprep.subr.bf16.mxu0 0
        %507 = vmatpush2.bf16.msra.mxu0 0
        %508 = vmatprep.mubr.bf16.mxu0 0
        %509 = vmatmul.mubr.bf16.gmra.mxu0 %v373
        %v510 = vpop.f32.mrf.mxu0
        %v511 = vadd.f32 0.0, %v510
        %v512 = vpop.f32.mrf.mxu0
        %v513 = vpop.f32.mrf.mxu0
        %v514 = vadd.f32 0.0, %v513
        %v515 = vpop.f32.mrf.mxu0
        %516 = vmatprep.mubr.bf16.mxu0 0
        %517 = vmatmul.mubr.bf16.gmra.mxu0 %v376
        %v518 = vpop.f32.mrf.mxu0
        %v519 = vadd.f32 0.0, %v518
        %v520 = vpop.f32.mrf.mxu0
        %v521 = vpop.f32.mrf.mxu0
        %v522 = vadd.f32 0.0, %v521
        %v523 = vpop.f32.mrf.mxu0
        %524 = vdwg.mxu0
        %525 = vmatprep.subr.bf16.mxu0 0
        %526 = vmatpush1.bf16.msra.mxu0 0
        %527 = vmatprep.subr.bf16.mxu0 0
        %528 = vmatpush1.bf16.msra.mxu0 0
        %529 = vmatprep.subr.bf16.mxu0 0
        %530 = vmatpush1.bf16.msra.mxu0 0
        %531 = vmatprep.subr.bf16.mxu0 0
        %532 = vmatpush1.bf16.msra.mxu0 0
        %533 = vmatprep.subr.bf16.mxu0 0
        %534 = vmatpush1.bf16.msra.mxu0 0
        %535 = vmatprep.subr.bf16.mxu0 0
        %536 = vmatpush1.bf16.msra.mxu0 0
        %537 = vmatprep.subr.bf16.mxu0 0
        %538 = vmatpush1.bf16.msra.mxu0 0
        %539 = vmatprep.subr.bf16.mxu0 0
        %540 = vmatpush1.bf16.msra.mxu0 %v371
        %541 = vmatprep.subr.bf16.mxu0 0
        %542 = vmatpush2.bf16.msra.mxu0 0
        %543 = vmatprep.subr.bf16.mxu0 0
        %544 = vmatpush2.bf16.msra.mxu0 0
        %545 = vmatprep.subr.bf16.mxu0 0
        %546 = vmatpush2.bf16.msra.mxu0 0
        %547 = vmatprep.subr.bf16.mxu0 0
        %548 = vmatpush2.bf16.msra.mxu0 0
        %549 = vmatprep.subr.bf16.mxu0 0
        %550 = vmatpush2.bf16.msra.mxu0 0
        %551 = vmatprep.subr.bf16.mxu0 0
        %552 = vmatpush2.bf16.msra.mxu0 0
        %553 = vmatprep.subr.bf16.mxu0 0
        %554 = vmatpush2.bf16.msra.mxu0 0
        %555 = vmatprep.subr.bf16.mxu0 0
        %556 = vmatpush2.bf16.msra.mxu0 0
        %557 = vmatprep.mubr.bf16.mxu0 0
        %558 = vmatmul.mubr.bf16.gmra.mxu0 %v373
        %v559 = vpop.f32.mrf.mxu0
        %v560 = vadd.f32 0.0, %v559
        %v561 = vpop.f32.mrf.mxu0
        %v562 = vpop.f32.mrf.mxu0
        %v563 = vadd.f32 0.0, %v562
        %v564 = vpop.f32.mrf.mxu0
        %565 = vmatprep.mubr.bf16.mxu0 0
        %566 = vmatmul.mubr.bf16.gmra.mxu0 %v376
        %v567 = vpop.f32.mrf.mxu0
        %v568 = vadd.f32 0.0, %v567
        %v569 = vpop.f32.mrf.mxu0
        %v570 = vpop.f32.mrf.mxu0
        %v571 = vadd.f32 0.0, %v570
        %v572 = vpop.f32.mrf.mxu0
        %573 = vdwg.mxu0
        %v574 = vpack.c.bf16 %v416, %v413
        %v575 = vpack.c.bf16 %v424, %v421
        %v576 = vpack.c.bf16 %v465, %v462
        %v577 = vpack.c.bf16 %v473, %v470
        %v578 = vpack.c.bf16 %v514, %v511
        %v579 = vpack.c.bf16 %v522, %v519
        %v580 = vpack.c.bf16 %v563, %v560
        %v581 = vpack.c.bf16 %v571, %v568
        %v590 = vunpack.c.l.b16 %v574
        %v591 = vunpack.c.h.b16 %v574
        %v592 = vunpack.c.l.b16 %v575
        %v593 = vunpack.c.h.b16 %v575
        %v594 = vunpack.c.l.b16 %v576
        %v595 = vunpack.c.h.b16 %v576
        %v596 = vunpack.c.l.b16 %v577
        %v597 = vunpack.c.h.b16 %v577
        %v598 = vunpack.c.l.b16 %v578
        %v599 = vunpack.c.h.b16 %v578
        %v600 = vunpack.c.l.b16 %v579
        %v601 = vunpack.c.h.b16 %v579
        %v602 = vunpack.c.l.b16 %v580
        %v603 = vunpack.c.h.b16 %v580
        %v604 = vunpack.c.l.b16 %v581
        %v605 = vunpack.c.h.b16 %v581
        %v606 = vpack.c.b16 %v590, %v590
        %v607 = vpack.c.b16 %v591, %v591
        %v608 = vpack.c.b16 %v592, %v592
        %v609 = vpack.c.b16 %v593, %v593
        %v610 = vpack.c.b16 %v594, %v594
        %v611 = vpack.c.b16 %v595, %v595
        %v612 = vpack.c.b16 %v596, %v596
        %v613 = vpack.c.b16 %v597, %v597
        %v614 = vpack.c.b16 %v598, %v598
        %v615 = vpack.c.b16 %v599, %v599
        %v616 = vpack.c.b16 %v600, %v600
        %v617 = vpack.c.b16 %v601, %v601
        %v618 = vpack.c.b16 %v602, %v602
        %v619 = vpack.c.b16 %v603, %v603
        %v620 = vpack.c.b16 %v604, %v604
        %v621 = vpack.c.b16 %v605, %v605
        %vm638 = vcmask 257024
        %639 = vst.msk [vmem:[%s259] sm:$0xf] %vm638, %v606
        %640 = vst.msk [vmem:[%s259 + $0x4] sm:$0xf] %vm638, %v607
        %641 = vst.msk [vmem:[%s259 + $0x8] sm:$0xf] %vm638, %v608
        %642 = vst.msk [vmem:[%s259 + $0xc] sm:$0xf] %vm638, %v609
        %643 = vst.msk [vmem:[%s259 + $0x10] sm:$0xf] %vm638, %v610
        %644 = vst.msk [vmem:[%s259 + $0x14] sm:$0xf] %vm638, %v611
        %645 = vst.msk [vmem:[%s259 + $0x18] sm:$0xf] %vm638, %v612
        %646 = vst.msk [vmem:[%s259 + $0x1c] sm:$0xf] %vm638, %v613
        %647 = vst.msk [vmem:[%s259 + $0x20] sm:$0xf] %vm638, %v614
        %648 = vst.msk [vmem:[%s259 + $0x24] sm:$0xf] %vm638, %v615
        %649 = vst.msk [vmem:[%s259 + $0x28] sm:$0xf] %vm638, %v616
        %650 = vst.msk [vmem:[%s259 + $0x2c] sm:$0xf] %vm638, %v617
        %651 = vst.msk [vmem:[%s259 + $0x30] sm:$0xf] %vm638, %v618
        %652 = vst.msk [vmem:[%s259 + $0x34] sm:$0xf] %vm638, %v619
        %653 = vst.msk [vmem:[%s259 + $0x38] sm:$0xf] %vm638, %v620
        %654 = vst.msk [vmem:[%s259 + $0x3c] sm:$0xf] %vm638, %v621
        %vm655 = vcmask 261120
        %v656 = vsel %vm655, %v413, 0.0
        %657 = vadd.xlane.f32.xlu0 %v656
        %v658 = vpop.xlane.xlu0 %657
        %v659 = vsel %vm655, %v416, 0.0
        %660 = vadd.xlane.f32.xlu0 %v659
        %v661 = vpop.xlane.xlu0 %660
        %v662 = vsel %vm655, %v421, 0.0
        %663 = vadd.xlane.f32.xlu0 %v662
        %v664 = vpop.xlane.xlu0 %663
        %v665 = vsel %vm655, %v424, 0.0
        %666 = vadd.xlane.f32.xlu0 %v665
        %v667 = vpop.xlane.xlu0 %666
        %v668 = vsel %vm655, %v462, 0.0
        %669 = vadd.xlane.f32.xlu0 %v668
        %v670 = vpop.xlane.xlu0 %669
        %v671 = vsel %vm655, %v465, 0.0
        %672 = vadd.xlane.f32.xlu0 %v671
        %v673 = vpop.xlane.xlu0 %672
        %v674 = vsel %vm655, %v470, 0.0
        %675 = vadd.xlane.f32.xlu0 %v674
        %v676 = vpop.xlane.xlu0 %675
        %v677 = vsel %vm655, %v473, 0.0
        %678 = vadd.xlane.f32.xlu0 %v677
        %v679 = vpop.xlane.xlu0 %678
        %v680 = vsel %vm655, %v511, 0.0
        %681 = vadd.xlane.f32.xlu0 %v680
        %v682 = vpop.xlane.xlu0 %681
        %v683 = vsel %vm655, %v514, 0.0
        %684 = vadd.xlane.f32.xlu0 %v683
        %v685 = vpop.xlane.xlu0 %684
        %v686 = vsel %vm655, %v519, 0.0
        %687 = vadd.xlane.f32.xlu0 %v686
        %v688 = vpop.xlane.xlu0 %687
        %v689 = vsel %vm655, %v522, 0.0
        %690 = vadd.xlane.f32.xlu0 %v689
        %v691 = vpop.xlane.xlu0 %690
        %v692 = vsel %vm655, %v560, 0.0
        %693 = vadd.xlane.f32.xlu0 %v692
        %v694 = vpop.xlane.xlu0 %693
        %v695 = vsel %vm655, %v563, 0.0
        %696 = vadd.xlane.f32.xlu0 %v695
        %v697 = vpop.xlane.xlu0 %696
        %v698 = vsel %vm655, %v568, 0.0
        %699 = vadd.xlane.f32.xlu0 %v698
        %v700 = vpop.xlane.xlu0 %699
        %v701 = vsel %vm655, %v571, 0.0
        %702 = vadd.xlane.f32.xlu0 %v701
        %v703 = vpop.xlane.xlu0 %702
        %v720 = vlaneseq
        %v721 = vand.u32 %v720, 127
        %v722 = vlaneseq
        %v723 = vshrl.u32 %v722, 7
        %v724 = vsub.s32 %v721, %v723
        %v725 = vrot.slane %v658, %v724
        %v726 = vadd.s32 %v721, 4294967288
        %v727 = vlaneseq
        %v728 = vshrl.u32 %v727, 7
        %v729 = vsub.s32 %v726, %v728
        %v730 = vrot.slane %v661, %v729
        %vm731 = vcmask 130112
        %v732 = vsel %vm731, %v730, %v725
        %v733 = vadd.s32 %v721, 4294967280
        %v734 = vlaneseq
        %v735 = vshrl.u32 %v734, 7
        %v736 = vsub.s32 %v733, %v735
        %v737 = vrot.slane %v664, %v736
        %vm738 = vcmask 195712
        %v739 = vsel %vm738, %v737, %v732
        %v740 = vadd.s32 %v721, 4294967272
        %v741 = vlaneseq
        %v742 = vshrl.u32 %v741, 7
        %v743 = vsub.s32 %v740, %v742
        %v744 = vrot.slane %v667, %v743
        %vm745 = vcmask 261312
        %v746 = vsel %vm745, %v744, %v739
        %v747 = vlaneseq
        %v748 = vshrl.u32 %v747, 7
        %v749 = vsub.s32 %v721, %v748
        %v750 = vrot.slane %v670, %v749
        %v751 = vlaneseq
        %v752 = vshrl.u32 %v751, 7
        %v753 = vsub.s32 %v726, %v752
        %v754 = vrot.slane %v673, %v753
        %v755 = vsel %vm731, %v754, %v750
        %v756 = vlaneseq
        %v757 = vshrl.u32 %v756, 7
        %v758 = vsub.s32 %v733, %v757
        %v759 = vrot.slane %v676, %v758
        %v760 = vsel %vm738, %v759, %v755
        %v761 = vlaneseq
        %v762 = vshrl.u32 %v761, 7
        %v763 = vsub.s32 %v740, %v762
        %v764 = vrot.slane %v679, %v763
        %v765 = vsel %vm745, %v764, %v760
        %v766 = vlaneseq
        %v767 = vshrl.u32 %v766, 7
        %v768 = vsub.s32 %v721, %v767
        %v769 = vrot.slane %v682, %v768
        %v770 = vlaneseq
        %v771 = vshrl.u32 %v770, 7
        %v772 = vsub.s32 %v726, %v771
        %v773 = vrot.slane %v685, %v772
        %v774 = vsel %vm731, %v773, %v769
        %v775 = vlaneseq
        %v776 = vshrl.u32 %v775, 7
        %v777 = vsub.s32 %v733, %v776
        %v778 = vrot.slane %v688, %v777
        %v779 = vsel %vm738, %v778, %v774
        %v780 = vlaneseq
        %v781 = vshrl.u32 %v780, 7
        %v782 = vsub.s32 %v740, %v781
        %v783 = vrot.slane %v691, %v782
        %v784 = vsel %vm745, %v783, %v779
        %v785 = vlaneseq
        %v786 = vshrl.u32 %v785, 7
        %v787 = vsub.s32 %v721, %v786
        %v788 = vrot.slane %v694, %v787
        %v789 = vlaneseq
        %v790 = vshrl.u32 %v789, 7
        %v791 = vsub.s32 %v726, %v790
        %v792 = vrot.slane %v697, %v791
        %v793 = vsel %vm731, %v792, %v788
        %v794 = vlaneseq
        %v795 = vshrl.u32 %v794, 7
        %v796 = vsub.s32 %v733, %v795
        %v797 = vrot.slane %v700, %v796
        %v798 = vsel %vm738, %v797, %v793
        %v799 = vlaneseq
        %v800 = vshrl.u32 %v799, 7
        %v801 = vsub.s32 %v740, %v800
        %v802 = vrot.slane %v703, %v801
        %v803 = vsel %vm745, %v802, %v798
        %vm804 = vcmask 1041409
        %v805 = vsel %vm804, %v765, %v746
        %vm806 = vcmask 1042434
        %v807 = vsel %vm806, %v784, %v805
        %vm808 = vcmask 1043459
        %v809 = vsel %vm808, %v803, %v807
        %v811 = vsel %vm638, %v809, 0.0
        %812 = vadd.xlane.f32.xlu0 %v811
        %v813 = vpop.xlane.xlu0 %812
        %v814 = vmul.f32 %v413, %v413
        %v815 = vmul.f32 %v416, %v416
        %v816 = vmul.f32 %v421, %v421
        %v817 = vmul.f32 %v424, %v424
        %v818 = vmul.f32 %v462, %v462
        %v819 = vmul.f32 %v465, %v465
        %v820 = vmul.f32 %v470, %v470
        %v821 = vmul.f32 %v473, %v473
        %v822 = vmul.f32 %v511, %v511
        %v823 = vmul.f32 %v514, %v514
        %v824 = vmul.f32 %v519, %v519
        %v825 = vmul.f32 %v522, %v522
        %v826 = vmul.f32 %v560, %v560
        %v827 = vmul.f32 %v563, %v563
        %v828 = vmul.f32 %v568, %v568
        %v829 = vmul.f32 %v571, %v571
        %v830 = vsel %vm655, %v814, 0.0
        %831 = vadd.xlane.f32.xlu0 %v830
        %v832 = vpop.xlane.xlu0 %831
        %v833 = vsel %vm655, %v815, 0.0
        %834 = vadd.xlane.f32.xlu0 %v833
        %v835 = vpop.xlane.xlu0 %834
        %v836 = vsel %vm655, %v816, 0.0
        %837 = vadd.xlane.f32.xlu0 %v836
        %v838 = vpop.xlane.xlu0 %837
        %v839 = vsel %vm655, %v817, 0.0
        %840 = vadd.xlane.f32.xlu0 %v839
        %v841 = vpop.xlane.xlu0 %840
        %v842 = vsel %vm655, %v818, 0.0
        %843 = vadd.xlane.f32.xlu0 %v842
        %v844 = vpop.xlane.xlu0 %843
        %v845 = vsel %vm655, %v819, 0.0
        %846 = vadd.xlane.f32.xlu0 %v845
        %v847 = vpop.xlane.xlu0 %846
        %v848 = vsel %vm655, %v820, 0.0
        %849 = vadd.xlane.f32.xlu0 %v848
        %v850 = vpop.xlane.xlu0 %849
        %v851 = vsel %vm655, %v821, 0.0
        %852 = vadd.xlane.f32.xlu0 %v851
        %v853 = vpop.xlane.xlu0 %852
        %v854 = vsel %vm655, %v822, 0.0
        %855 = vadd.xlane.f32.xlu0 %v854
        %v856 = vpop.xlane.xlu0 %855
        %v857 = vsel %vm655, %v823, 0.0
        %858 = vadd.xlane.f32.xlu0 %v857
        %v859 = vpop.xlane.xlu0 %858
        %v860 = vsel %vm655, %v824, 0.0
        %861 = vadd.xlane.f32.xlu0 %v860
        %v862 = vpop.xlane.xlu0 %861
        %v863 = vsel %vm655, %v825, 0.0
        %864 = vadd.xlane.f32.xlu0 %v863
        %v865 = vpop.xlane.xlu0 %864
        %v866 = vsel %vm655, %v826, 0.0
        %867 = vadd.xlane.f32.xlu0 %v866
        %v868 = vpop.xlane.xlu0 %867
        %v869 = vsel %vm655, %v827, 0.0
        %870 = vadd.xlane.f32.xlu0 %v869
        %v871 = vpop.xlane.xlu0 %870
        %v872 = vsel %vm655, %v828, 0.0
        %873 = vadd.xlane.f32.xlu0 %v872
        %v874 = vpop.xlane.xlu0 %873
        %v875 = vsel %vm655, %v829, 0.0
        %876 = vadd.xlane.f32.xlu0 %v875
        %v877 = vpop.xlane.xlu0 %876
        %v894 = vlaneseq
        %v895 = vshrl.u32 %v894, 7
        %v896 = vsub.s32 %v721, %v895
        %v897 = vrot.slane %v832, %v896
        %v898 = vlaneseq
        %v899 = vshrl.u32 %v898, 7
        %v900 = vsub.s32 %v726, %v899
        %v901 = vrot.slane %v835, %v900
        %v902 = vsel %vm731, %v901, %v897
        %v903 = vlaneseq
        %v904 = vshrl.u32 %v903, 7
        %v905 = vsub.s32 %v733, %v904
        %v906 = vrot.slane %v838, %v905
        %v907 = vsel %vm738, %v906, %v902
        %v908 = vlaneseq
        %v909 = vshrl.u32 %v908, 7
        %v910 = vsub.s32 %v740, %v909
        %v911 = vrot.slane %v841, %v910
        %v912 = vsel %vm745, %v911, %v907
        %v913 = vlaneseq
        %v914 = vshrl.u32 %v913, 7
        %v915 = vsub.s32 %v721, %v914
        %v916 = vrot.slane %v844, %v915
        %v917 = vlaneseq
        %v918 = vshrl.u32 %v917, 7
        %v919 = vsub.s32 %v726, %v918
        %v920 = vrot.slane %v847, %v919
        %v921 = vsel %vm731, %v920, %v916
        %v922 = vlaneseq
        %v923 = vshrl.u32 %v922, 7
        %v924 = vsub.s32 %v733, %v923
        %v925 = vrot.slane %v850, %v924
        %v926 = vsel %vm738, %v925, %v921
        %v927 = vlaneseq
        %v928 = vshrl.u32 %v927, 7
        %v929 = vsub.s32 %v740, %v928
        %v930 = vrot.slane %v853, %v929
        %v931 = vsel %vm745, %v930, %v926
        %v932 = vlaneseq
        %v933 = vshrl.u32 %v932, 7
        %v934 = vsub.s32 %v721, %v933
        %v935 = vrot.slane %v856, %v934
        %v936 = vlaneseq
        %v937 = vshrl.u32 %v936, 7
        %v938 = vsub.s32 %v726, %v937
        %v939 = vrot.slane %v859, %v938
        %v940 = vsel %vm731, %v939, %v935
        %v941 = vlaneseq
        %v942 = vshrl.u32 %v941, 7
        %v943 = vsub.s32 %v733, %v942
        %v944 = vrot.slane %v862, %v943
        %v945 = vsel %vm738, %v944, %v940
        %v946 = vlaneseq
        %v947 = vshrl.u32 %v946, 7
        %v948 = vsub.s32 %v740, %v947
        %v949 = vrot.slane %v865, %v948
        %v950 = vsel %vm745, %v949, %v945
        %v951 = vlaneseq
        %v952 = vshrl.u32 %v951, 7
        %v953 = vsub.s32 %v721, %v952
        %v954 = vrot.slane %v868, %v953
        %v955 = vlaneseq
        %v956 = vshrl.u32 %v955, 7
        %v957 = vsub.s32 %v726, %v956
        %v958 = vrot.slane %v871, %v957
        %v959 = vsel %vm731, %v958, %v954
        %v960 = vlaneseq
        %v961 = vshrl.u32 %v960, 7
        %v962 = vsub.s32 %v733, %v961
        %v963 = vrot.slane %v874, %v962
        %v964 = vsel %vm738, %v963, %v959
        %v965 = vlaneseq
        %v966 = vshrl.u32 %v965, 7
        %v967 = vsub.s32 %v740, %v966
        %v968 = vrot.slane %v877, %v967
        %v969 = vsel %vm745, %v968, %v964
        %v970 = vsel %vm804, %v931, %v912
        %v971 = vsel %vm806, %v950, %v970
        %v972 = vsel %vm808, %v969, %v971
        %v974 = vsel %vm638, %v972, 0.0
        %975 = vadd.xlane.f32.xlu0 %v974
        %v976 = vpop.xlane.xlu0 %975
        %vm977 = vcmask 7168
        %v978 = vsel %vm977, %v813, %v976
        %979 = vxpose.xlu0.b32.start [1/16] %v978, 128
        %980 = vxpose.xlu0.b32.cont [2/16] 0.0, 128
        %981 = vxpose.xlu0.b32.cont [3/16] 0.0, 128
        %982 = vxpose.xlu0.b32.cont [4/16] 0.0, 128
        %983 = vxpose.xlu0.b32.cont [5/16] 0.0, 128
        %984 = vxpose.xlu0.b32.cont [6/16] 0.0, 128
        %985 = vxpose.xlu0.b32.cont [7/16] 0.0, 128
        %986 = vxpose.xlu0.b32.cont [8/16] 0.0, 128
        %987 = vxpose.xlu0.b32.cont [9/16] 0.0, 128
        %988 = vxpose.xlu0.b32.cont [10/16] 0.0, 128
        %989 = vxpose.xlu0.b32.cont [11/16] 0.0, 128
        %990 = vxpose.xlu0.b32.cont [12/16] 0.0, 128
        %991 = vxpose.xlu0.b32.cont [13/16] 0.0, 128
        %992 = vxpose.xlu0.b32.cont [14/16] 0.0, 128
        %993 = vxpose.xlu0.b32.cont [15/16] 0.0, 128
        %994 = vxpose.xlu0.b32.end [16/16] 0.0, 128
        %v995 = vpop.trf.xlu0
        %v996 = vpop.trf.xlu0
        %v997 = vpop.trf.xlu0
        %v998 = vpop.trf.xlu0
        %v999 = vpop.trf.xlu0
        %v1000 = vpop.trf.xlu0
        %v1001 = vpop.trf.xlu0
        %v1002 = vpop.trf.xlu0
        %v1003 = vpop.trf.xlu0
        %v1004 = vpop.trf.xlu0
        %v1005 = vpop.trf.xlu0
        %v1006 = vpop.trf.xlu0
        %v1007 = vpop.trf.xlu0
        %v1008 = vpop.trf.xlu0
        %v1009 = vpop.trf.xlu0
        %v1010 = vpop.trf.xlu0
        %vm1011 = vcmask 25600
        %1012 = vst.msk [vmem:[%s267] sm:$0x3] %vm1011, %v995
        %s1013 = smul.u32 4, %s24
        %p1014 = scmp.lt.s32.totalorder %s23, 1
        %s1015 = scalar_select %p1014, %s23, 1
        %p1016 = scmp.lt.s32.totalorder %s1013, 3
        %s1017 = scalar_select %p1016, %s1013, 3
        %s1018 = smul.addr %s1017, 4
        %s1019 = smul.addr %s1015, 16
        %s1020 = sadd.s32 %s1018, %s1019
        %s1021 = smul.addr %s1020, 4
        %s1022 = scalar_lea.vmem %s3, %s1021
        %p1023 = scmp.lt.s32.totalorder %s23, 1
        %s1024 = scalar_select %p1023, %s23, 1
        %p1025 = scmp.lt.s32.totalorder %s24, 0
        %s1026 = scalar_select %p1025, %s24, 0
        %s1027 = sadd.s32 %s1026, %s1024
        %s1028 = smul.addr %s1027, 2
        %s1029 = scalar_lea.vmem %s4, %s1028
        // Predicated region
        $region37: #{upconv.3} parent=31 // pred_check
          %p1030 = pneg %p121
        $region38: #{upconv.3} parent=31 // pred_check_branch
          %1032 = sbr.rel (%p1030) target = $region40
        $region39: #{upconv.3} parent=31 // pred_region
          %s1033 = smul.u32 4, %s24
        $region40: #{upconv.3} parent=31 // pred_fallthru
          _
        // Predicated region
        $region41: #{upconv.3} parent=31 // pred_check
          %p1034 = pneg %p149
        $region42: #{upconv.3} parent=31 // pred_check_branch
          %1036 = sbr.rel (%p1034) target = $region44
        $region43: #{upconv.3} parent=31 // pred_region
          _
        $region44: #{upconv.3} parent=31 // pred_fallthru
          _
      $region32: #{upconv.3} parent=5 // pred_fallthru
        _
      %p1037 = scmp.le.s32.totalorder 2, %s14
      // Predicated region
      $region45: #{upconv.3} parent=5 // pred_check
        %p1038 = pneg %p1037
      $region46: #{upconv.3} parent=5 // pred_check_branch
        %1040 = sbr.rel (%p1038) target = $region48
      $region47: #{upconv.3} parent=5 // pred_region
        %s1041 = ssub.s32 %s14, 2
        // Predicated region
        $region49: #{upconv.3} parent=47 // pred_check
          %p1042 = pneg %p127
        $region50: #{upconv.3} parent=47 // pred_check_branch
          %1044 = sbr.rel (%p1042) target = $region52
        $region51: #{upconv.3} parent=47 // pred_region
          %s1045 = smul.u32 4, %s26
          %p1046 = scmp.lt.s32.totalorder %s25, 1
          %s1047 = scalar_select %p1046, %s25, 1
          %p1048 = scmp.lt.s32.totalorder %s1045, 3
          %s1049 = scalar_select %p1048, %s1045, 3
          %s1050 = smul.addr %s1049, 4
          %s1051 = smul.addr %s1047, 16
          %s1052 = sadd.s32 %s1050, %s1051
          %s1053 = smul.addr %s1052, 4
          %s1054 = scalar_lea.vmem %s3, %s1053
        $region52: #{upconv.3} parent=47 // pred_fallthru
          _
        // Predicated region
        $region53: #{upconv.3} parent=47 // pred_check
          %p1055 = pneg %p155
        $region54: #{upconv.3} parent=47 // pred_check_branch
          %1057 = sbr.rel (%p1055) target = $region56
        $region55: #{upconv.3} parent=47 // pred_region
          %p1058 = scmp.lt.s32.totalorder %s25, 1
          %s1059 = scalar_select %p1058, %s25, 1
          %p1060 = scmp.lt.s32.totalorder %s26, 0
          %s1061 = scalar_select %p1060, %s26, 0
          %s1062 = sadd.s32 %s1061, %s1059
          %s1063 = smul.addr %s1062, 2
          %s1064 = scalar_lea.vmem %s4, %s1063
        $region56: #{upconv.3} parent=47 // pred_fallthru
          _
      $region48: #{upconv.3} parent=5 // pred_fallthru
        _
    $region6: #{upconv.3} parent=1 // loop_footer
      %s18 = sadd.s32 1, %s14
    $region7: #{upconv.3} parent=1 // loop_footer_branch
      %13 = sbr.rel target = $region3
    $region8: #{upconv.3} parent=1 // loop_exit
      _
    %1065 = vsyncpa [#allocation3], 1
    %s1066 = scalar_lea.sflag [#allocation3], 1
    %1067 = vsyncpa %s1066, 1

// kernel: upconv.4
$region0: #{upconv.4}
  #allocation0 [shape = 'u32[]', space=smem, size = 0x4, offset = 0x4, fixed_abs, tag = 'smem constant byte address 0x4 - core index']
  #allocation1 [shape = 'u32[144,128]{1,0:T(1,128)}', space=vmem, size = 0x12000, scoped, tag = 'internal scratch']
  %s0 = inlined_call_operand.vmem [shape: bf16[2,4,1024], index: 0, kind: input, shape index: {}]
  %s1 = inlined_call_operand.vmem [shape: f32[4,1], index: 1, kind: input, shape index: {}]
  %s2 = inlined_call_operand.vmem [shape: f32[4,1], index: 2, kind: input, shape index: {}]
  %s3 = inlined_call_operand.vmem [shape: f32[4,8,4], index: 3, kind: input, shape index: {}]
  %s4 = inlined_call_operand.vmem [shape: f32[8,1], index: 4, kind: input, shape index: {}]
  %s5 = inlined_call_operand.vmem [shape: f32[2,2,8], index: 5, kind: output, shape index: {}]
  %s6 = sld [smem:[#allocation0]]
  $region53: #{upconv.4} parent=0
    _
  %s8 = ssub.s32 1, %s6
  %s9 = scalar_select 0, %s8, %s6
  loop: start=0, step=1, limit=4
  $region2: #{upconv.4} parent=0 // loop_pre_header
    _
  $region3: #{upconv.4} parent=0 // loop_header
    %s11 = sphi 0, %s15
    %p12 = scmp.ge.s32.totalorder %s11, 4
    %s21 = sphi 0, %s23
    %s24 = sphi 0, %s21
    %s25 = sphi 0, %s24
    %s41 = sphi 0, %s25
    %s45 = sphi 0, %s45
    %s47 = sphi 0, %s45
    %s48 = sphi 0, %s47
    %s62 = sphi 0, %s48
    %s66 = sphi 0, %s66
    %s68 = sphi 0, %s66
    %s69 = sphi 0, %s68
    %s83 = sphi 0, %s69
    %s87 = sphi 0, %s87
    %s89 = sphi 0, %s87
    %s90 = sphi 0, %s89
    %s104 = sphi 0, %s90
    %s108 = sphi 0, %s108
    %s110 = sphi 0, %s108
    %s111 = sphi 0, %s110
    %s125 = sphi 0, %s111
    %s131 = sphi 0, %s133
    %s134 = sphi 0, %s131
    %s135 = sphi 0, %s134
    %s151 = sphi 0, %s135
  $region4: #{upconv.4} parent=0 // loop_header_branch
    %14 = sbr.rel (%p12) target = $region8
  $region5: #{upconv.4} parent=0 // loop_body
    %s16 = ssub.s32 %s11, 1
    %s17 = ssub.s32 %s11, 2
    %s18 = sadd.s32 %s11, 1
    %s19 = ssub.s32 %s11, %s18
    %p20 = scmp.eq.s32.totalorder %s19, 0
    %s22 = sadd.s32 %s21, 1
    %s23 = scalar_select %p20, %s21, %s22
    %p26 = pneg %p20
    %p27 = scmp.eq.s32.totalorder %s11, 1
    %p28 = por %p26, %p27
    %p29 = scmp.ne.s32.totalorder %s21, %s24
    %p30 = scmp.eq.s32.totalorder %s11, 0
    %p31 = por %p29, %p30
    %p32 = scmp.ne.s32.totalorder %s21, %s24
    %p33 = scmp.eq.s32.totalorder %s16, 1
    %p34 = por %p32, %p33
    %p35 = scmp.ne.s32.totalorder %s24, %s25
    %p36 = scmp.eq.s32.totalorder %s16, 0
    %p37 = por %p35, %p36
    %p38 = scmp.ne.s32.totalorder %s24, %s25
    %p39 = scmp.eq.s32.totalorder %s17, 1
    %p40 = por %p38, %p39
    %p42 = scmp.ne.s32.totalorder %s25, %s41
    %p43 = scmp.eq.s32.totalorder %s17, 0
    %p44 = por %p42, %p43
    %s46 = sadd.s32 %s45, 1
    %p49 = scmp.eq.s32.totalorder %s11, 1
    %p50 = scmp.ne.s32.totalorder %s45, %s47
    %p51 = scmp.eq.s32.totalorder %s11, 0
    %p52 = por %p50, %p51
    %p53 = scmp.ne.s32.totalorder %s45, %s47
    %p54 = scmp.eq.s32.totalorder %s16, 1
    %p55 = por %p53, %p54
    %p56 = scmp.ne.s32.totalorder %s47, %s48
    %p57 = scmp.eq.s32.totalorder %s16, 0
    %p58 = por %p56, %p57
    %p59 = scmp.ne.s32.totalorder %s47, %s48
    %p60 = scmp.eq.s32.totalorder %s17, 1
    %p61 = por %p59, %p60
    %p63 = scmp.ne.s32.totalorder %s48, %s62
    %p64 = scmp.eq.s32.totalorder %s17, 0
    %p65 = por %p63, %p64
    %s67 = sadd.s32 %s66, 1
    %p70 = scmp.eq.s32.totalorder %s11, 1
    %p71 = scmp.ne.s32.totalorder %s66, %s68
    %p72 = scmp.eq.s32.totalorder %s11, 0
    %p73 = por %p71, %p72
    %p74 = scmp.ne.s32.totalorder %s66, %s68
    %p75 = scmp.eq.s32.totalorder %s16, 1
    %p76 = por %p74, %p75
    %p77 = scmp.ne.s32.totalorder %s68, %s69
    %p78 = scmp.eq.s32.totalorder %s16, 0
    %p79 = por %p77, %p78
    %p80 = scmp.ne.s32.totalorder %s68, %s69
    %p81 = scmp.eq.s32.totalorder %s17, 1
    %p82 = por %p80, %p81
    %p84 = scmp.ne.s32.totalorder %s69, %s83
    %p85 = scmp.eq.s32.totalorder %s17, 0
    %p86 = por %p84, %p85
    %s88 = sadd.s32 %s87, 1
    %p91 = scmp.eq.s32.totalorder %s11, 1
    %p92 = scmp.ne.s32.totalorder %s87, %s89
    %p93 = scmp.eq.s32.totalorder %s11, 0
    %p94 = por %p92, %p93
    %p95 = scmp.ne.s32.totalorder %s87, %s89
    %p96 = scmp.eq.s32.totalorder %s16, 1
    %p97 = por %p95, %p96
    %p98 = scmp.ne.s32.totalorder %s89, %s90
    %p99 = scmp.eq.s32.totalorder %s16, 0
    %p100 = por %p98, %p99
    %p101 = scmp.ne.s32.totalorder %s89, %s90
    %p102 = scmp.eq.s32.totalorder %s17, 1
    %p103 = por %p101, %p102
    %p105 = scmp.ne.s32.totalorder %s90, %s104
    %p106 = scmp.eq.s32.totalorder %s17, 0
    %p107 = por %p105, %p106
    %s109 = sadd.s32 %s108, 1
    %p112 = scmp.eq.s32.totalorder %s11, 1
    %p113 = scmp.ne.s32.totalorder %s108, %s110
    %p114 = scmp.eq.s32.totalorder %s11, 0
    %p115 = por %p113, %p114
    %p116 = scmp.ne.s32.totalorder %s108, %s110
    %p117 = scmp.eq.s32.totalorder %s16, 1
    %p118 = por %p116, %p117
    %p119 = scmp.ne.s32.totalorder %s110, %s111
    %p120 = scmp.eq.s32.totalorder %s16, 0
    %p121 = por %p119, %p120
    %p122 = scmp.ne.s32.totalorder %s110, %s111
    %p123 = scmp.eq.s32.totalorder %s17, 1
    %p124 = por %p122, %p123
    %p126 = scmp.ne.s32.totalorder %s111, %s125
    %p127 = scmp.eq.s32.totalorder %s17, 0
    %p128 = por %p126, %p127
    %s129 = ssub.s32 %s11, %s18
    %p130 = scmp.eq.s32.totalorder %s129, 0
    %s132 = sadd.s32 %s131, 1
    %s133 = scalar_select %p130, %s131, %s132
    %p136 = pneg %p130
    %p137 = scmp.eq.s32.totalorder %s11, 1
    %p138 = por %p136, %p137
    %p139 = scmp.ne.s32.totalorder %s131, %s134
    %p140 = scmp.eq.s32.totalorder %s11, 0
    %p141 = por %p139, %p140
    %p142 = scmp.ne.s32.totalorder %s131, %s134
    %p143 = scmp.eq.s32.totalorder %s16, 1
    %p144 = por %p142, %p143
    %p145 = scmp.ne.s32.totalorder %s134, %s135
    %p146 = scmp.eq.s32.totalorder %s16, 0
    %p147 = por %p145, %p146
    %p148 = scmp.ne.s32.totalorder %s134, %s135
    %p149 = scmp.eq.s32.totalorder %s17, 1
    %p150 = por %p148, %p149
    %p152 = scmp.ne.s32.totalorder %s135, %s151
    %p153 = scmp.eq.s32.totalorder %s17, 0
    %p154 = por %p152, %p153
    %p155 = scmp.le.s32.totalorder 1, %s11
    %p156 = scmp.lt.s32.totalorder %s11, 3
    %p157 = pnand %p155, %p156
    %p158 = pneg %p157
    // Predicated region
    $region9: #{upconv.4} parent=5 // pred_check
      _
    $region10: #{upconv.4} parent=5 // pred_check_branch
      %160 = sbr.rel (%p157) target = $region12
    $region11: #{upconv.4} parent=5 // pred_region
      %s161 = ssub.s32 %s11, 1
      // Predicated region
      $region13: #{upconv.4} parent=11 // pred_check
        %p162 = pneg %p58
      $region14: #{upconv.4} parent=11 // pred_check_branch
        %164 = sbr.rel (%p162) target = $region16
      $region15: #{upconv.4} parent=11 // pred_region
        _
      $region16: #{upconv.4} parent=11 // pred_fallthru
        _
      // Predicated region
      $region17: #{upconv.4} parent=11 // pred_check
        %p165 = pneg %p79
      $region18: #{upconv.4} parent=11 // pred_check_branch
        %167 = sbr.rel (%p165) target = $region20
      $region19: #{upconv.4} parent=11 // pred_region
        _
      $region20: #{upconv.4} parent=11 // pred_fallthru
        _
      // Predicated region
      $region21: #{upconv.4} parent=11 // pred_check
        %p168 = pneg %p100
      $region22: #{upconv.4} parent=11 // pred_check_branch
        %170 = sbr.rel (%p168) target = $region24
      $region23: #{upconv.4} parent=11 // pred_region
        _
      $region24: #{upconv.4} parent=11 // pred_fallthru
        _
      // Predicated region
      $region25: #{upconv.4} parent=11 // pred_check
        %p171 = pneg %p121
      $region26: #{upconv.4} parent=11 // pred_check_branch
        %173 = sbr.rel (%p171) target = $region28
      $region27: #{upconv.4} parent=11 // pred_region
        _
      $region28: #{upconv.4} parent=11 // pred_fallthru
        _
    $region12: #{upconv.4} parent=5 // pred_fallthru
      _
    %p174 = scmp.lt.s32.totalorder %s11, 2
    // Predicated region
    $region29: #{upconv.4} parent=5 // pred_check
      %p175 = pneg %p174
    $region30: #{upconv.4} parent=5 // pred_check_branch
      %177 = sbr.rel (%p175) target = $region32
    $region31: #{upconv.4} parent=5 // pred_region
      // Predicated region
      $region33: #{upconv.4} parent=31 // pred_check
        %p178 = pneg %p31
      $region34: #{upconv.4} parent=31 // pred_check_branch
        %180 = sbr.rel (%p178) target = $region36
      $region35: #{upconv.4} parent=31 // pred_region
        %p181 = scmp.lt.s32.totalorder %s11, 1
        %s182 = scalar_select %p181, %s11, 1
        %s183 = smul.addr %s182, 8
        %s184 = smul.addr %s183, 2
        %s185 = scalar_lea.vmem %s0, %s184
      $region36: #{upconv.4} parent=31 // pred_fallthru
        _
    $region32: #{upconv.4} parent=5 // pred_fallthru
      _
    %p186 = scmp.le.s32.totalorder 1, %s11
    %p187 = scmp.lt.s32.totalorder %s11, 3
    %p188 = pnand %p186, %p187
    %p189 = pneg %p188
    // Predicated region
    $region37: #{upconv.4} parent=5 // pred_check
      _
    $region38: #{upconv.4} parent=5 // pred_check_branch
      %191 = sbr.rel (%p188) target = $region40
    $region39: #{upconv.4} parent=5 // pred_region
      %s192 = ssub.s32 %s11, 1
      %p193 = scmp.lt.s32.totalorder %s16, 1
      %s194 = scalar_select %p193, %s16, 1
      %s195 = smul.addr %s194, 8
      %s196 = smul.addr %s195, 2
      %s197 = scalar_lea.vmem %s0, %s196
      %p198 = pneg %p37
      %p199 = pneg %p34
      %p200 = pneg %p58
      %p201 = pneg %p55
      %p202 = pneg %p79
      %p203 = pneg %p76
      %p204 = pneg %p100
      %p205 = pneg %p97
      %p206 = pneg %p121
      %p207 = pneg %p118
      %p208 = pneg %p147
      %p209 = pneg %p144
      %p210 = scmp.lt.s32.totalorder %s16, 1
      %s211 = scalar_select %p210, %s16, 1
      %s212 = smul.addr %s211, 2
      %s213 = scalar_lea.vmem %s5, %s212
      %p214 = scmp.lt.s32.totalorder %s16, 1
      %s215 = scalar_select %p214, %s16, 1
      %s216 = smul.addr %s215, 8
      %s217 = smul.addr %s216, 2
      %s218 = scalar_lea.vmem %s0, %s217
      %p219 = scmp.lt.s32.totalorder %s16, 1
      %s220 = scalar_select %p219, %s16, 1
      %s221 = smul.addr %s220, 2
      %s222 = scalar_lea.vmem %s5, %s221
      %v224 = vld [vmem:[%s218] sm:$0xff]
      %v225 = vld [vmem:[%s218 + $0x8] sm:$0xff]
      %v226 = vunpack.c.l.bf16 %v224
      %v227 = vunpack.c.h.bf16 %v224
      %v228 = vunpack.c.l.bf16 %v225
      %v229 = vunpack.c.h.bf16 %v225
      %v230 = vld [vmem:[%s1] sm:$0xf]
      %232 = vset.pattern.permute.xlu0 0
      %233 = vperm.xlu0 %232, %v230
      %v234 = vpop.permute.xlu0 %233
      %v236 = vunpack.c.l.s4 839922192
      %v237 = vunpack.c.0.s8 %v236
      %v238 = vlaneseq
      %v239 = vshrl.u32 %v238, 7
      %v240 = vsub.s32 %v237, %v239
      %v241 = vrot.slane %v234, %v240
      %v243 = vmul.f32 %v226, %v241
      %v244 = vmul.f32 %v227, %v241
      %v245 = vmul.f32 %v228, %v241
      %v246 = vmul.f32 %v229, %v241
      %v247 = vld [vmem:[%s2] sm:$0xf]
      %249 = vset.pattern.permute.xlu0 0
      %250 = vperm.xlu0 %249, %v247
      %v251 = vpop.permute.xlu0 %250
      %v253 = vunpack.c.l.s4 839922192
      %v254 = vunpack.c.0.s8 %v253
      %v255 = vlaneseq
      %v256 = vshrl.u32 %v255, 7
      %v257 = vsub.s32 %v254, %v256
      %v258 = vrot.slane %v251, %v257
      %v260 = vadd.f32 %v243, %v258
      %v261 = vadd.f32 %v244, %v258
      %v262 = vadd.f32 %v245, %v258
      %v263 = vadd.f32 %v246, %v258
      %v264 = vlaneseq
      %v265 = vand.u32 %v264, 127
      %v266 = vadd.s32 %v265, 128
      %v267 = vadd.s32 %v265, 256
      %v268 = vadd.s32 %v265, 384
      %v269 = vadd.s32 %v265, 512
      %v270 = vadd.s32 %v265, 640
      %v271 = vadd.s32 %v265, 768
      %v272 = vadd.s32 %v265, 896
      %vm273 = vcmp.lt.s32.totalorder %v265, 0
      %v274 = vsub.s32 0, %v265
      %v275 = vsel %vm273, %v274, %v265
      %v276 = vshrl.u32 %v275, 5
      %v277 = vand.u32 %v275, 31
      %v278 = vsub.s32 0, %v277
      %v279 = vsel %vm273, %v278, %v277
      %vm280 = vcmp.lt.s32.totalorder %v266, 0
      %v281 = vsub.s32 0, %v266
      %v282 = vsel %vm280, %v281, %v266
      %v283 = vshrl.u32 %v282, 5
      %v284 = vand.u32 %v282, 31
      %v285 = vsub.s32 0, %v284
      %v286 = vsel %vm280, %v285, %v284
      %vm287 = vcmp.lt.s32.totalorder %v267, 0
      %v288 = vsub.s32 0, %v267
      %v289 = vsel %vm287, %v288, %v267
      %v290 = vshrl.u32 %v289, 5
      %v291 = vand.u32 %v289, 31
      %v292 = vsub.s32 0, %v291
      %v293 = vsel %vm287, %v292, %v291
      %vm294 = vcmp.lt.s32.totalorder %v268, 0
      %v295 = vsub.s32 0, %v268
      %v296 = vsel %vm294, %v295, %v268
      %v297 = vshrl.u32 %v296, 5
      %v298 = vand.u32 %v296, 31
      %v299 = vsub.s32 0, %v298
      %v300 = vsel %vm294, %v299, %v298
      %vm301 = vcmp.lt.s32.totalorder %v269, 0
      %v302 = vsub.s32 0, %v269
      %v303 = vsel %vm301, %v302, %v269
      %v304 = vshrl.u32 %v303, 5
      %v305 = vand.u32 %v303, 31
      %v306 = vsub.s32 0, %v305
      %v307 = vsel %vm301, %v306, %v305
      %vm308 = vcmp.lt.s32.totalorder %v270, 0
      %v309 = vsub.s32 0, %v270
      %v310 = vsel %vm308, %v309, %v270
      %v311 = vshrl.u32 %v310, 5
      %v312 = vand.u32 %v310, 31
      %v313 = vsub.s32 0, %v312
      %v314 = vsel %vm308, %v313, %v312
      %vm315 = vcmp.lt.s32.totalorder %v271, 0
      %v316 = vsub.s32 0, %v271
      %v317 = vsel %vm315, %v316, %v271
      %v318 = vshrl.u32 %v317, 5
      %v319 = vand.u32 %v317, 31
      %v320 = vsub.s32 0, %v319
      %v321 = vsel %vm315, %v320, %v319
      %vm322 = vcmp.lt.s32.totalorder %v272, 0
      %v323 = vsub.s32 0, %v272
      %v324 = vsel %vm322, %v323, %v272
      %v325 = vshrl.u32 %v324, 5
      %v326 = vand.u32 %v324, 31
      %v327 = vsub.s32 0, %v326
      %v328 = vsel %vm322, %v327, %v326
      %vm329 = vcmp.ne.s32.totalorder %v279, 0
      %vm330 = vcmp.ne.s32.totalorder %v286, 0
      %vm331 = vcmp.ne.s32.totalorder %v293, 0
      %vm332 = vcmp.ne.s32.totalorder %v300, 0
      %vm333 = vcmp.ne.s32.totalorder %v307, 0
      %vm334 = vcmp.ne.s32.totalorder %v314, 0
      %vm335 = vcmp.ne.s32.totalorder %v321, 0
      %vm336 = vcmp.ne.s32.totalorder %v328, 0
      %vm337 = vcmp.lt.s32.totalorder %v279, 0
      %vm338 = vcmp.lt.s32.totalorder %v286, 0
      %vm339 = vcmp.lt.s32.totalorder %v293, 0
      %vm340 = vcmp.lt.s32.totalorder %v300, 0
      %vm341 = vcmp.lt.s32.totalorder %v307, 0
      %vm342 = vcmp.lt.s32.totalorder %v314, 0
      %vm343 = vcmp.lt.s32.totalorder %v321, 0
      %vm344 = vcmp.lt.s32.totalorder %v328, 0
      %vm345 = vmand %vm337, %vm329
      %vm346 = vmand %vm338, %vm330
      %vm347 = vmand %vm339, %vm331
      %vm348 = vmand %vm340, %vm332
      %vm349 = vmand %vm341, %vm333
      %vm350 = vmand %vm342, %vm334
      %vm351 = vmand %vm343, %vm335
      %vm352 = vmand %vm344, %vm336
      %v353 = vadd.s32 %v279, 32
      %v354 = vadd.s32 %v286, 32
      %v355 = vadd.s32 %v293, 32
      %v356 = vadd.s32 %v300, 32
      %v357 = vadd.s32 %v307, 32
      %v358 = vadd.s32 %v314, 32
      %v359 = vadd.s32 %v321, 32
      %v360 = vadd.s32 %v328, 32
      %v361 = vsel %vm345, %v353, %v279
      %v362 = vsel %vm346, %v354, %v286
      %v363 = vsel %vm347, %v355, %v293
      %v364 = vsel %vm348, %v356, %v300
      %v365 = vsel %vm349, %v357, %v307
      %v366 = vsel %vm350, %v358, %v314
      %v367 = vsel %vm351, %v359, %v321
      %v368 = vsel %vm352, %v360, %v328
      %vm369 = vcmp.ne.s32.totalorder %v361, 31
      %vm370 = vcmp.ne.s32.totalorder %v362, 31
      %vm371 = vcmp.ne.s32.totalorder %v363, 31
      %vm372 = vcmp.ne.s32.totalorder %v364, 31
      %vm373 = vcmp.ne.s32.totalorder %v365, 31
      %vm374 = vcmp.ne.s32.totalorder %v366, 31
      %vm375 = vcmp.ne.s32.totalorder %v367, 31
      %vm376 = vcmp.ne.s32.totalorder %v368, 31
      %vm377 = vcmp.lt.s32.totalorder %v265, 992
      %vm378 = vcmp.lt.s32.totalorder %v266, 992
      %vm379 = vcmp.lt.s32.totalorder %v267, 992
      %vm380 = vcmp.lt.s32.totalorder %v268, 992
      %vm381 = vcmp.lt.s32.totalorder %v269, 992
      %vm382 = vcmp.lt.s32.totalorder %v270, 992
      %vm383 = vcmp.lt.s32.totalorder %v271, 992
      %vm384 = vcmp.lt.s32.totalorder %v272, 992
      %v389 = vcombine.high %v260, %v260
      %v390 = vcombine.high %v261, %v261
      %v391 = vcombine.high %v262, %v262
      %v392 = vcombine.high %v263, %v263
      %397 = vrot.lane.b32.xlu0 %v260, 127
      %v398 = vpop.permute.xlu0 %397
      %399 = vrot.lane.b32.xlu0 %v389, 127
      %v400 = vpop.permute.xlu0 %399
      %401 = vrot.lane.b32.xlu0 %v261, 127
      %v402 = vpop.permute.xlu0 %401
      %403 = vrot.lane.b32.xlu0 %v390, 127
      %v404 = vpop.permute.xlu0 %403
      %405 = vrot.lane.b32.xlu0 %v262, 127
      %v406 = vpop.permute.xlu0 %405
      %407 = vrot.lane.b32.xlu0 %v391, 127
      %v408 = vpop.permute.xlu0 %407
      %409 = vrot.lane.b32.xlu0 %v263, 127
      %v410 = vpop.permute.xlu0 %409
      %411 = vrot.lane.b32.xlu0 %v392, 127
      %v412 = vpop.permute.xlu0 %411
      %vm413 = vcmp.lt.s32.totalorder %v265, 127
      %v414 = vsel %vm413, %v410, %v412
      %v415 = vsel %vm413, %v408, %v410
      %v416 = vsel %vm413, %v406, %v408
      %v417 = vsel %vm413, %v404, %v406
      %v418 = vsel %vm413, %v402, %v404
      %v419 = vsel %vm413, %v400, %v402
      %v420 = vsel %vm413, %v398, %v400
      %v421 = vsel %vm413, %v412, %v398
      %v422 = vsel %vm369, %v420, 0.0
      %v423 = vsel %vm370, %v419, 0.0
      %v424 = vsel %vm371, %v418, 0.0
      %v425 = vsel %vm372, %v417, 0.0
      %v426 = vsel %vm373, %v416, 0.0
      %v427 = vsel %vm374, %v415, 0.0
      %v428 = vsel %vm375, %v414, 0.0
      %v429 = vsel %vm376, %v421, 0.0
      %430 = vrot.lane.b32.xlu0 %v260, 96
      %v431 = vpop.permute.xlu0 %430
      %432 = vrot.lane.b32.xlu0 %v389, 96
      %v433 = vpop.permute.xlu0 %432
      %434 = vrot.lane.b32.xlu0 %v261, 96
      %v435 = vpop.permute.xlu0 %434
      %436 = vrot.lane.b32.xlu0 %v390, 96
      %v437 = vpop.permute.xlu0 %436
      %438 = vrot.lane.b32.xlu0 %v262, 96
      %v439 = vpop.permute.xlu0 %438
      %440 = vrot.lane.b32.xlu0 %v391, 96
      %v441 = vpop.permute.xlu0 %440
      %442 = vrot.lane.b32.xlu0 %v263, 96
      %v443 = vpop.permute.xlu0 %442
      %444 = vrot.lane.b32.xlu0 %v392, 96
      %v445 = vpop.permute.xlu0 %444
      %vm446 = vcmp.lt.s32.totalorder %v265, 96
      %v447 = vsel %vm446, %v443, %v445
      %v448 = vsel %vm446, %v441, %v443
      %v449 = vsel %vm446, %v439, %v441
      %v450 = vsel %vm446, %v437, %v439
      %v451 = vsel %vm446, %v435, %v437
      %v452 = vsel %vm446, %v433, %v435
      %v453 = vsel %vm446, %v431, %v433
      %v454 = vsel %vm446, %v445, %v431
      %v455 = vsel %vm377, %v453, 0.0
      %v456 = vsel %vm378, %v452, 0.0
      %v457 = vsel %vm379, %v451, 0.0
      %v458 = vsel %vm380, %v450, 0.0
      %v459 = vsel %vm381, %v449, 0.0
      %v460 = vsel %vm382, %v448, 0.0
      %v461 = vsel %vm383, %v447, 0.0
      %v462 = vsel %vm384, %v454, 0.0
      %vm463 = vmand %vm377, %vm369
      %vm464 = vmand %vm378, %vm370
      %vm465 = vmand %vm379, %vm371
      %vm466 = vmand %vm380, %vm372
      %vm467 = vmand %vm381, %vm373
      %vm468 = vmand %vm382, %vm374
      %vm469 = vmand %vm383, %vm375
      %vm470 = vmand %vm384, %vm376
      %471 = vrot.lane.b32.xlu0 %v260, 95
      %v472 = vpop.permute.xlu0 %471
      %473 = vrot.lane.b32.xlu0 %v389, 95
      %v474 = vpop.permute.xlu0 %473
      %475 = vrot.lane.b32.xlu0 %v261, 95
      %v476 = vpop.permute.xlu0 %475
      %477 = vrot.lane.b32.xlu0 %v390, 95
      %v478 = vpop.permute.xlu0 %477
      %479 = vrot.lane.b32.xlu0 %v262, 95
      %v480 = vpop.permute.xlu0 %479
      %481 = vrot.lane.b32.xlu0 %v391, 95
      %v482 = vpop.permute.xlu0 %481
      %483 = vrot.lane.b32.xlu0 %v263, 95
      %v484 = vpop.permute.xlu0 %483
      %485 = vrot.lane.b32.xlu0 %v392, 95
      %v486 = vpop.permute.xlu0 %485
      %vm487 = vcmp.lt.s32.totalorder %v265, 95
      %v488 = vsel %vm487, %v484, %v486
      %v489 = vsel %vm487, %v482, %v484
      %v490 = vsel %vm487, %v480, %v482
      %v491 = vsel %vm487, %v478, %v480
      %v492 = vsel %vm487, %v476, %v478
      %v493 = vsel %vm487, %v474, %v476
      %v494 = vsel %vm487, %v472, %v474
      %v495 = vsel %vm487, %v486, %v472
      %v496 = vsel %vm463, %v494, 0.0
      %v497 = vsel %vm464, %v493, 0.0
      %v498 = vsel %vm465, %v492, 0.0
      %v499 = vsel %vm466, %v491, 0.0
      %v500 = vsel %vm467, %v490, 0.0
      %v501 = vsel %vm468, %v489, 0.0
      %v502 = vsel %vm469, %v488, 0.0
      %v503 = vsel %vm470, %v495, 0.0
      %v504 = vld [vmem:[%s3] sm:$0xff]
      %v505 = vpack.c.bf16 %v504, %v504
      %v506 = vpack.c.bf16 %v260, %v260
      %v507 = vpack.c.bf16 %v389, %v389
      %v508 = vpack.c.bf16 %v261, %v261
      %v509 = vpack.c.bf16 %v390, %v390
      %v510 = vpack.c.bf16 %v262, %v262
      %v511 = vpack.c.bf16 %v391, %v391
      %v512 = vpack.c.bf16 %v263, %v263
      %v513 = vpack.c.bf16 %v392, %v392
      %s514 = scalar_lea.vmem %s3, 8
      %v515 = vld [vmem:[%s514] sm:$0xff]
      %v516 = vpack.c.bf16 %v515, %v515
      %v517 = vpack.c.bf16 %v422, %v422
      %v518 = vpack.c.bf16 %v423, %v423
      %v519 = vpack.c.bf16 %v424, %v424
      %v520 = vpack.c.bf16 %v425, %v425
      %v521 = vpack.c.bf16 %v426, %v426
      %v522 = vpack.c.bf16 %v427, %v427
      %v523 = vpack.c.bf16 %v428, %v428
      %v524 = vpack.c.bf16 %v429, %v429
      %vm525 = vcmask 31744
      %v527 = vsel %vm525, %v516, 0
      %vm529 = vcmask 1041408
      %v531 = vsel %vm529, %v517, 0
      %v534 = vsel %vm529, %v518, 0
      %v537 = vsel %vm529, %v519, 0
      %v540 = vsel %vm529, %v520, 0
      %v543 = vsel %vm529, %v521, 0
      %v546 = vsel %vm529, %v522, 0
      %v549 = vsel %vm529, %v523, 0
      %v552 = vsel %vm529, %v524, 0
      %554 = vmatprep.subr.bf16.mxu0 0
      %555 = vmatpush1.bf16.msra.mxu0 0
      %556 = vmatprep.subr.bf16.mxu0 0
      %557 = vmatpush1.bf16.msra.mxu0 0
      %558 = vmatprep.subr.bf16.mxu0 0
      %559 = vmatpush1.bf16.msra.mxu0 0
      %560 = vmatprep.subr.bf16.mxu0 0
      %561 = vmatpush1.bf16.msra.mxu0 0
      %562 = vmatprep.subr.bf16.mxu0 0
      %563 = vmatpush1.bf16.msra.mxu0 0
      %564 = vmatprep.subr.bf16.mxu0 0
      %565 = vmatpush1.bf16.msra.mxu0 0
      %566 = vmatprep.subr.bf16.mxu0 0
      %567 = vmatpush1.bf16.msra.mxu0 0
      %568 = vmatprep.subr.bf16.mxu0 %v534
      %569 = vmatpush1.bf16.msra.mxu0 %v531
      %570 = vmatprep.subr.bf16.mxu0 0
      %571 = vmatpush2.bf16.msra.mxu0 0
      %572 = vmatprep.subr.bf16.mxu0 0
      %573 = vmatpush2.bf16.msra.mxu0 0
      %574 = vmatprep.subr.bf16.mxu0 0
      %575 = vmatpush2.bf16.msra.mxu0 0
      %576 = vmatprep.subr.bf16.mxu0 0
      %577 = vmatpush2.bf16.msra.mxu0 0
      %578 = vmatprep.subr.bf16.mxu0 0
      %579 = vmatpush2.bf16.msra.mxu0 0
      %580 = vmatprep.subr.bf16.mxu0 0
      %581 = vmatpush2.bf16.msra.mxu0 0
      %582 = vmatprep.subr.bf16.mxu0 0
      %583 = vmatpush2.bf16.msra.mxu0 0
      %584 = vmatprep.subr.bf16.mxu0 0
      %585 = vmatpush2.bf16.msra.mxu0 0
      %586 = vmatprep.mubr.bf16.mxu0 0
      %587 = vmatmul.mubr.bf16.gmra.mxu0 %v527
      %v588 = vpop.f32.mrf.mxu0
      %v589 = vadd.f32 0.0, %v588
      %v590 = vpop.f32.mrf.mxu0
      %v591 = vadd.f32 0.0, %v590
      %v592 = vpop.f32.mrf.mxu0
      %v593 = vpop.f32.mrf.mxu0
      %594 = vdwg.mxu0
      %595 = vmatprep.subr.bf16.mxu0 0
      %596 = vmatpush1.bf16.msra.mxu0 0
      %597 = vmatprep.subr.bf16.mxu0 0
      %598 = vmatpush1.bf16.msra.mxu0 0
      %599 = vmatprep.subr.bf16.mxu0 0
      %600 = vmatpush1.bf16.msra.mxu0 0
      %601 = vmatprep.subr.bf16.mxu0 0
      %602 = vmatpush1.bf16.msra.mxu0 0
      %603 = vmatprep.subr.bf16.mxu0 0
      %604 = vmatpush1.bf16.msra.mxu0 0
      %605 = vmatprep.subr.bf16.mxu0 0
      %606 = vmatpush1.bf16.msra.mxu0 0
      %607 = vmatprep.subr.bf16.mxu0 0
      %608 = vmatpush1.bf16.msra.mxu0 0
      %609 = vmatprep.subr.bf16.mxu0 %v540
      %610 = vmatpush1.bf16.msra.mxu0 %v537
      %611 = vmatprep.subr.bf16.mxu0 0
      %612 = vmatpush2.bf16.msra.mxu0 0
      %613 = vmatprep.subr.bf16.mxu0 0
      %614 = vmatpush2.bf16.msra.mxu0 0
      %615 = vmatprep.subr.bf16.mxu0 0
      %616 = vmatpush2.bf16.msra.mxu0 0
      %617 = vmatprep.subr.bf16.mxu0 0
      %618 = vmatpush2.bf16.msra.mxu0 0
      %619 = vmatprep.subr.bf16.mxu0 0
      %620 = vmatpush2.bf16.msra.mxu0 0
      %621 = vmatprep.subr.bf16.mxu0 0
      %622 = vmatpush2.bf16.msra.mxu0 0
      %623 = vmatprep.subr.bf16.mxu0 0
      %624 = vmatpush2.bf16.msra.mxu0 0
      %625 = vmatprep.subr.bf16.mxu0 0
      %626 = vmatpush2.bf16.msra.mxu0 0
      %627 = vmatprep.mubr.bf16.mxu0 0
      %628 = vmatmul.mubr.bf16.gmra.mxu0 %v527
      %v629 = vpop.f32.mrf.mxu0
      %v630 = vadd.f32 0.0, %v629
      %v631 = vpop.f32.mrf.mxu0
      %v632 = vadd.f32 0.0, %v631
      %v633 = vpop.f32.mrf.mxu0
      %v634 = vpop.f32.mrf.mxu0
      %635 = vdwg.mxu0
      %636 = vmatprep.subr.bf16.mxu0 0
      %637 = vmatpush1.bf16.msra.mxu0 0
      %638 = vmatprep.subr.bf16.mxu0 0
      %639 = vmatpush1.bf16.msra.mxu0 0
      %640 = vmatprep.subr.bf16.mxu0 0
      %641 = vmatpush1.bf16.msra.mxu0 0
      %642 = vmatprep.subr.bf16.mxu0 0
      %643 = vmatpush1.bf16.msra.mxu0 0
      %644 = vmatprep.subr.bf16.mxu0 0
      %645 = vmatpush1.bf16.msra.mxu0 0
      %646 = vmatprep.subr.bf16.mxu0 0
      %647 = vmatpush1.bf16.msra.mxu0 0
      %648 = vmatprep.subr.bf16.mxu0 0
      %649 = vmatpush1.bf16.msra.mxu0 0
      %650 = vmatprep.subr.bf16.mxu0 %v546
      %651 = vmatpush1.bf16.msra.mxu0 %v543
      %652 = vmatprep.subr.bf16.mxu0 0
      %653 = vmatpush2.bf16.msra.mxu0 0
      %654 = vmatprep.subr.bf16.mxu0 0
      %655 = vmatpush2.bf16.msra.mxu0 0
      %656 = vmatprep.subr.bf16.mxu0 0
      %657 = vmatpush2.bf16.msra.mxu0 0
      %658 = vmatprep.subr.bf16.mxu0 0
      %659 = vmatpush2.bf16.msra.mxu0 0
      %660 = vmatprep.subr.bf16.mxu0 0
      %661 = vmatpush2.bf16.msra.mxu0 0
      %662 = vmatprep.subr.bf16.mxu0 0
      %663 = vmatpush2.bf16.msra.mxu0 0
      %664 = vmatprep.subr.bf16.mxu0 0
      %665 = vmatpush2.bf16.msra.mxu0 0
      %666 = vmatprep.subr.bf16.mxu0 0
      %667 = vmatpush2.bf16.msra.mxu0 0
      %668 = vmatprep.mubr.bf16.mxu0 0
      %669 = vmatmul.mubr.bf16.gmra.mxu0 %v527
      %v670 = vpop.f32.mrf.mxu0
      %v671 = vadd.f32 0.0, %v670
      %v672 = vpop.f32.mrf.mxu0
      %v673 = vadd.f32 0.0, %v672
      %v674 = vpop.f32.mrf.mxu0
      %v675 = vpop.f32.mrf.mxu0
      %676 = vdwg.mxu0
      %677 = vmatprep.subr.bf16.mxu0 0
      %678 = vmatpush1.bf16.msra.mxu0 0
      %679 = vmatprep.subr.bf16.mxu0 0
      %680 = vmatpush1.bf16.msra.mxu0 0
      %681 = vmatprep.subr.bf16.mxu0 0
      %682 = vmatpush1.bf16.msra.mxu0 0
      %683 = vmatprep.subr.bf16.mxu0 0
      %684 = vmatpush1.bf16.msra.mxu0 0
      %685 = vmatprep.subr.bf16.mxu0 0
      %686 = vmatpush1.bf16.msra.mxu0 0
      %687 = vmatprep.subr.bf16.mxu0 0
      %688 = vmatpush1.bf16.msra.mxu0 0
      %689 = vmatprep.subr.bf16.mxu0 0
      %690 = vmatpush1.bf16.msra.mxu0 0
      %691 = vmatprep.subr.bf16.mxu0 %v552
      %692 = vmatpush1.bf16.msra.mxu0 %v549
      %693 = vmatprep.subr.bf16.mxu0 0
      %694 = vmatpush2.bf16.msra.mxu0 0
      %695 = vmatprep.subr.bf16.mxu0 0
      %696 = vmatpush2.bf16.msra.mxu0 0
      %697 = vmatprep.subr.bf16.mxu0 0
      %698 = vmatpush2.bf16.msra.mxu0 0
      %699 = vmatprep.subr.bf16.mxu0 0
      %700 = vmatpush2.bf16.msra.mxu0 0
      %701 = vmatprep.subr.bf16.mxu0 0
      %702 = vmatpush2.bf16.msra.mxu0 0
      %703 = vmatprep.subr.bf16.mxu0 0
      %704 = vmatpush2.bf16.msra.mxu0 0
      %705 = vmatprep.subr.bf16.mxu0 0
      %706 = vmatpush2.bf16.msra.mxu0 0
      %707 = vmatprep.subr.bf16.mxu0 0
      %708 = vmatpush2.bf16.msra.mxu0 0
      %709 = vmatprep.mubr.bf16.mxu0 0
      %710 = vmatmul.mubr.bf16.gmra.mxu0 %v527
      %v711 = vpop.f32.mrf.mxu0
      %v712 = vadd.f32 0.0, %v711
      %v713 = vpop.f32.mrf.mxu0
      %v714 = vadd.f32 0.0, %v713
      %v715 = vpop.f32.mrf.mxu0
      %v716 = vpop.f32.mrf.mxu0
      %717 = vdwg.mxu0
      %v719 = vsel %vm525, %v505, 0
      %v722 = vsel %vm529, %v506, 0
      %v725 = vsel %vm529, %v507, 0
      %v728 = vsel %vm529, %v508, 0
      %v731 = vsel %vm529, %v509, 0
      %v734 = vsel %vm529, %v510, 0
      %v737 = vsel %vm529, %v511, 0
      %v740 = vsel %vm529, %v512, 0
      %v743 = vsel %vm529, %v513, 0
      %745 = vmatprep.subr.bf16.mxu0 0
      %746 = vmatpush1.bf16.msra.mxu0 0
      %747 = vmatprep.subr.bf16.mxu0 0
      %748 = vmatpush1.bf16.msra.mxu0 0
      %749 = vmatprep.subr.bf16.mxu0 0
      %750 = vmatpush1.bf16.msra.mxu0 0
      %751 = vmatprep.subr.bf16.mxu0 0
      %752 = vmatpush1.bf16.msra.mxu0 0
      %753 = vmatprep.subr.bf16.mxu0 0
      %754 = vmatpush1.bf16.msra.mxu0 0
      %755 = vmatprep.subr.bf16.mxu0 0
      %756 = vmatpush1.bf16.msra.mxu0 0
      %757 = vmatprep.subr.bf16.mxu0 0
      %758 = vmatpush1.bf16.msra.mxu0 0
      %759 = vmatprep.subr.bf16.mxu0 %v725
      %760 = vmatpush1.bf16.msra.mxu0 %v722
      %761 = vmatprep.subr.bf16.mxu0 0
      %762 = vmatpush2.bf16.msra.mxu0 0
      %763 = vmatprep.subr.bf16.mxu0 0
      %764 = vmatpush2.bf16.msra.mxu0 0
      %765 = vmatprep.subr.bf16.mxu0 0
      %766 = vmatpush2.bf16.msra.mxu0 0
      %767 = vmatprep.subr.bf16.mxu0 0
      %768 = vmatpush2.bf16.msra.mxu0 0
      %769 = vmatprep.subr.bf16.mxu0 0
      %770 = vmatpush2.bf16.msra.mxu0 0
      %771 = vmatprep.subr.bf16.mxu0 0
      %772 = vmatpush2.bf16.msra.mxu0 0
      %773 = vmatprep.subr.bf16.mxu0 0
      %774 = vmatpush2.bf16.msra.mxu0 0
      %775 = vmatprep.subr.bf16.mxu0 0
      %776 = vmatpush2.bf16.msra.mxu0 0
      %777 = vmatprep.mubr.bf16.mxu0 0
      %778 = vmatmul.mubr.bf16.gmra.mxu0 %v719
      %v779 = vpop.f32.mrf.mxu0
      %v780 = vadd.f32 %v589, %v779
      %v781 = vpop.f32.mrf.mxu0
      %v782 = vadd.f32 %v591, %v781
      %v783 = vpop.f32.mrf.mxu0
      %v784 = vpop.f32.mrf.mxu0
      %785 = vdwg.mxu0
      %786 = vmatprep.subr.bf16.mxu0 0
      %787 = vmatpush1.bf16.msra.mxu0 0
      %788 = vmatprep.subr.bf16.mxu0 0
      %789 = vmatpush1.bf16.msra.mxu0 0
      %790 = vmatprep.subr.bf16.mxu0 0
      %791 = vmatpush1.bf16.msra.mxu0 0
      %792 = vmatprep.subr.bf16.mxu0 0
      %793 = vmatpush1.bf16.msra.mxu0 0
      %794 = vmatprep.subr.bf16.mxu0 0
      %795 = vmatpush1.bf16.msra.mxu0 0
      %796 = vmatprep.subr.bf16.mxu0 0
      %797 = vmatpush1.bf16.msra.mxu0 0
      %798 = vmatprep.subr.bf16.mxu0 0
      %799 = vmatpush1.bf16.msra.mxu0 0
      %800 = vmatprep.subr.bf16.mxu0 %v731
      %801 = vmatpush1.bf16.msra.mxu0 %v728
      %802 = vmatprep.subr.bf16.mxu0 0
      %803 = vmatpush2.bf16.msra.mxu0 0
      %804 = vmatprep.subr.bf16.mxu0 0
      %805 = vmatpush2.bf16.msra.mxu0 0
      %806 = vmatprep.subr.bf16.mxu0 0
      %807 = vmatpush2.bf16.msra.mxu0 0
      %808 = vmatprep.subr.bf16.mxu0 0
      %809 = vmatpush2.bf16.msra.mxu0 0
      %810 = vmatprep.subr.bf16.mxu0 0
      %811 = vmatpush2.bf16.msra.mxu0 0
      %812 = vmatprep.subr.bf16.mxu0 0
      %813 = vmatpush2.bf16.msra.mxu0 0
      %814 = vmatprep.subr.bf16.mxu0 0
      %815 = vmatpush2.bf16.msra.mxu0 0
      %816 = vmatprep.subr.bf16.mxu0 0
      %817 = vmatpush2.bf16.msra.mxu0 0
      %818 = vmatprep.mubr.bf16.mxu0 0
      %819 = vmatmul.mubr.bf16.gmra.mxu0 %v719
      %v820 = vpop.f32.mrf.mxu0
      %v821 = vadd.f32 %v630, %v820
      %v822 = vpop.f32.mrf.mxu0
      %v823 = vadd.f32 %v632, %v822
      %v824 = vpop.f32.mrf.mxu0
      %v825 = vpop.f32.mrf.mxu0
      %826 = vdwg.mxu0
      %827 = vmatprep.subr.bf16.mxu0 0
      %828 = vmatpush1.bf16.msra.mxu0 0
      %829 = vmatprep.subr.bf16.mxu0 0
      %830 = vmatpush1.bf16.msra.mxu0 0
      %831 = vmatprep.subr.bf16.mxu0 0
      %832 = vmatpush1.bf16.msra.mxu0 0
      %833 = vmatprep.subr.bf16.mxu0 0
      %834 = vmatpush1.bf16.msra.mxu0 0
      %835 = vmatprep.subr.bf16.mxu0 0
      %836 = vmatpush1.bf16.msra.mxu0 0
      %837 = vmatprep.subr.bf16.mxu0 0
      %838 = vmatpush1.bf16.msra.mxu0 0
      %839 = vmatprep.subr.bf16.mxu0 0
      %840 = vmatpush1.bf16.msra.mxu0 0
      %841 = vmatprep.subr.bf16.mxu0 %v737
      %842 = vmatpush1.bf16.msra.mxu0 %v734
      %843 = vmatprep.subr.bf16.mxu0 0
      %844 = vmatpush2.bf16.msra.mxu0 0
      %845 = vmatprep.subr.bf16.mxu0 0
      %846 = vmatpush2.bf16.msra.mxu0 0
      %847 = vmatprep.subr.bf16.mxu0 0
      %848 = vmatpush2.bf16.msra.mxu0 0
      %849 = vmatprep.subr.bf16.mxu0 0
      %850 = vmatpush2.bf16.msra.mxu0 0
      %851 = vmatprep.subr.bf16.mxu0 0
      %852 = vmatpush2.bf16.msra.mxu0 0
      %853 = vmatprep.subr.bf16.mxu0 0
      %854 = vmatpush2.bf16.msra.mxu0 0
      %855 = vmatprep.subr.bf16.mxu0 0
      %856 = vmatpush2.bf16.msra.mxu0 0
      %857 = vmatprep.subr.bf16.mxu0 0
      %858 = vmatpush2.bf16.msra.mxu0 0
      %859 = vmatprep.mubr.bf16.mxu0 0
      %860 = vmatmul.mubr.bf16.gmra.mxu0 %v719
      %v861 = vpop.f32.mrf.mxu0
      %v862 = vadd.f32 %v671, %v861
      %v863 = vpop.f32.mrf.mxu0
      %v864 = vadd.f32 %v673, %v863
      %v865 = vpop.f32.mrf.mxu0
      %v866 = vpop.f32.mrf.mxu0
      %867 = vdwg.mxu0
      %868 = vmatprep.subr.bf16.mxu0 0
      %869 = vmatpush1.bf16.msra.mxu0 0
      %870 = vmatprep.subr.bf16.mxu0 0
      %871 = vmatpush1.bf16.msra.mxu0 0
      %872 = vmatprep.subr.bf16.mxu0 0
      %873 = vmatpush1.bf16.msra.mxu0 0
      %874 = vmatprep.subr.bf16.mxu0 0
      %875 = vmatpush1.bf16.msra.mxu0 0
      %876 = vmatprep.subr.bf16.mxu0 0
      %877 = vmatpush1.bf16.msra.mxu0 0
      %878 = vmatprep.subr.bf16.mxu0 0
      %879 = vmatpush1.bf16.msra.mxu0 0
      %880 = vmatprep.subr.bf16.mxu0 0
      %881 = vmatpush1.bf16.msra.mxu0 0
      %882 = vmatprep.subr.bf16.mxu0 %v743
      %883 = vmatpush1.bf16.msra.mxu0 %v740
      %884 = vmatprep.subr.bf16.mxu0 0
      %885 = vmatpush2.bf16.msra.mxu0 0
      %886 = vmatprep.subr.bf16.mxu0 0
      %887 = vmatpush2.bf16.msra.mxu0 0
      %888 = vmatprep.subr.bf16.mxu0 0
      %889 = vmatpush2.bf16.msra.mxu0 0
      %890 = vmatprep.subr.bf16.mxu0 0
      %891 = vmatpush2.bf16.msra.mxu0 0
      %892 = vmatprep.subr.bf16.mxu0 0
      %893 = vmatpush2.bf16.msra.mxu0 0
      %894 = vmatprep.subr.bf16.mxu0 0
      %895 = vmatpush2.bf16.msra.mxu0 0
      %896 = vmatprep.subr.bf16.mxu0 0
      %897 = vmatpush2.bf16.msra.mxu0 0
      %898 = vmatprep.subr.bf16.mxu0 0
      %899 = vmatpush2.bf16.msra.mxu0 0
      %900 = vmatprep.mubr.bf16.mxu0 0
      %901 = vmatmul.mubr.bf16.gmra.mxu0 %v719
      %v902 = vpop.f32.mrf.mxu0
      %v903 = vadd.f32 %v712, %v902
      %v904 = vpop.f32.mrf.mxu0
      %v905 = vadd.f32 %v714, %v904
      %v906 = vpop.f32.mrf.mxu0
      %v907 = vpop.f32.mrf.mxu0
      %908 = vdwg.mxu0
      %s909 = scalar_lea.vmem %s3, 16
      %v910 = vld [vmem:[%s909] sm:$0xff]
      %v911 = vpack.c.bf16 %v910, %v910
      %v912 = vpack.c.bf16 %v455, %v455
      %v913 = vpack.c.bf16 %v456, %v456
      %v914 = vpack.c.bf16 %v457, %v457
      %v915 = vpack.c.bf16 %v458, %v458
      %v916 = vpack.c.bf16 %v459, %v459
      %v917 = vpack.c.bf16 %v460, %v460
      %v918 = vpack.c.bf16 %v461, %v461
      %v919 = vpack.c.bf16 %v462, %v462
      %v921 = vsel %vm525, %v911, 0
      %v924 = vsel %vm529, %v912, 0
      %v927 = vsel %vm529, %v913, 0
      %v930 = vsel %vm529, %v914, 0
      %v933 = vsel %vm529, %v915, 0
      %v936 = vsel %vm529, %v916, 0
      %v939 = vsel %vm529, %v917, 0
      %v942 = vsel %vm529, %v918, 0
      %v945 = vsel %vm529, %v919, 0
      %947 = vmatprep.subr.bf16.mxu0 0
      %948 = vmatpush1.bf16.msra.mxu0 0
      %949 = vmatprep.subr.bf16.mxu0 0
      %950 = vmatpush1.bf16.msra.mxu0 0
      %951 = vmatprep.subr.bf16.mxu0 0
      %952 = vmatpush1.bf16.msra.mxu0 0
      %953 = vmatprep.subr.bf16.mxu0 0
      %954 = vmatpush1.bf16.msra.mxu0 0
      %955 = vmatprep.subr.bf16.mxu0 0
      %956 = vmatpush1.bf16.msra.mxu0 0
      %957 = vmatprep.subr.bf16.mxu0 0
      %958 = vmatpush1.bf16.msra.mxu0 0
      %959 = vmatprep.subr.bf16.mxu0 0
      %960 = vmatpush1.bf16.msra.mxu0 0
      %961 = vmatprep.subr.bf16.mxu0 %v927
      %962 = vmatpush1.bf16.msra.mxu0 %v924
      %963 = vmatprep.subr.bf16.mxu0 0
      %964 = vmatpush2.bf16.msra.mxu0 0
      %965 = vmatprep.subr.bf16.mxu0 0
      %966 = vmatpush2.bf16.msra.mxu0 0
      %967 = vmatprep.subr.bf16.mxu0 0
      %968 = vmatpush2.bf16.msra.mxu0 0
      %969 = vmatprep.subr.bf16.mxu0 0
      %970 = vmatpush2.bf16.msra.mxu0 0
      %971 = vmatprep.subr.bf16.mxu0 0
      %972 = vmatpush2.bf16.msra.mxu0 0
      %973 = vmatprep.subr.bf16.mxu0 0
      %974 = vmatpush2.bf16.msra.mxu0 0
      %975 = vmatprep.subr.bf16.mxu0 0
      %976 = vmatpush2.bf16.msra.mxu0 0
      %977 = vmatprep.subr.bf16.mxu0 0
      %978 = vmatpush2.bf16.msra.mxu0 0
      %979 = vmatprep.mubr.bf16.mxu0 0
      %980 = vmatmul.mubr.bf16.gmra.mxu0 %v921
      %v981 = vpop.f32.mrf.mxu0
      %v982 = vadd.f32 0.0, %v981
      %v983 = vpop.f32.mrf.mxu0
      %v984 = vadd.f32 0.0, %v983
      %v985 = vpop.f32.mrf.mxu0
      %v986 = vpop.f32.mrf.mxu0
      %987 = vdwg.mxu0
      %988 = vmatprep.subr.bf16.mxu0 0
      %989 = vmatpush1.bf16.msra.mxu0 0
      %990 = vmatprep.subr.bf16.mxu0 0
      %991 = vmatpush1.bf16.msra.mxu0 0
      %992 = vmatprep.subr.bf16.mxu0 0
      %993 = vmatpush1.bf16.msra.mxu0 0
      %994 = vmatprep.subr.bf16.mxu0 0
      %995 = vmatpush1.bf16.msra.mxu0 0
      %996 = vmatprep.subr.bf16.mxu0 0
      %997 = vmatpush1.bf16.msra.mxu0 0
      %998 = vmatprep.subr.bf16.mxu0 0
      %999 = vmatpush1.bf16.msra.mxu0 0
      %1000 = vmatprep.subr.bf16.mxu0 0
      %1001 = vmatpush1.bf16.msra.mxu0 0
      %1002 = vmatprep.subr.bf16.mxu0 %v933
      %1003 = vmatpush1.bf16.msra.mxu0 %v930
      %1004 = vmatprep.subr.bf16.mxu0 0
      %1005 = vmatpush2.bf16.msra.mxu0 0
      %1006 = vmatprep.subr.bf16.mxu0 0
      %1007 = vmatpush2.bf16.msra.mxu0 0
      %1008 = vmatprep.subr.bf16.mxu0 0
      %1009 = vmatpush2.bf16.msra.mxu0 0
      %1010 = vmatprep.subr.bf16.mxu0 0
      %1011 = vmatpush2.bf16.msra.mxu0 0
      %1012 = vmatprep.subr.bf16.mxu0 0
      %1013 = vmatpush2.bf16.msra.mxu0 0
      %1014 = vmatprep.subr.bf16.mxu0 0
      %1015 = vmatpush2.bf16.msra.mxu0 0
      %1016 = vmatprep.subr.bf16.mxu0 0
      %1017 = vmatpush2.bf16.msra.mxu0 0
      %1018 = vmatprep.subr.bf16.mxu0 0
      %1019 = vmatpush2.bf16.msra.mxu0 0
      %1020 = vmatprep.mubr.bf16.mxu0 0
      %1021 = vmatmul.mubr.bf16.gmra.mxu0 %v921
      %v1022 = vpop.f32.mrf.mxu0
      %v1023 = vadd.f32 0.0, %v1022
      %v1024 = vpop.f32.mrf.mxu0
      %v1025 = vadd.f32 0.0, %v1024
      %v1026 = vpop.f32.mrf.mxu0
      %v1027 = vpop.f32.mrf.mxu0
      %1028 = vdwg.mxu0
      %1029 = vmatprep.subr.bf16.mxu0 0
      %1030 = vmatpush1.bf16.msra.mxu0 0
      %1031 = vmatprep.subr.bf16.mxu0 0
      %1032 = vmatpush1.bf16.msra.mxu0 0
      %1033 = vmatprep.subr.bf16.mxu0 0
      %1034 = vmatpush1.bf16.msra.mxu0 0
      %1035 = vmatprep.subr.bf16.mxu0 0
      %1036 = vmatpush1.bf16.msra.mxu0 0
      %1037 = vmatprep.subr.bf16.mxu0 0
      %1038 = vmatpush1.bf16.msra.mxu0 0
      %1039 = vmatprep.subr.bf16.mxu0 0
      %1040 = vmatpush1.bf16.msra.mxu0 0
      %1041 = vmatprep.subr.bf16.mxu0 0
      %1042 = vmatpush1.bf16.msra.mxu0 0
      %1043 = vmatprep.subr.bf16.mxu0 %v939
      %1044 = vmatpush1.bf16.msra.mxu0 %v936
      %1045 = vmatprep.subr.bf16.mxu0 0
      %1046 = vmatpush2.bf16.msra.mxu0 0
      %1047 = vmatprep.subr.bf16.mxu0 0
      %1048 = vmatpush2.bf16.msra.mxu0 0
      %1049 = vmatprep.subr.bf16.mxu0 0
      %1050 = vmatpush2.bf16.msra.mxu0 0
      %1051 = vmatprep.subr.bf16.mxu0 0
      %1052 = vmatpush2.bf16.msra.mxu0 0
      %1053 = vmatprep.subr.bf16.mxu0 0
      %1054 = vmatpush2.bf16.msra.mxu0 0
      %1055 = vmatprep.subr.bf16.mxu0 0
      %1056 = vmatpush2.bf16.msra.mxu0 0
      %1057 = vmatprep.subr.bf16.mxu0 0
      %1058 = vmatpush2.bf16.msra.mxu0 0
      %1059 = vmatprep.subr.bf16.mxu0 0
      %1060 = vmatpush2.bf16.msra.mxu0 0
      %1061 = vmatprep.mubr.bf16.mxu0 0
      %1062 = vmatmul.mubr.bf16.gmra.mxu0 %v921
      %v1063 = vpop.f32.mrf.mxu0
      %v1064 = vadd.f32 0.0, %v1063
      %v1065 = vpop.f32.mrf.mxu0
      %v1066 = vadd.f32 0.0, %v1065
      %v1067 = vpop.f32.mrf.mxu0
      %v1068 = vpop.f32.mrf.mxu0
      %1069 = vdwg.mxu0
      %1070 = vmatprep.subr.bf16.mxu0 0
      %1071 = vmatpush1.bf16.msra.mxu0 0
      %1072 = vmatprep.subr.bf16.mxu0 0
      %1073 = vmatpush1.bf16.msra.mxu0 0
      %1074 = vmatprep.subr.bf16.mxu0 0
      %1075 = vmatpush1.bf16.msra.mxu0 0
      %1076 = vmatprep.subr.bf16.mxu0 0
      %1077 = vmatpush1.bf16.msra.mxu0 0
      %1078 = vmatprep.subr.bf16.mxu0 0
      %1079 = vmatpush1.bf16.msra.mxu0 0
      %1080 = vmatprep.subr.bf16.mxu0 0
      %1081 = vmatpush1.bf16.msra.mxu0 0
      %1082 = vmatprep.subr.bf16.mxu0 0
      %1083 = vmatpush1.bf16.msra.mxu0 0
      %1084 = vmatprep.subr.bf16.mxu0 %v945
      %1085 = vmatpush1.bf16.msra.mxu0 %v942
      %1086 = vmatprep.subr.bf16.mxu0 0
      %1087 = vmatpush2.bf16.msra.mxu0 0
      %1088 = vmatprep.subr.bf16.mxu0 0
      %1089 = vmatpush2.bf16.msra.mxu0 0
      %1090 = vmatprep.subr.bf16.mxu0 0
      %1091 = vmatpush2.bf16.msra.mxu0 0
      %1092 = vmatprep.subr.bf16.mxu0 0
      %1093 = vmatpush2.bf16.msra.mxu0 0
      %1094 = vmatprep.subr.bf16.mxu0 0
      %1095 = vmatpush2.bf16.msra.mxu0 0
      %1096 = vmatprep.subr.bf16.mxu0 0
      %1097 = vmatpush2.bf16.msra.mxu0 0
      %1098 = vmatprep.subr.bf16.mxu0 0
      %1099 = vmatpush2.bf16.msra.mxu0 0
      %1100 = vmatprep.subr.bf16.mxu0 0
      %1101 = vmatpush2.bf16.msra.mxu0 0
      %1102 = vmatprep.mubr.bf16.mxu0 0
      %1103 = vmatmul.mubr.bf16.gmra.mxu0 %v921
      %v1104 = vpop.f32.mrf.mxu0
      %v1105 = vadd.f32 0.0, %v1104
      %v1106 = vpop.f32.mrf.mxu0
      %v1107 = vadd.f32 0.0, %v1106
      %v1108 = vpop.f32.mrf.mxu0
      %v1109 = vpop.f32.mrf.mxu0
      %1110 = vdwg.mxu0
      %v1111 = vadd.f32 %v780, %v982
      %v1112 = vadd.f32 %v782, %v984
      %v1113 = vadd.f32 %v821, %v1023
      %v1114 = vadd.f32 %v823, %v1025
      %v1115 = vadd.f32 %v862, %v1064
      %v1116 = vadd.f32 %v864, %v1066
      %v1117 = vadd.f32 %v903, %v1105
      %v1118 = vadd.f32 %v905, %v1107
      %s1119 = scalar_lea.vmem %s3, 24
      %v1120 = vld [vmem:[%s1119] sm:$0xff]
      %v1121 = vpack.c.bf16 %v1120, %v1120
      %v1122 = vpack.c.bf16 %v496, %v496
      %v1123 = vpack.c.bf16 %v497, %v497
      %v1124 = vpack.c.bf16 %v498, %v498
      %v1125 = vpack.c.bf16 %v499, %v499
      %v1126 = vpack.c.bf16 %v500, %v500
      %v1127 = vpack.c.bf16 %v501, %v501
      %v1128 = vpack.c.bf16 %v502, %v502
      %v1129 = vpack.c.bf16 %v503, %v503
      %v1131 = vsel %vm525, %v1121, 0
      %v1134 = vsel %vm529, %v1122, 0
      %v1137 = vsel %vm529, %v1123, 0
      %v1140 = vsel %vm529, %v1124, 0
      %v1143 = vsel %vm529, %v1125, 0
      %v1146 = vsel %vm529, %v1126, 0
      %v1149 = vsel %vm529, %v1127, 0
      %v1152 = vsel %vm529, %v1128, 0
      %v1155 = vsel %vm529, %v1129, 0
      %1157 = vmatprep.subr.bf16.mxu0 0
      %1158 = vmatpush1.bf16.msra.mxu0 0
      %1159 = vmatprep.subr.bf16.mxu0 0
      %1160 = vmatpush1.bf16.msra.mxu0 0
      %1161 = vmatprep.subr.bf16.mxu0 0
      %1162 = vmatpush1.bf16.msra.mxu0 0
      %1163 = vmatprep.subr.bf16.mxu0 0
      %1164 = vmatpush1.bf16.msra.mxu0 0
      %1165 = vmatprep.subr.bf16.mxu0 0
      %1166 = vmatpush1.bf16.msra.mxu0 0
      %1167 = vmatprep.subr.bf16.mxu0 0
      %1168 = vmatpush1.bf16.msra.mxu0 0
      %1169 = vmatprep.subr.bf16.mxu0 0
      %1170 = vmatpush1.bf16.msra.mxu0 0
      %1171 = vmatprep.subr.bf16.mxu0 %v1137
      %1172 = vmatpush1.bf16.msra.mxu0 %v1134
      %1173 = vmatprep.subr.bf16.mxu0 0
      %1174 = vmatpush2.bf16.msra.mxu0 0
      %1175 = vmatprep.subr.bf16.mxu0 0
      %1176 = vmatpush2.bf16.msra.mxu0 0
      %1177 = vmatprep.subr.bf16.mxu0 0
      %1178 = vmatpush2.bf16.msra.mxu0 0
      %1179 = vmatprep.subr.bf16.mxu0 0
      %1180 = vmatpush2.bf16.msra.mxu0 0
      %1181 = vmatprep.subr.bf16.mxu0 0
      %1182 = vmatpush2.bf16.msra.mxu0 0
      %1183 = vmatprep.subr.bf16.mxu0 0
      %1184 = vmatpush2.bf16.msra.mxu0 0
      %1185 = vmatprep.subr.bf16.mxu0 0
      %1186 = vmatpush2.bf16.msra.mxu0 0
      %1187 = vmatprep.subr.bf16.mxu0 0
      %1188 = vmatpush2.bf16.msra.mxu0 0
      %1189 = vmatprep.mubr.bf16.mxu0 0
      %1190 = vmatmul.mubr.bf16.gmra.mxu0 %v1131
      %v1191 = vpop.f32.mrf.mxu0
      %v1192 = vadd.f32 0.0, %v1191
      %v1193 = vpop.f32.mrf.mxu0
      %v1194 = vadd.f32 0.0, %v1193
      %v1195 = vpop.f32.mrf.mxu0
      %v1196 = vpop.f32.mrf.mxu0
      %1197 = vdwg.mxu0
      %1198 = vmatprep.subr.bf16.mxu0 0
      %1199 = vmatpush1.bf16.msra.mxu0 0
      %1200 = vmatprep.subr.bf16.mxu0 0
      %1201 = vmatpush1.bf16.msra.mxu0 0
      %1202 = vmatprep.subr.bf16.mxu0 0
      %1203 = vmatpush1.bf16.msra.mxu0 0
      %1204 = vmatprep.subr.bf16.mxu0 0
      %1205 = vmatpush1.bf16.msra.mxu0 0
      %1206 = vmatprep.subr.bf16.mxu0 0
      %1207 = vmatpush1.bf16.msra.mxu0 0
      %1208 = vmatprep.subr.bf16.mxu0 0
      %1209 = vmatpush1.bf16.msra.mxu0 0
      %1210 = vmatprep.subr.bf16.mxu0 0
      %1211 = vmatpush1.bf16.msra.mxu0 0
      %1212 = vmatprep.subr.bf16.mxu0 %v1143
      %1213 = vmatpush1.bf16.msra.mxu0 %v1140
      %1214 = vmatprep.subr.bf16.mxu0 0
      %1215 = vmatpush2.bf16.msra.mxu0 0
      %1216 = vmatprep.subr.bf16.mxu0 0
      %1217 = vmatpush2.bf16.msra.mxu0 0
      %1218 = vmatprep.subr.bf16.mxu0 0
      %1219 = vmatpush2.bf16.msra.mxu0 0
      %1220 = vmatprep.subr.bf16.mxu0 0
      %1221 = vmatpush2.bf16.msra.mxu0 0
      %1222 = vmatprep.subr.bf16.mxu0 0
      %1223 = vmatpush2.bf16.msra.mxu0 0
      %1224 = vmatprep.subr.bf16.mxu0 0
      %1225 = vmatpush2.bf16.msra.mxu0 0
      %1226 = vmatprep.subr.bf16.mxu0 0
      %1227 = vmatpush2.bf16.msra.mxu0 0
      %1228 = vmatprep.subr.bf16.mxu0 0
      %1229 = vmatpush2.bf16.msra.mxu0 0
      %1230 = vmatprep.mubr.bf16.mxu0 0
      %1231 = vmatmul.mubr.bf16.gmra.mxu0 %v1131
      %v1232 = vpop.f32.mrf.mxu0
      %v1233 = vadd.f32 0.0, %v1232
      %v1234 = vpop.f32.mrf.mxu0
      %v1235 = vadd.f32 0.0, %v1234
      %v1236 = vpop.f32.mrf.mxu0
      %v1237 = vpop.f32.mrf.mxu0
      %1238 = vdwg.mxu0
      %1239 = vmatprep.subr.bf16.mxu0 0
      %1240 = vmatpush1.bf16.msra.mxu0 0
      %1241 = vmatprep.subr.bf16.mxu0 0
      %1242 = vmatpush1.bf16.msra.mxu0 0
      %1243 = vmatprep.subr.bf16.mxu0 0
      %1244 = vmatpush1.bf16.msra.mxu0 0
      %1245 = vmatprep.subr.bf16.mxu0 0
      %1246 = vmatpush1.bf16.msra.mxu0 0
      %1247 = vmatprep.subr.bf16.mxu0 0
      %1248 = vmatpush1.bf16.msra.mxu0 0
      %1249 = vmatprep.subr.bf16.mxu0 0
      %1250 = vmatpush1.bf16.msra.mxu0 0
      %1251 = vmatprep.subr.bf16.mxu0 0
      %1252 = vmatpush1.bf16.msra.mxu0 0
      %1253 = vmatprep.subr.bf16.mxu0 %v1149
      %1254 = vmatpush1.bf16.msra.mxu0 %v1146
      %1255 = vmatprep.subr.bf16.mxu0 0
      %1256 = vmatpush2.bf16.msra.mxu0 0
      %1257 = vmatprep.subr.bf16.mxu0 0
      %1258 = vmatpush2.bf16.msra.mxu0 0
      %1259 = vmatprep.subr.bf16.mxu0 0
      %1260 = vmatpush2.bf16.msra.mxu0 0
      %1261 = vmatprep.subr.bf16.mxu0 0
      %1262 = vmatpush2.bf16.msra.mxu0 0
      %1263 = vmatprep.subr.bf16.mxu0 0
      %1264 = vmatpush2.bf16.msra.mxu0 0
      %1265 = vmatprep.subr.bf16.mxu0 0
      %1266 = vmatpush2.bf16.msra.mxu0 0
      %1267 = vmatprep.subr.bf16.mxu0 0
      %1268 = vmatpush2.bf16.msra.mxu0 0
      %1269 = vmatprep.subr.bf16.mxu0 0
      %1270 = vmatpush2.bf16.msra.mxu0 0
      %1271 = vmatprep.mubr.bf16.mxu0 0
      %1272 = vmatmul.mubr.bf16.gmra.mxu0 %v1131
      %v1273 = vpop.f32.mrf.mxu0
      %v1274 = vadd.f32 0.0, %v1273
      %v1275 = vpop.f32.mrf.mxu0
      %v1276 = vadd.f32 0.0, %v1275
      %v1277 = vpop.f32.mrf.mxu0
      %v1278 = vpop.f32.mrf.mxu0
      %1279 = vdwg.mxu0
      %1280 = vmatprep.subr.bf16.mxu0 0
      %1281 = vmatpush1.bf16.msra.mxu0 0
      %1282 = vmatprep.subr.bf16.mxu0 0
      %1283 = vmatpush1.bf16.msra.mxu0 0
      %1284 = vmatprep.subr.bf16.mxu0 0
      %1285 = vmatpush1.bf16.msra.mxu0 0
      %1286 = vmatprep.subr.bf16.mxu0 0
      %1287 = vmatpush1.bf16.msra.mxu0 0
      %1288 = vmatprep.subr.bf16.mxu0 0
      %1289 = vmatpush1.bf16.msra.mxu0 0
      %1290 = vmatprep.subr.bf16.mxu0 0
      %1291 = vmatpush1.bf16.msra.mxu0 0
      %1292 = vmatprep.subr.bf16.mxu0 0
      %1293 = vmatpush1.bf16.msra.mxu0 0
      %1294 = vmatprep.subr.bf16.mxu0 %v1155
      %1295 = vmatpush1.bf16.msra.mxu0 %v1152
      %1296 = vmatprep.subr.bf16.mxu0 0
      %1297 = vmatpush2.bf16.msra.mxu0 0
      %1298 = vmatprep.subr.bf16.mxu0 0
      %1299 = vmatpush2.bf16.msra.mxu0 0
      %1300 = vmatprep.subr.bf16.mxu0 0
      %1301 = vmatpush2.bf16.msra.mxu0 0
      %1302 = vmatprep.subr.bf16.mxu0 0
      %1303 = vmatpush2.bf16.msra.mxu0 0
      %1304 = vmatprep.subr.bf16.mxu0 0
      %1305 = vmatpush2.bf16.msra.mxu0 0
      %1306 = vmatprep.subr.bf16.mxu0 0
      %1307 = vmatpush2.bf16.msra.mxu0 0
      %1308 = vmatprep.subr.bf16.mxu0 0
      %1309 = vmatpush2.bf16.msra.mxu0 0
      %1310 = vmatprep.subr.bf16.mxu0 0
      %1311 = vmatpush2.bf16.msra.mxu0 0
      %1312 = vmatprep.mubr.bf16.mxu0 0
      %1313 = vmatmul.mubr.bf16.gmra.mxu0 %v1131
      %v1314 = vpop.f32.mrf.mxu0
      %v1315 = vadd.f32 0.0, %v1314
      %v1316 = vpop.f32.mrf.mxu0
      %v1317 = vadd.f32 0.0, %v1316
      %v1318 = vpop.f32.mrf.mxu0
      %v1319 = vpop.f32.mrf.mxu0
      %1320 = vdwg.mxu0
      %v1321 = vadd.f32 %v1111, %v1192
      %v1322 = vadd.f32 %v1112, %v1194
      %v1323 = vadd.f32 %v1113, %v1233
      %v1324 = vadd.f32 %v1114, %v1235
      %v1325 = vadd.f32 %v1115, %v1274
      %v1326 = vadd.f32 %v1116, %v1276
      %v1327 = vadd.f32 %v1117, %v1315
      %v1328 = vadd.f32 %v1118, %v1317
      %v1329 = vld [vmem:[%s4] sm:$0xff]
      %1331 = vset.pattern.permute.xlu0 0
      %1332 = vperm.xlu0 %1331, %v1329
      %v1333 = vpop.permute.xlu0 %1332
      %v1335 = vadd.f32 %v1321, %v1333
      %v1336 = vadd.f32 %v1322, %v1333
      %v1337 = vadd.f32 %v1323, %v1333
      %v1338 = vadd.f32 %v1324, %v1333
      %v1339 = vadd.f32 %v1325, %v1333
      %v1340 = vadd.f32 %v1326, %v1333
      %v1341 = vadd.f32 %v1327, %v1333
      %v1342 = vadd.f32 %v1328, %v1333
      %v1343 = vadd.f32 %v1335, %v1336
      %v1344 = vadd.f32 %v1343, %v1337
      %v1345 = vadd.f32 %v1344, %v1338
      %v1346 = vadd.f32 %v1345, %v1339
      %v1347 = vadd.f32 %v1346, %v1340
      %v1348 = vadd.f32 %v1347, %v1341
      %v1349 = vadd.f32 %v1348, %v1342
      %1350 = vadd.xlane.f32.xlu0 %v1349
      %v1351 = vpop.xlane.xlu0 %1350
      %v1352 = vmul.f32 %v1335, %v1335
      %v1353 = vmul.f32 %v1336, %v1336
      %v1354 = vmul.f32 %v1337, %v1337
      %v1355 = vmul.f32 %v1338, %v1338
      %v1356 = vmul.f32 %v1339, %v1339
      %v1357 = vmul.f32 %v1340, %v1340
      %v1358 = vmul.f32 %v1341, %v1341
      %v1359 = vmul.f32 %v1342, %v1342
      %v1360 = vadd.f32 %v1352, %v1353
      %v1361 = vadd.f32 %v1360, %v1354
      %v1362 = vadd.f32 %v1361, %v1355
      %v1363 = vadd.f32 %v1362, %v1356
      %v1364 = vadd.f32 %v1363, %v1357
      %v1365 = vadd.f32 %v1364, %v1358
      %v1366 = vadd.f32 %v1365, %v1359
      %1367 = vadd.xlane.f32.xlu0 %v1366
      %v1368 = vpop.xlane.xlu0 %1367
      %vm1369 = vcmask 7168
      %v1370 = vsel %vm1369, %v1351, %v1368
      %1371 = vxpose.xlu0.b32.start [1/16] %v1370, 128
      %1372 = vxpose.xlu0.b32.cont [2/16] 0.0, 128
      %1373 = vxpose.xlu0.b32.cont [3/16] 0.0, 128
      %1374 = vxpose.xlu0.b32.cont [4/16] 0.0, 128
      %1375 = vxpose.xlu0.b32.cont [5/16] 0.0, 128
      %1376 = vxpose.xlu0.b32.cont [6/16] 0.0, 128
      %1377 = vxpose.xlu0.b32.cont [7/16] 0.0, 128
      %1378 = vxpose.xlu0.b32.cont [8/16] 0.0, 128
      %1379 = vxpose.xlu0.b32.cont [9/16] 0.0, 128
      %1380 = vxpose.xlu0.b32.cont [10/16] 0.0, 128
      %1381 = vxpose.xlu0.b32.cont [11/16] 0.0, 128
      %1382 = vxpose.xlu0.b32.cont [12/16] 0.0, 128
      %1383 = vxpose.xlu0.b32.cont [13/16] 0.0, 128
      %1384 = vxpose.xlu0.b32.cont [14/16] 0.0, 128
      %1385 = vxpose.xlu0.b32.cont [15/16] 0.0, 128
      %1386 = vxpose.xlu0.b32.end [16/16] 0.0, 128
      %v1387 = vpop.trf.xlu0
      %v1388 = vpop.trf.xlu0
      %v1389 = vpop.trf.xlu0
      %v1390 = vpop.trf.xlu0
      %v1391 = vpop.trf.xlu0
      %v1392 = vpop.trf.xlu0
      %v1393 = vpop.trf.xlu0
      %v1394 = vpop.trf.xlu0
      %v1395 = vpop.trf.xlu0
      %v1396 = vpop.trf.xlu0
      %v1397 = vpop.trf.xlu0
      %v1398 = vpop.trf.xlu0
      %v1399 = vpop.trf.xlu0
      %v1400 = vpop.trf.xlu0
      %v1401 = vpop.trf.xlu0
      %v1402 = vpop.trf.xlu0
      %vm1403 = vcmask 58368
      %1404 = vst.msk [vmem:[%s222] sm:$0x3] %vm1403, %v1387
      %p1405 = scmp.lt.s32.totalorder %s16, 1
      %s1406 = scalar_select %p1405, %s16, 1
      %s1407 = smul.addr %s1406, 2
      %s1408 = scalar_lea.vmem %s5, %s1407
      // Predicated region
      $region41: #{upconv.4} parent=39 // pred_check
        %p1409 = pneg %p144
      $region42: #{upconv.4} parent=39 // pred_check_branch
        %1411 = sbr.rel (%p1409) target = $region44
      $region43: #{upconv.4} parent=39 // pred_region
        _
      $region44: #{upconv.4} parent=39 // pred_fallthru
        _
    $region40: #{upconv.4} parent=5 // pred_fallthru
      _
    %p1412 = scmp.le.s32.totalorder 2, %s11
    // Predicated region
    $region45: #{upconv.4} parent=5 // pred_check
      %p1413 = pneg %p1412
    $region46: #{upconv.4} parent=5 // pred_check_branch
      %1415 = sbr.rel (%p1413) target = $region48
    $region47: #{upconv.4} parent=5 // pred_region
      %s1416 = ssub.s32 %s11, 2
      // Predicated region
      $region49: #{upconv.4} parent=47 // pred_check
        %p1417 = pneg %p150
      $region50: #{upconv.4} parent=47 // pred_check_branch
        %1419 = sbr.rel (%p1417) target = $region52
      $region51: #{upconv.4} parent=47 // pred_region
        %p1420 = scmp.lt.s32.totalorder %s17, 1
        %s1421 = scalar_select %p1420, %s17, 1
        %s1422 = smul.addr %s1421, 2
        %s1423 = scalar_lea.vmem %s5, %s1422
      $region52: #{upconv.4} parent=47 // pred_fallthru
        _
    $region48: #{upconv.4} parent=5 // pred_fallthru
      _
  $region6: #{upconv.4} parent=0 // loop_footer
    %s15 = sadd.s32 1, %s11
  $region7: #{upconv.4} parent=0 // loop_footer_branch
    %10 = sbr.rel target = $region3
  $region8: #{upconv.4} parent=0 // loop_exit
    _

// kernel: upconv.5
$region0: #{upconv.5}
  #allocation0 [shape = 'u32[]', space=smem, size = 0x4, offset = 0x4, fixed_abs, tag = 'smem constant byte address 0x4 - core index']
  #allocation1 [shape = 'u32[144,128]{1,0:T(1,128)}', space=vmem, size = 0x12000, scoped, tag = 'internal scratch']
  %s0 = inlined_call_operand.vmem [shape: bf16[2,4,1024], index: 0, kind: input, shape index: {}]
  %s1 = inlined_call_operand.vmem [shape: f32[4,1], index: 1, kind: input, shape index: {}]
  %s2 = inlined_call_operand.vmem [shape: f32[4,1], index: 2, kind: input, shape index: {}]
  %s3 = inlined_call_operand.vmem [shape: f32[4,8,4], index: 3, kind: input, shape index: {}]
  %s4 = inlined_call_operand.vmem [shape: f32[8,1], index: 4, kind: input, shape index: {}]
  %s5 = inlined_call_operand.vmem [shape: f32[8,1], index: 5, kind: input, shape index: {}]
  %s6 = inlined_call_operand.vmem [shape: f32[8,1], index: 6, kind: input, shape index: {}]
  %s7 = inlined_call_operand.vmem [shape: f32[2,8,1024], index: 7, kind: output, shape index: {}]
  %s8 = sld [smem:[#allocation0]]
  $region61: #{upconv.5} parent=0
    _
  %s10 = ssub.s32 1, %s8
  %s11 = scalar_select 0, %s10, %s8
  loop: start=0, step=1, limit=4
  $region2: #{upconv.5} parent=0 // loop_pre_header
    _
  $region3: #{upconv.5} parent=0 // loop_header
    %s13 = sphi 0, %s17
    %p14 = scmp.ge.s32.totalorder %s13, 4
    %s23 = sphi 0, %s25
    %s26 = sphi 0, %s23
    %s27 = sphi 0, %s26
    %s43 = sphi 0, %s27
    %s47 = sphi 0, %s47
    %s49 = sphi 0, %s47
    %s50 = sphi 0, %s49
    %s64 = sphi 0, %s50
    %s68 = sphi 0, %s68
    %s70 = sphi 0, %s68
    %s71 = sphi 0, %s70
    %s85 = sphi 0, %s71
    %s89 = sphi 0, %s89
    %s91 = sphi 0, %s89
    %s92 = sphi 0, %s91
    %s106 = sphi 0, %s92
    %s110 = sphi 0, %s110
    %s112 = sphi 0, %s110
    %s113 = sphi 0, %s112
    %s127 = sphi 0, %s113
    %s131 = sphi 0, %s131
    %s133 = sphi 0, %s131
    %s134 = sphi 0, %s133
    %s148 = sphi 0, %s134
    %s152 = sphi 0, %s152
    %s154 = sphi 0, %s152
    %s155 = sphi 0, %s154
    %s169 = sphi 0, %s155
    %s175 = sphi 0, %s177
    %s178 = sphi 0, %s175
    %s179 = sphi 0, %s178
    %s195 = sphi 0, %s179
  $region4: #{upconv.5} parent=0 // loop_header_branch
    %16 = sbr.rel (%p14) target = $region8
  $region5: #{upconv.5} parent=0 // loop_body
    %s18 = ssub.s32 %s13, 1
    %s19 = ssub.s32 %s13, 2
    %s20 = sadd.s32 %s13, 1
    %s21 = ssub.s32 %s13, %s20
    %p22 = scmp.eq.s32.totalorder %s21, 0
    %s24 = sadd.s32 %s23, 1
    %s25 = scalar_select %p22, %s23, %s24
    %p28 = pneg %p22
    %p29 = scmp.eq.s32.totalorder %s13, 1
    %p30 = por %p28, %p29
    %p31 = scmp.ne.s32.totalorder %s23, %s26
    %p32 = scmp.eq.s32.totalorder %s13, 0
    %p33 = por %p31, %p32
    %p34 = scmp.ne.s32.totalorder %s23, %s26
    %p35 = scmp.eq.s32.totalorder %s18, 1
    %p36 = por %p34, %p35
    %p37 = scmp.ne.s32.totalorder %s26, %s27
    %p38 = scmp.eq.s32.totalorder %s18, 0
    %p39 = por %p37, %p38
    %p40 = scmp.ne.s32.totalorder %s26, %s27
    %p41 = scmp.eq.s32.totalorder %s19, 1
    %p42 = por %p40, %p41
    %p44 = scmp.ne.s32.totalorder %s27, %s43
    %p45 = scmp.eq.s32.totalorder %s19, 0
    %p46 = por %p44, %p45
    %s48 = sadd.s32 %s47, 1
    %p51 = scmp.eq.s32.totalorder %s13, 1
    %p52 = scmp.ne.s32.totalorder %s47, %s49
    %p53 = scmp.eq.s32.totalorder %s13, 0
    %p54 = por %p52, %p53
    %p55 = scmp.ne.s32.totalorder %s47, %s49
    %p56 = scmp.eq.s32.totalorder %s18, 1
    %p57 = por %p55, %p56
    %p58 = scmp.ne.s32.totalorder %s49, %s50
    %p59 = scmp.eq.s32.totalorder %s18, 0
    %p60 = por %p58, %p59
    %p61 = scmp.ne.s32.totalorder %s49, %s50
    %p62 = scmp.eq.s32.totalorder %s19, 1
    %p63 = por %p61, %p62
    %p65 = scmp.ne.s32.totalorder %s50, %s64
    %p66 = scmp.eq.s32.totalorder %s19, 0
    %p67 = por %p65, %p66
    %s69 = sadd.s32 %s68, 1
    %p72 = scmp.eq.s32.totalorder %s13, 1
    %p73 = scmp.ne.s32.totalorder %s68, %s70
    %p74 = scmp.eq.s32.totalorder %s13, 0
    %p75 = por %p73, %p74
    %p76 = scmp.ne.s32.totalorder %s68, %s70
    %p77 = scmp.eq.s32.totalorder %s18, 1
    %p78 = por %p76, %p77
    %p79 = scmp.ne.s32.totalorder %s70, %s71
    %p80 = scmp.eq.s32.totalorder %s18, 0
    %p81 = por %p79, %p80
    %p82 = scmp.ne.s32.totalorder %s70, %s71
    %p83 = scmp.eq.s32.totalorder %s19, 1
    %p84 = por %p82, %p83
    %p86 = scmp.ne.s32.totalorder %s71, %s85
    %p87 = scmp.eq.s32.totalorder %s19, 0
    %p88 = por %p86, %p87
    %s90 = sadd.s32 %s89, 1
    %p93 = scmp.eq.s32.totalorder %s13, 1
    %p94 = scmp.ne.s32.totalorder %s89, %s91
    %p95 = scmp.eq.s32.totalorder %s13, 0
    %p96 = por %p94, %p95
    %p97 = scmp.ne.s32.totalorder %s89, %s91
    %p98 = scmp.eq.s32.totalorder %s18, 1
    %p99 = por %p97, %p98
    %p100 = scmp.ne.s32.totalorder %s91, %s92
    %p101 = scmp.eq.s32.totalorder %s18, 0
    %p102 = por %p100, %p101
    %p103 = scmp.ne.s32.totalorder %s91, %s92
    %p104 = scmp.eq.s32.totalorder %s19, 1
    %p105 = por %p103, %p104
    %p107 = scmp.ne.s32.totalorder %s92, %s106
    %p108 = scmp.eq.s32.totalorder %s19, 0
    %p109 = por %p107, %p108
    %s111 = sadd.s32 %s110, 1
    %p114 = scmp.eq.s32.totalorder %s13, 1
    %p115 = scmp.ne.s32.totalorder %s110, %s112
    %p116 = scmp.eq.s32.totalorder %s13, 0
    %p117 = por %p115, %p116
    %p118 = scmp.ne.s32.totalorder %s110, %s112
    %p119 = scmp.eq.s32.totalorder %s18, 1
    %p120 = por %p118, %p119
    %p121 = scmp.ne.s32.totalorder %s112, %s113
    %p122 = scmp.eq.s32.totalorder %s18, 0
    %p123 = por %p121, %p122
    %p124 = scmp.ne.s32.totalorder %s112, %s113
    %p125 = scmp.eq.s32.totalorder %s19, 1
    %p126 = por %p124, %p125
    %p128 = scmp.ne.s32.totalorder %s113, %s127
    %p129 = scmp.eq.s32.totalorder %s19, 0
    %p130 = por %p128, %p129
    %s132 = sadd.s32 %s131, 1
    %p135 = scmp.eq.s32.totalorder %s13, 1
    %p136 = scmp.ne.s32.totalorder %s131, %s133
    %p137 = scmp.eq.s32.totalorder %s13, 0
    %p138 = por %p136, %p137
    %p139 = scmp.ne.s32.totalorder %s131, %s133
    %p140 = scmp.eq.s32.totalorder %s18, 1
    %p141 = por %p139, %p140
    %p142 = scmp.ne.s32.totalorder %s133, %s134
    %p143 = scmp.eq.s32.totalorder %s18, 0
    %p144 = por %p142, %p143
    %p145 = scmp.ne.s32.totalorder %s133, %s134
    %p146 = scmp.eq.s32.totalorder %s19, 1
    %p147 = por %p145, %p146
    %p149 = scmp.ne.s32.totalorder %s134, %s148
    %p150 = scmp.eq.s32.totalorder %s19, 0
    %p151 = por %p149, %p150
    %s153 = sadd.s32 %s152, 1
    %p156 = scmp.eq.s32.totalorder %s13, 1
    %p157 = scmp.ne.s32.totalorder %s152, %s154
    %p158 = scmp.eq.s32.totalorder %s13, 0
    %p159 = por %p157, %p158
    %p160 = scmp.ne.s32.totalorder %s152, %s154
    %p161 = scmp.eq.s32.totalorder %s18, 1
    %p162 = por %p160, %p161
    %p163 = scmp.ne.s32.totalorder %s154, %s155
    %p164 = scmp.eq.s32.totalorder %s18, 0
    %p165 = por %p163, %p164
    %p166 = scmp.ne.s32.totalorder %s154, %s155
    %p167 = scmp.eq.s32.totalorder %s19, 1
    %p168 = por %p166, %p167
    %p170 = scmp.ne.s32.totalorder %s155, %s169
    %p171 = scmp.eq.s32.totalorder %s19, 0
    %p172 = por %p170, %p171
    %s173 = ssub.s32 %s13, %s20
    %p174 = scmp.eq.s32.totalorder %s173, 0
    %s176 = sadd.s32 %s175, 1
    %s177 = scalar_select %p174, %s175, %s176
    %p180 = pneg %p174
    %p181 = scmp.eq.s32.totalorder %s13, 1
    %p182 = por %p180, %p181
    %p183 = scmp.ne.s32.totalorder %s175, %s178
    %p184 = scmp.eq.s32.totalorder %s13, 0
    %p185 = por %p183, %p184
    %p186 = scmp.ne.s32.totalorder %s175, %s178
    %p187 = scmp.eq.s32.totalorder %s18, 1
    %p188 = por %p186, %p187
    %p189 = scmp.ne.s32.totalorder %s178, %s179
    %p190 = scmp.eq.s32.totalorder %s18, 0
    %p191 = por %p189, %p190
    %p192 = scmp.ne.s32.totalorder %s178, %s179
    %p193 = scmp.eq.s32.totalorder %s19, 1
    %p194 = por %p192, %p193
    %p196 = scmp.ne.s32.totalorder %s179, %s195
    %p197 = scmp.eq.s32.totalorder %s19, 0
    %p198 = por %p196, %p197
    %p199 = scmp.le.s32.totalorder 1, %s13
    %p200 = scmp.lt.s32.totalorder %s13, 3
    %p201 = pnand %p199, %p200
    %p202 = pneg %p201
    // Predicated region
    $region9: #{upconv.5} parent=5 // pred_check
      _
    $region10: #{upconv.5} parent=5 // pred_check_branch
      %204 = sbr.rel (%p201) target = $region12
    $region11: #{upconv.5} parent=5 // pred_region
      %s205 = ssub.s32 %s13, 1
      // Predicated region
      $region13: #{upconv.5} parent=11 // pred_check
        %p206 = pneg %p60
      $region14: #{upconv.5} parent=11 // pred_check_branch
        %208 = sbr.rel (%p206) target = $region16
      $region15: #{upconv.5} parent=11 // pred_region
        _
      $region16: #{upconv.5} parent=11 // pred_fallthru
        _
      // Predicated region
      $region17: #{upconv.5} parent=11 // pred_check
        %p209 = pneg %p81
      $region18: #{upconv.5} parent=11 // pred_check_branch
        %211 = sbr.rel (%p209) target = $region20
      $region19: #{upconv.5} parent=11 // pred_region
        _
      $region20: #{upconv.5} parent=11 // pred_fallthru
        _
      // Predicated region
      $region21: #{upconv.5} parent=11 // pred_check
        %p212 = pneg %p102
      $region22: #{upconv.5} parent=11 // pred_check_branch
        %214 = sbr.rel (%p212) target = $region24
      $region23: #{upconv.5} parent=11 // pred_region
        _
      $region24: #{upconv.5} parent=11 // pred_fallthru
        _
      // Predicated region
      $region25: #{upconv.5} parent=11 // pred_check
        %p215 = pneg %p123
      $region26: #{upconv.5} parent=11 // pred_check_branch
        %217 = sbr.rel (%p215) target = $region28
      $region27: #{upconv.5} parent=11 // pred_region
        _
      $region28: #{upconv.5} parent=11 // pred_fallthru
        _
      // Predicated region
      $region29: #{upconv.5} parent=11 // pred_check
        %p218 = pneg %p144
      $region30: #{upconv.5} parent=11 // pred_check_branch
        %220 = sbr.rel (%p218) target = $region32
      $region31: #{upconv.5} parent=11 // pred_region
        _
      $region32: #{upconv.5} parent=11 // pred_fallthru
        _
      // Predicated region
      $region33: #{upconv.5} parent=11 // pred_check
        %p221 = pneg %p165
      $region34: #{upconv.5} parent=11 // pred_check_branch
        %223 = sbr.rel (%p221) target = $region36
      $region35: #{upconv.5} parent=11 // pred_region
        _
      $region36: #{upconv.5} parent=11 // pred_fallthru
        _
    $region12: #{upconv.5} parent=5 // pred_fallthru
      _
    %p224 = scmp.lt.s32.totalorder %s13, 2
    // Predicated region
    $region37: #{upconv.5} parent=5 // pred_check
      %p225 = pneg %p224
    $region38: #{upconv.5} parent=5 // pred_check_branch
      %227 = sbr.rel (%p225) target = $region40
    $region39: #{upconv.5} parent=5 // pred_region
      // Predicated region
      $region41: #{upconv.5} parent=39 // pred_check
        %p228 = pneg %p33
      $region42: #{upconv.5} parent=39 // pred_check_branch
        %230 = sbr.rel (%p228) target = $region44
      $region43: #{upconv.5} parent=39 // pred_region
        %p231 = scmp.lt.s32.totalorder %s13, 1
        %s232 = scalar_select %p231, %s13, 1
        %s233 = smul.addr %s232, 8
        %s234 = smul.addr %s233, 2
        %s235 = scalar_lea.vmem %s0, %s234
      $region44: #{upconv.5} parent=39 // pred_fallthru
        _
    $region40: #{upconv.5} parent=5 // pred_fallthru
      _
    %p236 = scmp.le.s32.totalorder 1, %s13
    %p237 = scmp.lt.s32.totalorder %s13, 3
    %p238 = pnand %p236, %p237
    %p239 = pneg %p238
    // Predicated region
    $region45: #{upconv.5} parent=5 // pred_check
      _
    $region46: #{upconv.5} parent=5 // pred_check_branch
      %241 = sbr.rel (%p238) target = $region48
    $region47: #{upconv.5} parent=5 // pred_region
      %s242 = ssub.s32 %s13, 1
      %p243 = scmp.lt.s32.totalorder %s18, 1
      %s244 = scalar_select %p243, %s18, 1
      %s245 = smul.addr %s244, 8
      %s246 = smul.addr %s245, 2
      %s247 = scalar_lea.vmem %s0, %s246
      %p248 = pneg %p39
      %p249 = pneg %p36
      %p250 = pneg %p60
      %p251 = pneg %p57
      %p252 = pneg %p81
      %p253 = pneg %p78
      %p254 = pneg %p102
      %p255 = pneg %p99
      %p256 = pneg %p123
      %p257 = pneg %p120
      %p258 = pneg %p144
      %p259 = pneg %p141
      %p260 = pneg %p165
      %p261 = pneg %p162
      %p262 = pneg %p191
      %p263 = pneg %p188
      %p264 = scmp.lt.s32.totalorder %s18, 1
      %s265 = scalar_select %p264, %s18, 1
      %s266 = smul.addr %s265, 8
      %s267 = smul.addr %s266, 8
      %s268 = scalar_lea.vmem %s7, %s267
      %p269 = scmp.lt.s32.totalorder %s18, 1
      %s270 = scalar_select %p269, %s18, 1
      %s271 = smul.addr %s270, 8
      %s272 = smul.addr %s271, 2
      %s273 = scalar_lea.vmem %s0, %s272
      %p274 = scmp.lt.s32.totalorder %s18, 1
      %s275 = scalar_select %p274, %s18, 1
      %s276 = smul.addr %s275, 8
      %s277 = smul.addr %s276, 8
      %s278 = scalar_lea.vmem %s7, %s277
      %v280 = vld [vmem:[%s273] sm:$0xff]
      %v281 = vld [vmem:[%s273 + $0x8] sm:$0xff]
      %v282 = vunpack.c.l.bf16 %v280
      %v283 = vunpack.c.h.bf16 %v280
      %v284 = vunpack.c.l.bf16 %v281
      %v285 = vunpack.c.h.bf16 %v281
      %v286 = vld [vmem:[%s1] sm:$0xf]
      %288 = vset.pattern.permute.xlu0 0
      %289 = vperm.xlu0 %288, %v286
      %v290 = vpop.permute.xlu0 %289
      %v292 = vunpack.c.l.s4 839922192
      %v293 = vunpack.c.0.s8 %v292
      %v294 = vlaneseq
      %v295 = vshrl.u32 %v294, 7
      %v296 = vsub.s32 %v293, %v295
      %v297 = vrot.slane %v290, %v296
      %v299 = vmul.f32 %v282, %v297
      %v300 = vmul.f32 %v283, %v297
      %v301 = vmul.f32 %v284, %v297
      %v302 = vmul.f32 %v285, %v297
      %v303 = vld [vmem:[%s2] sm:$0xf]
      %305 = vset.pattern.permute.xlu0 0
      %306 = vperm.xlu0 %305, %v303
      %v307 = vpop.permute.xlu0 %306
      %v309 = vunpack.c.l.s4 839922192
      %v310 = vunpack.c.0.s8 %v309
      %v311 = vlaneseq
      %v312 = vshrl.u32 %v311, 7
      %v313 = vsub.s32 %v310, %v312
      %v314 = vrot.slane %v307, %v313
      %v316 = vadd.f32 %v299, %v314
      %v317 = vadd.f32 %v300, %v314
      %v318 = vadd.f32 %v301, %v314
      %v319 = vadd.f32 %v302, %v314
      %v320 = vlaneseq
      %v321 = vand.u32 %v320, 127
      %v322 = vadd.s32 %v321, 128
      %v323 = vadd.s32 %v321, 256
      %v324 = vadd.s32 %v321, 384
      %v325 = vadd.s32 %v321, 512
      %v326 = vadd.s32 %v321, 640
      %v327 = vadd.s32 %v321, 768
      %v328 = vadd.s32 %v321, 896
      %vm329 = vcmp.lt.s32.totalorder %v321, 0
      %v330 = vsub.s32 0, %v321
      %v331 = vsel %vm329, %v330, %v321
      %v332 = vshrl.u32 %v331, 5
      %v333 = vand.u32 %v331, 31
      %v334 = vsub.s32 0, %v333
      %v335 = vsel %vm329, %v334, %v333
      %vm336 = vcmp.lt.s32.totalorder %v322, 0
      %v337 = vsub.s32 0, %v322
      %v338 = vsel %vm336, %v337, %v322
      %v339 = vshrl.u32 %v338, 5
      %v340 = vand.u32 %v338, 31
      %v341 = vsub.s32 0, %v340
      %v342 = vsel %vm336, %v341, %v340
      %vm343 = vcmp.lt.s32.totalorder %v323, 0
      %v344 = vsub.s32 0, %v323
      %v345 = vsel %vm343, %v344, %v323
      %v346 = vshrl.u32 %v345, 5
      %v347 = vand.u32 %v345, 31
      %v348 = vsub.s32 0, %v347
      %v349 = vsel %vm343, %v348, %v347
      %vm350 = vcmp.lt.s32.totalorder %v324, 0
      %v351 = vsub.s32 0, %v324
      %v352 = vsel %vm350, %v351, %v324
      %v353 = vshrl.u32 %v352, 5
      %v354 = vand.u32 %v352, 31
      %v355 = vsub.s32 0, %v354
      %v356 = vsel %vm350, %v355, %v354
      %vm357 = vcmp.lt.s32.totalorder %v325, 0
      %v358 = vsub.s32 0, %v325
      %v359 = vsel %vm357, %v358, %v325
      %v360 = vshrl.u32 %v359, 5
      %v361 = vand.u32 %v359, 31
      %v362 = vsub.s32 0, %v361
      %v363 = vsel %vm357, %v362, %v361
      %vm364 = vcmp.lt.s32.totalorder %v326, 0
      %v365 = vsub.s32 0, %v326
      %v366 = vsel %vm364, %v365, %v326
      %v367 = vshrl.u32 %v366, 5
      %v368 = vand.u32 %v366, 31
      %v369 = vsub.s32 0, %v368
      %v370 = vsel %vm364, %v369, %v368
      %vm371 = vcmp.lt.s32.totalorder %v327, 0
      %v372 = vsub.s32 0, %v327
      %v373 = vsel %vm371, %v372, %v327
      %v374 = vshrl.u32 %v373, 5
      %v375 = vand.u32 %v373, 31
      %v376 = vsub.s32 0, %v375
      %v377 = vsel %vm371, %v376, %v375
      %vm378 = vcmp.lt.s32.totalorder %v328, 0
      %v379 = vsub.s32 0, %v328
      %v380 = vsel %vm378, %v379, %v328
      %v381 = vshrl.u32 %v380, 5
      %v382 = vand.u32 %v380, 31
      %v383 = vsub.s32 0, %v382
      %v384 = vsel %vm378, %v383, %v382
      %vm385 = vcmp.ne.s32.totalorder %v335, 0
      %vm386 = vcmp.ne.s32.totalorder %v342, 0
      %vm387 = vcmp.ne.s32.totalorder %v349, 0
      %vm388 = vcmp.ne.s32.totalorder %v356, 0
      %vm389 = vcmp.ne.s32.totalorder %v363, 0
      %vm390 = vcmp.ne.s32.totalorder %v370, 0
      %vm391 = vcmp.ne.s32.totalorder %v377, 0
      %vm392 = vcmp.ne.s32.totalorder %v384, 0
      %vm393 = vcmp.lt.s32.totalorder %v335, 0
      %vm394 = vcmp.lt.s32.totalorder %v342, 0
      %vm395 = vcmp.lt.s32.totalorder %v349, 0
      %vm396 = vcmp.lt.s32.totalorder %v356, 0
      %vm397 = vcmp.lt.s32.totalorder %v363, 0
      %vm398 = vcmp.lt.s32.totalorder %v370, 0
      %vm399 = vcmp.lt.s32.totalorder %v377, 0
      %vm400 = vcmp.lt.s32.totalorder %v384, 0
      %vm401 = vmand %vm393, %vm385
      %vm402 = vmand %vm394, %vm386
      %vm403 = vmand %vm395, %vm387
      %vm404 = vmand %vm396, %vm388
      %vm405 = vmand %vm397, %vm389
      %vm406 = vmand %vm398, %vm390
      %vm407 = vmand %vm399, %vm391
      %vm408 = vmand %vm400, %vm392
      %v409 = vadd.s32 %v335, 32
      %v410 = vadd.s32 %v342, 32
      %v411 = vadd.s32 %v349, 32
      %v412 = vadd.s32 %v356, 32
      %v413 = vadd.s32 %v363, 32
      %v414 = vadd.s32 %v370, 32
      %v415 = vadd.s32 %v377, 32
      %v416 = vadd.s32 %v384, 32
      %v417 = vsel %vm401, %v409, %v335
      %v418 = vsel %vm402, %v410, %v342
      %v419 = vsel %vm403, %v411, %v349
      %v420 = vsel %vm404, %v412, %v356
      %v421 = vsel %vm405, %v413, %v363
      %v422 = vsel %vm406, %v414, %v370
      %v423 = vsel %vm407, %v415, %v377
      %v424 = vsel %vm408, %v416, %v384
      %vm425 = vcmp.ne.s32.totalorder %v417, 31
      %vm426 = vcmp.ne.s32.totalorder %v418, 31
      %vm427 = vcmp.ne.s32.totalorder %v419, 31
      %vm428 = vcmp.ne.s32.totalorder %v420, 31
      %vm429 = vcmp.ne.s32.totalorder %v421, 31
      %vm430 = vcmp.ne.s32.totalorder %v422, 31
      %vm431 = vcmp.ne.s32.totalorder %v423, 31
      %vm432 = vcmp.ne.s32.totalorder %v424, 31
      %vm433 = vcmp.lt.s32.totalorder %v321, 992
      %vm434 = vcmp.lt.s32.totalorder %v322, 992
      %vm435 = vcmp.lt.s32.totalorder %v323, 992
      %vm436 = vcmp.lt.s32.totalorder %v324, 992
      %vm437 = vcmp.lt.s32.totalorder %v325, 992
      %vm438 = vcmp.lt.s32.totalorder %v326, 992
      %vm439 = vcmp.lt.s32.totalorder %v327, 992
      %vm440 = vcmp.lt.s32.totalorder %v328, 992
      %v445 = vcombine.high %v316, %v316
      %v446 = vcombine.high %v317, %v317
      %v447 = vcombine.high %v318, %v318
      %v448 = vcombine.high %v319, %v319
      %453 = vrot.lane.b32.xlu0 %v316, 127
      %v454 = vpop.permute.xlu0 %453
      %455 = vrot.lane.b32.xlu0 %v445, 127
      %v456 = vpop.permute.xlu0 %455
      %457 = vrot.lane.b32.xlu0 %v317, 127
      %v458 = vpop.permute.xlu0 %457
      %459 = vrot.lane.b32.xlu0 %v446, 127
      %v460 = vpop.permute.xlu0 %459
      %461 = vrot.lane.b32.xlu0 %v318, 127
      %v462 = vpop.permute.xlu0 %461
      %463 = vrot.lane.b32.xlu0 %v447, 127
      %v464 = vpop.permute.xlu0 %463
      %465 = vrot.lane.b32.xlu0 %v319, 127
      %v466 = vpop.permute.xlu0 %465
      %467 = vrot.lane.b32.xlu0 %v448, 127
      %v468 = vpop.permute.xlu0 %467
      %vm469 = vcmp.lt.s32.totalorder %v321, 127
      %v470 = vsel %vm469, %v466, %v468
      %v471 = vsel %vm469, %v464, %v466
      %v472 = vsel %vm469, %v462, %v464
      %v473 = vsel %vm469, %v460, %v462
      %v474 = vsel %vm469, %v458, %v460
      %v475 = vsel %vm469, %v456, %v458
      %v476 = vsel %vm469, %v454, %v456
      %v477 = vsel %vm469, %v468, %v454
      %v478 = vsel %vm425, %v476, 0.0
      %v479 = vsel %vm426, %v475, 0.0
      %v480 = vsel %vm427, %v474, 0.0
      %v481 = vsel %vm428, %v473, 0.0
      %v482 = vsel %vm429, %v472, 0.0
      %v483 = vsel %vm430, %v471, 0.0
      %v484 = vsel %vm431, %v470, 0.0
      %v485 = vsel %vm432, %v477, 0.0
      %486 = vrot.lane.b32.xlu0 %v316, 96
      %v487 = vpop.permute.xlu0 %486
      %488 = vrot.lane.b32.xlu0 %v445, 96
      %v489 = vpop.permute.xlu0 %488
      %490 = vrot.lane.b32.xlu0 %v317, 96
      %v491 = vpop.permute.xlu0 %490
      %492 = vrot.lane.b32.xlu0 %v446, 96
      %v493 = vpop.permute.xlu0 %492
      %494 = vrot.lane.b32.xlu0 %v318, 96
      %v495 = vpop.permute.xlu0 %494
      %496 = vrot.lane.b32.xlu0 %v447, 96
      %v497 = vpop.permute.xlu0 %496
      %498 = vrot.lane.b32.xlu0 %v319, 96
      %v499 = vpop.permute.xlu0 %498
      %500 = vrot.lane.b32.xlu0 %v448, 96
      %v501 = vpop.permute.xlu0 %500
      %vm502 = vcmp.lt.s32.totalorder %v321, 96
      %v503 = vsel %vm502, %v499, %v501
      %v504 = vsel %vm502, %v497, %v499
      %v505 = vsel %vm502, %v495, %v497
      %v506 = vsel %vm502, %v493, %v495
      %v507 = vsel %vm502, %v491, %v493
      %v508 = vsel %vm502, %v489, %v491
      %v509 = vsel %vm502, %v487, %v489
      %v510 = vsel %vm502, %v501, %v487
      %v511 = vsel %vm433, %v509, 0.0
      %v512 = vsel %vm434, %v508, 0.0
      %v513 = vsel %vm435, %v507, 0.0
      %v514 = vsel %vm436, %v506, 0.0
      %v515 = vsel %vm437, %v505, 0.0
      %v516 = vsel %vm438, %v504, 0.0
      %v517 = vsel %vm439, %v503, 0.0
      %v518 = vsel %vm440, %v510, 0.0
      %vm519 = vmand %vm433, %vm425
      %vm520 = vmand %vm434, %vm426
      %vm521 = vmand %vm435, %vm427
      %vm522 = vmand %vm436, %vm428
      %vm523 = vmand %vm437, %vm429
      %vm524 = vmand %vm438, %vm430
      %vm525 = vmand %vm439, %vm431
      %vm526 = vmand %vm440, %vm432
      %527 = vrot.lane.b32.xlu0 %v316, 95
      %v528 = vpop.permute.xlu0 %527
      %529 = vrot.lane.b32.xlu0 %v445, 95
      %v530 = vpop.permute.xlu0 %529
      %531 = vrot.lane.b32.xlu0 %v317, 95
      %v532 = vpop.permute.xlu0 %531
      %533 = vrot.lane.b32.xlu0 %v446, 95
      %v534 = vpop.permute.xlu0 %533
      %535 = vrot.lane.b32.xlu0 %v318, 95
      %v536 = vpop.permute.xlu0 %535
      %537 = vrot.lane.b32.xlu0 %v447, 95
      %v538 = vpop.permute.xlu0 %537
      %539 = vrot.lane.b32.xlu0 %v319, 95
      %v540 = vpop.permute.xlu0 %539
      %541 = vrot.lane.b32.xlu0 %v448, 95
      %v542 = vpop.permute.xlu0 %541
      %vm543 = vcmp.lt.s32.totalorder %v321, 95
      %v544 = vsel %vm543, %v540, %v542
      %v545 = vsel %vm543, %v538, %v540
      %v546 = vsel %vm543, %v536, %v538
      %v547 = vsel %vm543, %v534, %v536
      %v548 = vsel %vm543, %v532, %v534
      %v549 = vsel %vm543, %v530, %v532
      %v550 = vsel %vm543, %v528, %v530
      %v551 = vsel %vm543, %v542, %v528
      %v552 = vsel %vm519, %v550, 0.0
      %v553 = vsel %vm520, %v549, 0.0
      %v554 = vsel %vm521, %v548, 0.0
      %v555 = vsel %vm522, %v547, 0.0
      %v556 = vsel %vm523, %v546, 0.0
      %v557 = vsel %vm524, %v545, 0.0
      %v558 = vsel %vm525, %v544, 0.0
      %v559 = vsel %vm526, %v551, 0.0
      %v560 = vld [vmem:[%s3] sm:$0xff]
      %v561 = vpack.c.bf16 %v560, %v560
      %v562 = vpack.c.bf16 %v316, %v316
      %v563 = vpack.c.bf16 %v445, %v445
      %v564 = vpack.c.bf16 %v317, %v317
      %v565 = vpack.c.bf16 %v446, %v446
      %v566 = vpack.c.bf16 %v318, %v318
      %v567 = vpack.c.bf16 %v447, %v447
      %v568 = vpack.c.bf16 %v319, %v319
      %v569 = vpack.c.bf16 %v448, %v448
      %s570 = scalar_lea.vmem %s3, 8
      %v571 = vld [vmem:[%s570] sm:$0xff]
      %v572 = vpack.c.bf16 %v571, %v571
      %v573 = vpack.c.bf16 %v478, %v478
      %v574 = vpack.c.bf16 %v479, %v479
      %v575 = vpack.c.bf16 %v480, %v480
      %v576 = vpack.c.bf16 %v481, %v481
      %v577 = vpack.c.bf16 %v482, %v482
      %v578 = vpack.c.bf16 %v483, %v483
      %v579 = vpack.c.bf16 %v484, %v484
      %v580 = vpack.c.bf16 %v485, %v485
      %vm581 = vcmask 31744
      %v583 = vsel %vm581, %v572, 0
      %vm585 = vcmask 1041408
      %v587 = vsel %vm585, %v573, 0
      %v590 = vsel %vm585, %v574, 0
      %v593 = vsel %vm585, %v575, 0
      %v596 = vsel %vm585, %v576, 0
      %v599 = vsel %vm585, %v577, 0
      %v602 = vsel %vm585, %v578, 0
      %v605 = vsel %vm585, %v579, 0
      %v608 = vsel %vm585, %v580, 0
      %610 = vmatprep.subr.bf16.mxu0 0
      %611 = vmatpush1.bf16.msra.mxu0 0
      %612 = vmatprep.subr.bf16.mxu0 0
      %613 = vmatpush1.bf16.msra.mxu0 0
      %614 = vmatprep.subr.bf16.mxu0 0
      %615 = vmatpush1.bf16.msra.mxu0 0
      %616 = vmatprep.subr.bf16.mxu0 0
      %617 = vmatpush1.bf16.msra.mxu0 0
      %618 = vmatprep.subr.bf16.mxu0 0
      %619 = vmatpush1.bf16.msra.mxu0 0
      %620 = vmatprep.subr.bf16.mxu0 0
      %621 = vmatpush1.bf16.msra.mxu0 0
      %622 = vmatprep.subr.bf16.mxu0 0
      %623 = vmatpush1.bf16.msra.mxu0 0
      %624 = vmatprep.subr.bf16.mxu0 %v590
      %625 = vmatpush1.bf16.msra.mxu0 %v587
      %626 = vmatprep.subr.bf16.mxu0 0
      %627 = vmatpush2.bf16.msra.mxu0 0
      %628 = vmatprep.subr.bf16.mxu0 0
      %629 = vmatpush2.bf16.msra.mxu0 0
      %630 = vmatprep.subr.bf16.mxu0 0
      %631 = vmatpush2.bf16.msra.mxu0 0
      %632 = vmatprep.subr.bf16.mxu0 0
      %633 = vmatpush2.bf16.msra.mxu0 0
      %634 = vmatprep.subr.bf16.mxu0 0
      %635 = vmatpush2.bf16.msra.mxu0 0
      %636 = vmatprep.subr.bf16.mxu0 0
      %637 = vmatpush2.bf16.msra.mxu0 0
      %638 = vmatprep.subr.bf16.mxu0 0
      %639 = vmatpush2.bf16.msra.mxu0 0
      %640 = vmatprep.subr.bf16.mxu0 0
      %641 = vmatpush2.bf16.msra.mxu0 0
      %642 = vmatprep.mubr.bf16.mxu0 0
      %643 = vmatmul.mubr.bf16.gmra.mxu0 %v583
      %v644 = vpop.f32.mrf.mxu0
      %v645 = vadd.f32 0.0, %v644
      %v646 = vpop.f32.mrf.mxu0
      %v647 = vadd.f32 0.0, %v646
      %v648 = vpop.f32.mrf.mxu0
      %v649 = vpop.f32.mrf.mxu0
      %650 = vdwg.mxu0
      %651 = vmatprep.subr.bf16.mxu0 0
      %652 = vmatpush1.bf16.msra.mxu0 0
      %653 = vmatprep.subr.bf16.mxu0 0
      %654 = vmatpush1.bf16.msra.mxu0 0
      %655 = vmatprep.subr.bf16.mxu0 0
      %656 = vmatpush1.bf16.msra.mxu0 0
      %657 = vmatprep.subr.bf16.mxu0 0
      %658 = vmatpush1.bf16.msra.mxu0 0
      %659 = vmatprep.subr.bf16.mxu0 0
      %660 = vmatpush1.bf16.msra.mxu0 0
      %661 = vmatprep.subr.bf16.mxu0 0
      %662 = vmatpush1.bf16.msra.mxu0 0
      %663 = vmatprep.subr.bf16.mxu0 0
      %664 = vmatpush1.bf16.msra.mxu0 0
      %665 = vmatprep.subr.bf16.mxu0 %v596
      %666 = vmatpush1.bf16.msra.mxu0 %v593
      %667 = vmatprep.subr.bf16.mxu0 0
      %668 = vmatpush2.bf16.msra.mxu0 0
      %669 = vmatprep.subr.bf16.mxu0 0
      %670 = vmatpush2.bf16.msra.mxu0 0
      %671 = vmatprep.subr.bf16.mxu0 0
      %672 = vmatpush2.bf16.msra.mxu0 0
      %673 = vmatprep.subr.bf16.mxu0 0
      %674 = vmatpush2.bf16.msra.mxu0 0
      %675 = vmatprep.subr.bf16.mxu0 0
      %676 = vmatpush2.bf16.msra.mxu0 0
      %677 = vmatprep.subr.bf16.mxu0 0
      %678 = vmatpush2.bf16.msra.mxu0 0
      %679 = vmatprep.subr.bf16.mxu0 0
      %680 = vmatpush2.bf16.msra.mxu0 0
      %681 = vmatprep.subr.bf16.mxu0 0
      %682 = vmatpush2.bf16.msra.mxu0 0
      %683 = vmatprep.mubr.bf16.mxu0 0
      %684 = vmatmul.mubr.bf16.gmra.mxu0 %v583
      %v685 = vpop.f32.mrf.mxu0
      %v686 = vadd.f32 0.0, %v685
      %v687 = vpop.f32.mrf.mxu0
      %v688 = vadd.f32 0.0, %v687
      %v689 = vpop.f32.mrf.mxu0
      %v690 = vpop.f32.mrf.mxu0
      %691 = vdwg.mxu0
      %692 = vmatprep.subr.bf16.mxu0 0
      %693 = vmatpush1.bf16.msra.mxu0 0
      %694 = vmatprep.subr.bf16.mxu0 0
      %695 = vmatpush1.bf16.msra.mxu0 0
      %696 = vmatprep.subr.bf16.mxu0 0
      %697 = vmatpush1.bf16.msra.mxu0 0
      %698 = vmatprep.subr.bf16.mxu0 0
      %699 = vmatpush1.bf16.msra.mxu0 0
      %700 = vmatprep.subr.bf16.mxu0 0
      %701 = vmatpush1.bf16.msra.mxu0 0
      %702 = vmatprep.subr.bf16.mxu0 0
      %703 = vmatpush1.bf16.msra.mxu0 0
      %704 = vmatprep.subr.bf16.mxu0 0
      %705 = vmatpush1.bf16.msra.mxu0 0
      %706 = vmatprep.subr.bf16.mxu0 %v602
      %707 = vmatpush1.bf16.msra.mxu0 %v599
      %708 = vmatprep.subr.bf16.mxu0 0
      %709 = vmatpush2.bf16.msra.mxu0 0
      %710 = vmatprep.subr.bf16.mxu0 0
      %711 = vmatpush2.bf16.msra.mxu0 0
      %712 = vmatprep.subr.bf16.mxu0 0
      %713 = vmatpush2.bf16.msra.mxu0 0
      %714 = vmatprep.subr.bf16.mxu0 0
      %715 = vmatpush2.bf16.msra.mxu0 0
      %716 = vmatprep.subr.bf16.mxu0 0
      %717 = vmatpush2.bf16.msra.mxu0 0
      %718 = vmatprep.subr.bf16.mxu0 0
      %719 = vmatpush2.bf16.msra.mxu0 0
      %720 = vmatprep.subr.bf16.mxu0 0
      %721 = vmatpush2.bf16.msra.mxu0 0
      %722 = vmatprep.subr.bf16.mxu0 0
      %723 = vmatpush2.bf16.msra.mxu0 0
      %724 = vmatprep.mubr.bf16.mxu0 0
      %725 = vmatmul.mubr.bf16.gmra.mxu0 %v583
      %v726 = vpop.f32.mrf.mxu0
      %v727 = vadd.f32 0.0, %v726
      %v728 = vpop.f32.mrf.mxu0
      %v729 = vadd.f32 0.0, %v728
      %v730 = vpop.f32.mrf.mxu0
      %v731 = vpop.f32.mrf.mxu0
      %732 = vdwg.mxu0
      %733 = vmatprep.subr.bf16.mxu0 0
      %734 = vmatpush1.bf16.msra.mxu0 0
      %735 = vmatprep.subr.bf16.mxu0 0
      %736 = vmatpush1.bf16.msra.mxu0 0
      %737 = vmatprep.subr.bf16.mxu0 0
      %738 = vmatpush1.bf16.msra.mxu0 0
      %739 = vmatprep.subr.bf16.mxu0 0
      %740 = vmatpush1.bf16.msra.mxu0 0
      %741 = vmatprep.subr.bf16.mxu0 0
      %742 = vmatpush1.bf16.msra.mxu0 0
      %743 = vmatprep.subr.bf16.mxu0 0
      %744 = vmatpush1.bf16.msra.mxu0 0
      %745 = vmatprep.subr.bf16.mxu0 0
      %746 = vmatpush1.bf16.msra.mxu0 0
      %747 = vmatprep.subr.bf16.mxu0 %v608
      %748 = vmatpush1.bf16.msra.mxu0 %v605
      %749 = vmatprep.subr.bf16.mxu0 0
      %750 = vmatpush2.bf16.msra.mxu0 0
      %751 = vmatprep.subr.bf16.mxu0 0
      %752 = vmatpush2.bf16.msra.mxu0 0
      %753 = vmatprep.subr.bf16.mxu0 0
      %754 = vmatpush2.bf16.msra.mxu0 0
      %755 = vmatprep.subr.bf16.mxu0 0
      %756 = vmatpush2.bf16.msra.mxu0 0
      %757 = vmatprep.subr.bf16.mxu0 0
      %758 = vmatpush2.bf16.msra.mxu0 0
      %759 = vmatprep.subr.bf16.mxu0 0
      %760 = vmatpush2.bf16.msra.mxu0 0
      %761 = vmatprep.subr.bf16.mxu0 0
      %762 = vmatpush2.bf16.msra.mxu0 0
      %763 = vmatprep.subr.bf16.mxu0 0
      %764 = vmatpush2.bf16.msra.mxu0 0
      %765 = vmatprep.mubr.bf16.mxu0 0
      %766 = vmatmul.mubr.bf16.gmra.mxu0 %v583
      %v767 = vpop.f32.mrf.mxu0
      %v768 = vadd.f32 0.0, %v767
      %v769 = vpop.f32.mrf.mxu0
      %v770 = vadd.f32 0.0, %v769
      %v771 = vpop.f32.mrf.mxu0
      %v772 = vpop.f32.mrf.mxu0
      %773 = vdwg.mxu0
      %v775 = vsel %vm581, %v561, 0
      %v778 = vsel %vm585, %v562, 0
      %v781 = vsel %vm585, %v563, 0
      %v784 = vsel %vm585, %v564, 0
      %v787 = vsel %vm585, %v565, 0
      %v790 = vsel %vm585, %v566, 0
      %v793 = vsel %vm585, %v567, 0
      %v796 = vsel %vm585, %v568, 0
      %v799 = vsel %vm585, %v569, 0
      %801 = vmatprep.subr.bf16.mxu0 0
      %802 = vmatpush1.bf16.msra.mxu0 0
      %803 = vmatprep.subr.bf16.mxu0 0
      %804 = vmatpush1.bf16.msra.mxu0 0
      %805 = vmatprep.subr.bf16.mxu0 0
      %806 = vmatpush1.bf16.msra.mxu0 0
      %807 = vmatprep.subr.bf16.mxu0 0
      %808 = vmatpush1.bf16.msra.mxu0 0
      %809 = vmatprep.subr.bf16.mxu0 0
      %810 = vmatpush1.bf16.msra.mxu0 0
      %811 = vmatprep.subr.bf16.mxu0 0
      %812 = vmatpush1.bf16.msra.mxu0 0
      %813 = vmatprep.subr.bf16.mxu0 0
      %814 = vmatpush1.bf16.msra.mxu0 0
      %815 = vmatprep.subr.bf16.mxu0 %v781
      %816 = vmatpush1.bf16.msra.mxu0 %v778
      %817 = vmatprep.subr.bf16.mxu0 0
      %818 = vmatpush2.bf16.msra.mxu0 0
      %819 = vmatprep.subr.bf16.mxu0 0
      %820 = vmatpush2.bf16.msra.mxu0 0
      %821 = vmatprep.subr.bf16.mxu0 0
      %822 = vmatpush2.bf16.msra.mxu0 0
      %823 = vmatprep.subr.bf16.mxu0 0
      %824 = vmatpush2.bf16.msra.mxu0 0
      %825 = vmatprep.subr.bf16.mxu0 0
      %826 = vmatpush2.bf16.msra.mxu0 0
      %827 = vmatprep.subr.bf16.mxu0 0
      %828 = vmatpush2.bf16.msra.mxu0 0
      %829 = vmatprep.subr.bf16.mxu0 0
      %830 = vmatpush2.bf16.msra.mxu0 0
      %831 = vmatprep.subr.bf16.mxu0 0
      %832 = vmatpush2.bf16.msra.mxu0 0
      %833 = vmatprep.mubr.bf16.mxu0 0
      %834 = vmatmul.mubr.bf16.gmra.mxu0 %v775
      %v835 = vpop.f32.mrf.mxu0
      %v836 = vadd.f32 %v645, %v835
      %v837 = vpop.f32.mrf.mxu0
      %v838 = vadd.f32 %v647, %v837
      %v839 = vpop.f32.mrf.mxu0
      %v840 = vpop.f32.mrf.mxu0
      %841 = vdwg.mxu0
      %842 = vmatprep.subr.bf16.mxu0 0
      %843 = vmatpush1.bf16.msra.mxu0 0
      %844 = vmatprep.subr.bf16.mxu0 0
      %845 = vmatpush1.bf16.msra.mxu0 0
      %846 = vmatprep.subr.bf16.mxu0 0
      %847 = vmatpush1.bf16.msra.mxu0 0
      %848 = vmatprep.subr.bf16.mxu0 0
      %849 = vmatpush1.bf16.msra.mxu0 0
      %850 = vmatprep.subr.bf16.mxu0 0
      %851 = vmatpush1.bf16.msra.mxu0 0
      %852 = vmatprep.subr.bf16.mxu0 0
      %853 = vmatpush1.bf16.msra.mxu0 0
      %854 = vmatprep.subr.bf16.mxu0 0
      %855 = vmatpush1.bf16.msra.mxu0 0
      %856 = vmatprep.subr.bf16.mxu0 %v787
      %857 = vmatpush1.bf16.msra.mxu0 %v784
      %858 = vmatprep.subr.bf16.mxu0 0
      %859 = vmatpush2.bf16.msra.mxu0 0
      %860 = vmatprep.subr.bf16.mxu0 0
      %861 = vmatpush2.bf16.msra.mxu0 0
      %862 = vmatprep.subr.bf16.mxu0 0
      %863 = vmatpush2.bf16.msra.mxu0 0
      %864 = vmatprep.subr.bf16.mxu0 0
      %865 = vmatpush2.bf16.msra.mxu0 0
      %866 = vmatprep.subr.bf16.mxu0 0
      %867 = vmatpush2.bf16.msra.mxu0 0
      %868 = vmatprep.subr.bf16.mxu0 0
      %869 = vmatpush2.bf16.msra.mxu0 0
      %870 = vmatprep.subr.bf16.mxu0 0
      %871 = vmatpush2.bf16.msra.mxu0 0
      %872 = vmatprep.subr.bf16.mxu0 0
      %873 = vmatpush2.bf16.msra.mxu0 0
      %874 = vmatprep.mubr.bf16.mxu0 0
      %875 = vmatmul.mubr.bf16.gmra.mxu0 %v775
      %v876 = vpop.f32.mrf.mxu0
      %v877 = vadd.f32 %v686, %v876
      %v878 = vpop.f32.mrf.mxu0
      %v879 = vadd.f32 %v688, %v878
      %v880 = vpop.f32.mrf.mxu0
      %v881 = vpop.f32.mrf.mxu0
      %882 = vdwg.mxu0
      %883 = vmatprep.subr.bf16.mxu0 0
      %884 = vmatpush1.bf16.msra.mxu0 0
      %885 = vmatprep.subr.bf16.mxu0 0
      %886 = vmatpush1.bf16.msra.mxu0 0
      %887 = vmatprep.subr.bf16.mxu0 0
      %888 = vmatpush1.bf16.msra.mxu0 0
      %889 = vmatprep.subr.bf16.mxu0 0
      %890 = vmatpush1.bf16.msra.mxu0 0
      %891 = vmatprep.subr.bf16.mxu0 0
      %892 = vmatpush1.bf16.msra.mxu0 0
      %893 = vmatprep.subr.bf16.mxu0 0
      %894 = vmatpush1.bf16.msra.mxu0 0
      %895 = vmatprep.subr.bf16.mxu0 0
      %896 = vmatpush1.bf16.msra.mxu0 0
      %897 = vmatprep.subr.bf16.mxu0 %v793
      %898 = vmatpush1.bf16.msra.mxu0 %v790
      %899 = vmatprep.subr.bf16.mxu0 0
      %900 = vmatpush2.bf16.msra.mxu0 0
      %901 = vmatprep.subr.bf16.mxu0 0
      %902 = vmatpush2.bf16.msra.mxu0 0
      %903 = vmatprep.subr.bf16.mxu0 0
      %904 = vmatpush2.bf16.msra.mxu0 0
      %905 = vmatprep.subr.bf16.mxu0 0
      %906 = vmatpush2.bf16.msra.mxu0 0
      %907 = vmatprep.subr.bf16.mxu0 0
      %908 = vmatpush2.bf16.msra.mxu0 0
      %909 = vmatprep.subr.bf16.mxu0 0
      %910 = vmatpush2.bf16.msra.mxu0 0
      %911 = vmatprep.subr.bf16.mxu0 0
      %912 = vmatpush2.bf16.msra.mxu0 0
      %913 = vmatprep.subr.bf16.mxu0 0
      %914 = vmatpush2.bf16.msra.mxu0 0
      %915 = vmatprep.mubr.bf16.mxu0 0
      %916 = vmatmul.mubr.bf16.gmra.mxu0 %v775
      %v917 = vpop.f32.mrf.mxu0
      %v918 = vadd.f32 %v727, %v917
      %v919 = vpop.f32.mrf.mxu0
      %v920 = vadd.f32 %v729, %v919
      %v921 = vpop.f32.mrf.mxu0
      %v922 = vpop.f32.mrf.mxu0
      %923 = vdwg.mxu0
      %924 = vmatprep.subr.bf16.mxu0 0
      %925 = vmatpush1.bf16.msra.mxu0 0
      %926 = vmatprep.subr.bf16.mxu0 0
      %927 = vmatpush1.bf16.msra.mxu0 0
      %928 = vmatprep.subr.bf16.mxu0 0
      %929 = vmatpush1.bf16.msra.mxu0 0
      %930 = vmatprep.subr.bf16.mxu0 0
      %931 = vmatpush1.bf16.msra.mxu0 0
      %932 = vmatprep.subr.bf16.mxu0 0
      %933 = vmatpush1.bf16.msra.mxu0 0
      %934 = vmatprep.subr.bf16.mxu0 0
      %935 = vmatpush1.bf16.msra.mxu0 0
      %936 = vmatprep.subr.bf16.mxu0 0
      %937 = vmatpush1.bf16.msra.mxu0 0
      %938 = vmatprep.subr.bf16.mxu0 %v799
      %939 = vmatpush1.bf16.msra.mxu0 %v796
      %940 = vmatprep.subr.bf16.mxu0 0
      %941 = vmatpush2.bf16.msra.mxu0 0
      %942 = vmatprep.subr.bf16.mxu0 0
      %943 = vmatpush2.bf16.msra.mxu0 0
      %944 = vmatprep.subr.bf16.mxu0 0
      %945 = vmatpush2.bf16.msra.mxu0 0
      %946 = vmatprep.subr.bf16.mxu0 0
      %947 = vmatpush2.bf16.msra.mxu0 0
      %948 = vmatprep.subr.bf16.mxu0 0
      %949 = vmatpush2.bf16.msra.mxu0 0
      %950 = vmatprep.subr.bf16.mxu0 0
      %951 = vmatpush2.bf16.msra.mxu0 0
      %952 = vmatprep.subr.bf16.mxu0 0
      %953 = vmatpush2.bf16.msra.mxu0 0
      %954 = vmatprep.subr.bf16.mxu0 0
      %955 = vmatpush2.bf16.msra.mxu0 0
      %956 = vmatprep.mubr.bf16.mxu0 0
      %957 = vmatmul.mubr.bf16.gmra.mxu0 %v775
      %v958 = vpop.f32.mrf.mxu0
      %v959 = vadd.f32 %v768, %v958
      %v960 = vpop.f32.mrf.mxu0
      %v961 = vadd.f32 %v770, %v960
      %v962 = vpop.f32.mrf.mxu0
      %v963 = vpop.f32.mrf.mxu0
      %964 = vdwg.mxu0
      %s965 = scalar_lea.vmem %s3, 16
      %v966 = vld [vmem:[%s965] sm:$0xff]
      %v967 = vpack.c.bf16 %v966, %v966
      %v968 = vpack.c.bf16 %v511, %v511
      %v969 = vpack.c.bf16 %v512, %v512
      %v970 = vpack.c.bf16 %v513, %v513
      %v971 = vpack.c.bf16 %v514, %v514
      %v972 = vpack.c.bf16 %v515, %v515
      %v973 = vpack.c.bf16 %v516, %v516
      %v974 = vpack.c.bf16 %v517, %v517
      %v975 = vpack.c.bf16 %v518, %v518
      %v977 = vsel %vm581, %v967, 0
      %v980 = vsel %vm585, %v968, 0
      %v983 = vsel %vm585, %v969, 0
      %v986 = vsel %vm585, %v970, 0
      %v989 = vsel %vm585, %v971, 0
      %v992 = vsel %vm585, %v972, 0
      %v995 = vsel %vm585, %v973, 0
      %v998 = vsel %vm585, %v974, 0
      %v1001 = vsel %vm585, %v975, 0
      %1003 = vmatprep.subr.bf16.mxu0 0
      %1004 = vmatpush1.bf16.msra.mxu0 0
      %1005 = vmatprep.subr.bf16.mxu0 0
      %1006 = vmatpush1.bf16.msra.mxu0 0
      %1007 = vmatprep.subr.bf16.mxu0 0
      %1008 = vmatpush1.bf16.msra.mxu0 0
      %1009 = vmatprep.subr.bf16.mxu0 0
      %1010 = vmatpush1.bf16.msra.mxu0 0
      %1011 = vmatprep.subr.bf16.mxu0 0
      %1012 = vmatpush1.bf16.msra.mxu0 0
      %1013 = vmatprep.subr.bf16.mxu0 0
      %1014 = vmatpush1.bf16.msra.mxu0 0
      %1015 = vmatprep.subr.bf16.mxu0 0
      %1016 = vmatpush1.bf16.msra.mxu0 0
      %1017 = vmatprep.subr.bf16.mxu0 %v983
      %1018 = vmatpush1.bf16.msra.mxu0 %v980
      %1019 = vmatprep.subr.bf16.mxu0 0
      %1020 = vmatpush2.bf16.msra.mxu0 0
      %1021 = vmatprep.subr.bf16.mxu0 0
      %1022 = vmatpush2.bf16.msra.mxu0 0
      %1023 = vmatprep.subr.bf16.mxu0 0
      %1024 = vmatpush2.bf16.msra.mxu0 0
      %1025 = vmatprep.subr.bf16.mxu0 0
      %1026 = vmatpush2.bf16.msra.mxu0 0
      %1027 = vmatprep.subr.bf16.mxu0 0
      %1028 = vmatpush2.bf16.msra.mxu0 0
      %1029 = vmatprep.subr.bf16.mxu0 0
      %1030 = vmatpush2.bf16.msra.mxu0 0
      %1031 = vmatprep.subr.bf16.mxu0 0
      %1032 = vmatpush2.bf16.msra.mxu0 0
      %1033 = vmatprep.subr.bf16.mxu0 0
      %1034 = vmatpush2.bf16.msra.mxu0 0
      %1035 = vmatprep.mubr.bf16.mxu0 0
      %1036 = vmatmul.mubr.bf16.gmra.mxu0 %v977
      %v1037 = vpop.f32.mrf.mxu0
      %v1038 = vadd.f32 0.0, %v1037
      %v1039 = vpop.f32.mrf.mxu0
      %v1040 = vadd.f32 0.0, %v1039
      %v1041 = vpop.f32.mrf.mxu0
      %v1042 = vpop.f32.mrf.mxu0
      %1043 = vdwg.mxu0
      %1044 = vmatprep.subr.bf16.mxu0 0
      %1045 = vmatpush1.bf16.msra.mxu0 0
      %1046 = vmatprep.subr.bf16.mxu0 0
      %1047 = vmatpush1.bf16.msra.mxu0 0
      %1048 = vmatprep.subr.bf16.mxu0 0
      %1049 = vmatpush1.bf16.msra.mxu0 0
      %1050 = vmatprep.subr.bf16.mxu0 0
      %1051 = vmatpush1.bf16.msra.mxu0 0
      %1052 = vmatprep.subr.bf16.mxu0 0
      %1053 = vmatpush1.bf16.msra.mxu0 0
      %1054 = vmatprep.subr.bf16.mxu0 0
      %1055 = vmatpush1.bf16.msra.mxu0 0
      %1056 = vmatprep.subr.bf16.mxu0 0
      %1057 = vmatpush1.bf16.msra.mxu0 0
      %1058 = vmatprep.subr.bf16.mxu0 %v989
      %1059 = vmatpush1.bf16.msra.mxu0 %v986
      %1060 = vmatprep.subr.bf16.mxu0 0
      %1061 = vmatpush2.bf16.msra.mxu0 0
      %1062 = vmatprep.subr.bf16.mxu0 0
      %1063 = vmatpush2.bf16.msra.mxu0 0
      %1064 = vmatprep.subr.bf16.mxu0 0
      %1065 = vmatpush2.bf16.msra.mxu0 0
      %1066 = vmatprep.subr.bf16.mxu0 0
      %1067 = vmatpush2.bf16.msra.mxu0 0
      %1068 = vmatprep.subr.bf16.mxu0 0
      %1069 = vmatpush2.bf16.msra.mxu0 0
      %1070 = vmatprep.subr.bf16.mxu0 0
      %1071 = vmatpush2.bf16.msra.mxu0 0
      %1072 = vmatprep.subr.bf16.mxu0 0
      %1073 = vmatpush2.bf16.msra.mxu0 0
      %1074 = vmatprep.subr.bf16.mxu0 0
      %1075 = vmatpush2.bf16.msra.mxu0 0
      %1076 = vmatprep.mubr.bf16.mxu0 0
      %1077 = vmatmul.mubr.bf16.gmra.mxu0 %v977
      %v1078 = vpop.f32.mrf.mxu0
      %v1079 = vadd.f32 0.0, %v1078
      %v1080 = vpop.f32.mrf.mxu0
      %v1081 = vadd.f32 0.0, %v1080
      %v1082 = vpop.f32.mrf.mxu0
      %v1083 = vpop.f32.mrf.mxu0
      %1084 = vdwg.mxu0
      %1085 = vmatprep.subr.bf16.mxu0 0
      %1086 = vmatpush1.bf16.msra.mxu0 0
      %1087 = vmatprep.subr.bf16.mxu0 0
      %1088 = vmatpush1.bf16.msra.mxu0 0
      %1089 = vmatprep.subr.bf16.mxu0 0
      %1090 = vmatpush1.bf16.msra.mxu0 0
      %1091 = vmatprep.subr.bf16.mxu0 0
      %1092 = vmatpush1.bf16.msra.mxu0 0
      %1093 = vmatprep.subr.bf16.mxu0 0
      %1094 = vmatpush1.bf16.msra.mxu0 0
      %1095 = vmatprep.subr.bf16.mxu0 0
      %1096 = vmatpush1.bf16.msra.mxu0 0
      %1097 = vmatprep.subr.bf16.mxu0 0
      %1098 = vmatpush1.bf16.msra.mxu0 0
      %1099 = vmatprep.subr.bf16.mxu0 %v995
      %1100 = vmatpush1.bf16.msra.mxu0 %v992
      %1101 = vmatprep.subr.bf16.mxu0 0
      %1102 = vmatpush2.bf16.msra.mxu0 0
      %1103 = vmatprep.subr.bf16.mxu0 0
      %1104 = vmatpush2.bf16.msra.mxu0 0
      %1105 = vmatprep.subr.bf16.mxu0 0
      %1106 = vmatpush2.bf16.msra.mxu0 0
      %1107 = vmatprep.subr.bf16.mxu0 0
      %1108 = vmatpush2.bf16.msra.mxu0 0
      %1109 = vmatprep.subr.bf16.mxu0 0
      %1110 = vmatpush2.bf16.msra.mxu0 0
      %1111 = vmatprep.subr.bf16.mxu0 0
      %1112 = vmatpush2.bf16.msra.mxu0 0
      %1113 = vmatprep.subr.bf16.mxu0 0
      %1114 = vmatpush2.bf16.msra.mxu0 0
      %1115 = vmatprep.subr.bf16.mxu0 0
      %1116 = vmatpush2.bf16.msra.mxu0 0
      %1117 = vmatprep.mubr.bf16.mxu0 0
      %1118 = vmatmul.mubr.bf16.gmra.mxu0 %v977
      %v1119 = vpop.f32.mrf.mxu0
      %v1120 = vadd.f32 0.0, %v1119
      %v1121 = vpop.f32.mrf.mxu0
      %v1122 = vadd.f32 0.0, %v1121
      %v1123 = vpop.f32.mrf.mxu0
      %v1124 = vpop.f32.mrf.mxu0
      %1125 = vdwg.mxu0
      %1126 = vmatprep.subr.bf16.mxu0 0
      %1127 = vmatpush1.bf16.msra.mxu0 0
      %1128 = vmatprep.subr.bf16.mxu0 0
      %1129 = vmatpush1.bf16.msra.mxu0 0
      %1130 = vmatprep.subr.bf16.mxu0 0
      %1131 = vmatpush1.bf16.msra.mxu0 0
      %1132 = vmatprep.subr.bf16.mxu0 0
      %1133 = vmatpush1.bf16.msra.mxu0 0
      %1134 = vmatprep.subr.bf16.mxu0 0
      %1135 = vmatpush1.bf16.msra.mxu0 0
      %1136 = vmatprep.subr.bf16.mxu0 0
      %1137 = vmatpush1.bf16.msra.mxu0 0
      %1138 = vmatprep.subr.bf16.mxu0 0
      %1139 = vmatpush1.bf16.msra.mxu0 0
      %1140 = vmatprep.subr.bf16.mxu0 %v1001
      %1141 = vmatpush1.bf16.msra.mxu0 %v998
      %1142 = vmatprep.subr.bf16.mxu0 0
      %1143 = vmatpush2.bf16.msra.mxu0 0
      %1144 = vmatprep.subr.bf16.mxu0 0
      %1145 = vmatpush2.bf16.msra.mxu0 0
      %1146 = vmatprep.subr.bf16.mxu0 0
      %1147 = vmatpush2.bf16.msra.mxu0 0
      %1148 = vmatprep.subr.bf16.mxu0 0
      %1149 = vmatpush2.bf16.msra.mxu0 0
      %1150 = vmatprep.subr.bf16.mxu0 0
      %1151 = vmatpush2.bf16.msra.mxu0 0
      %1152 = vmatprep.subr.bf16.mxu0 0
      %1153 = vmatpush2.bf16.msra.mxu0 0
      %1154 = vmatprep.subr.bf16.mxu0 0
      %1155 = vmatpush2.bf16.msra.mxu0 0
      %1156 = vmatprep.subr.bf16.mxu0 0
      %1157 = vmatpush2.bf16.msra.mxu0 0
      %1158 = vmatprep.mubr.bf16.mxu0 0
      %1159 = vmatmul.mubr.bf16.gmra.mxu0 %v977
      %v1160 = vpop.f32.mrf.mxu0
      %v1161 = vadd.f32 0.0, %v1160
      %v1162 = vpop.f32.mrf.mxu0
      %v1163 = vadd.f32 0.0, %v1162
      %v1164 = vpop.f32.mrf.mxu0
      %v1165 = vpop.f32.mrf.mxu0
      %1166 = vdwg.mxu0
      %v1167 = vadd.f32 %v836, %v1038
      %v1168 = vadd.f32 %v838, %v1040
      %v1169 = vadd.f32 %v877, %v1079
      %v1170 = vadd.f32 %v879, %v1081
      %v1171 = vadd.f32 %v918, %v1120
      %v1172 = vadd.f32 %v920, %v1122
      %v1173 = vadd.f32 %v959, %v1161
      %v1174 = vadd.f32 %v961, %v1163
      %s1175 = scalar_lea.vmem %s3, 24
      %v1176 = vld [vmem:[%s1175] sm:$0xff]
      %v1177 = vpack.c.bf16 %v1176, %v1176
      %v1178 = vpack.c.bf16 %v552, %v552
      %v1179 = vpack.c.bf16 %v553, %v553
      %v1180 = vpack.c.bf16 %v554, %v554
      %v1181 = vpack.c.bf16 %v555, %v555
      %v1182 = vpack.c.bf16 %v556, %v556
      %v1183 = vpack.c.bf16 %v557, %v557
      %v1184 = vpack.c.bf16 %v558, %v558
      %v1185 = vpack.c.bf16 %v559, %v559
      %v1187 = vsel %vm581, %v1177, 0
      %v1190 = vsel %vm585, %v1178, 0
      %v1193 = vsel %vm585, %v1179, 0
      %v1196 = vsel %vm585, %v1180, 0
      %v1199 = vsel %vm585, %v1181, 0
      %v1202 = vsel %vm585, %v1182, 0
      %v1205 = vsel %vm585, %v1183, 0
      %v1208 = vsel %vm585, %v1184, 0
      %v1211 = vsel %vm585, %v1185, 0
      %1213 = vmatprep.subr.bf16.mxu0 0
      %1214 = vmatpush1.bf16.msra.mxu0 0
      %1215 = vmatprep.subr.bf16.mxu0 0
      %1216 = vmatpush1.bf16.msra.mxu0 0
      %1217 = vmatprep.subr.bf16.mxu0 0
      %1218 = vmatpush1.bf16.msra.mxu0 0
      %1219 = vmatprep.subr.bf16.mxu0 0
      %1220 = vmatpush1.bf16.msra.mxu0 0
      %1221 = vmatprep.subr.bf16.mxu0 0
      %1222 = vmatpush1.bf16.msra.mxu0 0
      %1223 = vmatprep.subr.bf16.mxu0 0
      %1224 = vmatpush1.bf16.msra.mxu0 0
      %1225 = vmatprep.subr.bf16.mxu0 0
      %1226 = vmatpush1.bf16.msra.mxu0 0
      %1227 = vmatprep.subr.bf16.mxu0 %v1193
      %1228 = vmatpush1.bf16.msra.mxu0 %v1190
      %1229 = vmatprep.subr.bf16.mxu0 0
      %1230 = vmatpush2.bf16.msra.mxu0 0
      %1231 = vmatprep.subr.bf16.mxu0 0
      %1232 = vmatpush2.bf16.msra.mxu0 0
      %1233 = vmatprep.subr.bf16.mxu0 0
      %1234 = vmatpush2.bf16.msra.mxu0 0
      %1235 = vmatprep.subr.bf16.mxu0 0
      %1236 = vmatpush2.bf16.msra.mxu0 0
      %1237 = vmatprep.subr.bf16.mxu0 0
      %1238 = vmatpush2.bf16.msra.mxu0 0
      %1239 = vmatprep.subr.bf16.mxu0 0
      %1240 = vmatpush2.bf16.msra.mxu0 0
      %1241 = vmatprep.subr.bf16.mxu0 0
      %1242 = vmatpush2.bf16.msra.mxu0 0
      %1243 = vmatprep.subr.bf16.mxu0 0
      %1244 = vmatpush2.bf16.msra.mxu0 0
      %1245 = vmatprep.mubr.bf16.mxu0 0
      %1246 = vmatmul.mubr.bf16.gmra.mxu0 %v1187
      %v1247 = vpop.f32.mrf.mxu0
      %v1248 = vadd.f32 0.0, %v1247
      %v1249 = vpop.f32.mrf.mxu0
      %v1250 = vadd.f32 0.0, %v1249
      %v1251 = vpop.f32.mrf.mxu0
      %v1252 = vpop.f32.mrf.mxu0
      %1253 = vdwg.mxu0
      %1254 = vmatprep.subr.bf16.mxu0 0
      %1255 = vmatpush1.bf16.msra.mxu0 0
      %1256 = vmatprep.subr.bf16.mxu0 0
      %1257 = vmatpush1.bf16.msra.mxu0 0
      %1258 = vmatprep.subr.bf16.mxu0 0
      %1259 = vmatpush1.bf16.msra.mxu0 0
      %1260 = vmatprep.subr.bf16.mxu0 0
      %1261 = vmatpush1.bf16.msra.mxu0 0
      %1262 = vmatprep.subr.bf16.mxu0 0
      %1263 = vmatpush1.bf16.msra.mxu0 0
      %1264 = vmatprep.subr.bf16.mxu0 0
      %1265 = vmatpush1.bf16.msra.mxu0 0
      %1266 = vmatprep.subr.bf16.mxu0 0
      %1267 = vmatpush1.bf16.msra.mxu0 0
      %1268 = vmatprep.subr.bf16.mxu0 %v1199
      %1269 = vmatpush1.bf16.msra.mxu0 %v1196
      %1270 = vmatprep.subr.bf16.mxu0 0
      %1271 = vmatpush2.bf16.msra.mxu0 0
      %1272 = vmatprep.subr.bf16.mxu0 0
      %1273 = vmatpush2.bf16.msra.mxu0 0
      %1274 = vmatprep.subr.bf16.mxu0 0
      %1275 = vmatpush2.bf16.msra.mxu0 0
      %1276 = vmatprep.subr.bf16.mxu0 0
      %1277 = vmatpush2.bf16.msra.mxu0 0
      %1278 = vmatprep.subr.bf16.mxu0 0
      %1279 = vmatpush2.bf16.msra.mxu0 0
      %1280 = vmatprep.subr.bf16.mxu0 0
      %1281 = vmatpush2.bf16.msra.mxu0 0
      %1282 = vmatprep.subr.bf16.mxu0 0
      %1283 = vmatpush2.bf16.msra.mxu0 0
      %1284 = vmatprep.subr.bf16.mxu0 0
      %1285 = vmatpush2.bf16.msra.mxu0 0
      %1286 = vmatprep.mubr.bf16.mxu0 0
      %1287 = vmatmul.mubr.bf16.gmra.mxu0 %v1187
      %v1288 = vpop.f32.mrf.mxu0
      %v1289 = vadd.f32 0.0, %v1288
      %v1290 = vpop.f32.mrf.mxu0
      %v1291 = vadd.f32 0.0, %v1290
      %v1292 = vpop.f32.mrf.mxu0
      %v1293 = vpop.f32.mrf.mxu0
      %1294 = vdwg.mxu0
      %1295 = vmatprep.subr.bf16.mxu0 0
      %1296 = vmatpush1.bf16.msra.mxu0 0
      %1297 = vmatprep.subr.bf16.mxu0 0
      %1298 = vmatpush1.bf16.msra.mxu0 0
      %1299 = vmatprep.subr.bf16.mxu0 0
      %1300 = vmatpush1.bf16.msra.mxu0 0
      %1301 = vmatprep.subr.bf16.mxu0 0
      %1302 = vmatpush1.bf16.msra.mxu0 0
      %1303 = vmatprep.subr.bf16.mxu0 0
      %1304 = vmatpush1.bf16.msra.mxu0 0
      %1305 = vmatprep.subr.bf16.mxu0 0
      %1306 = vmatpush1.bf16.msra.mxu0 0
      %1307 = vmatprep.subr.bf16.mxu0 0
      %1308 = vmatpush1.bf16.msra.mxu0 0
      %1309 = vmatprep.subr.bf16.mxu0 %v1205
      %1310 = vmatpush1.bf16.msra.mxu0 %v1202
      %1311 = vmatprep.subr.bf16.mxu0 0
      %1312 = vmatpush2.bf16.msra.mxu0 0
      %1313 = vmatprep.subr.bf16.mxu0 0
      %1314 = vmatpush2.bf16.msra.mxu0 0
      %1315 = vmatprep.subr.bf16.mxu0 0
      %1316 = vmatpush2.bf16.msra.mxu0 0
      %1317 = vmatprep.subr.bf16.mxu0 0
      %1318 = vmatpush2.bf16.msra.mxu0 0
      %1319 = vmatprep.subr.bf16.mxu0 0
      %1320 = vmatpush2.bf16.msra.mxu0 0
      %1321 = vmatprep.subr.bf16.mxu0 0
      %1322 = vmatpush2.bf16.msra.mxu0 0
      %1323 = vmatprep.subr.bf16.mxu0 0
      %1324 = vmatpush2.bf16.msra.mxu0 0
      %1325 = vmatprep.subr.bf16.mxu0 0
      %1326 = vmatpush2.bf16.msra.mxu0 0
      %1327 = vmatprep.mubr.bf16.mxu0 0
      %1328 = vmatmul.mubr.bf16.gmra.mxu0 %v1187
      %v1329 = vpop.f32.mrf.mxu0
      %v1330 = vadd.f32 0.0, %v1329
      %v1331 = vpop.f32.mrf.mxu0
      %v1332 = vadd.f32 0.0, %v1331
      %v1333 = vpop.f32.mrf.mxu0
      %v1334 = vpop.f32.mrf.mxu0
      %1335 = vdwg.mxu0
      %1336 = vmatprep.subr.bf16.mxu0 0
      %1337 = vmatpush1.bf16.msra.mxu0 0
      %1338 = vmatprep.subr.bf16.mxu0 0
      %1339 = vmatpush1.bf16.msra.mxu0 0
      %1340 = vmatprep.subr.bf16.mxu0 0
      %1341 = vmatpush1.bf16.msra.mxu0 0
      %1342 = vmatprep.subr.bf16.mxu0 0
      %1343 = vmatpush1.bf16.msra.mxu0 0
      %1344 = vmatprep.subr.bf16.mxu0 0
      %1345 = vmatpush1.bf16.msra.mxu0 0
      %1346 = vmatprep.subr.bf16.mxu0 0
      %1347 = vmatpush1.bf16.msra.mxu0 0
      %1348 = vmatprep.subr.bf16.mxu0 0
      %1349 = vmatpush1.bf16.msra.mxu0 0
      %1350 = vmatprep.subr.bf16.mxu0 %v1211
      %1351 = vmatpush1.bf16.msra.mxu0 %v1208
      %1352 = vmatprep.subr.bf16.mxu0 0
      %1353 = vmatpush2.bf16.msra.mxu0 0
      %1354 = vmatprep.subr.bf16.mxu0 0
      %1355 = vmatpush2.bf16.msra.mxu0 0
      %1356 = vmatprep.subr.bf16.mxu0 0
      %1357 = vmatpush2.bf16.msra.mxu0 0
      %1358 = vmatprep.subr.bf16.mxu0 0
      %1359 = vmatpush2.bf16.msra.mxu0 0
      %1360 = vmatprep.subr.bf16.mxu0 0
      %1361 = vmatpush2.bf16.msra.mxu0 0
      %1362 = vmatprep.subr.bf16.mxu0 0
      %1363 = vmatpush2.bf16.msra.mxu0 0
      %1364 = vmatprep.subr.bf16.mxu0 0
      %1365 = vmatpush2.bf16.msra.mxu0 0
      %1366 = vmatprep.subr.bf16.mxu0 0
      %1367 = vmatpush2.bf16.msra.mxu0 0
      %1368 = vmatprep.mubr.bf16.mxu0 0
      %1369 = vmatmul.mubr.bf16.gmra.mxu0 %v1187
      %v1370 = vpop.f32.mrf.mxu0
      %v1371 = vadd.f32 0.0, %v1370
      %v1372 = vpop.f32.mrf.mxu0
      %v1373 = vadd.f32 0.0, %v1372
      %v1374 = vpop.f32.mrf.mxu0
      %v1375 = vpop.f32.mrf.mxu0
      %1376 = vdwg.mxu0
      %v1377 = vadd.f32 %v1167, %v1248
      %v1378 = vadd.f32 %v1168, %v1250
      %v1379 = vadd.f32 %v1169, %v1289
      %v1380 = vadd.f32 %v1170, %v1291
      %v1381 = vadd.f32 %v1171, %v1330
      %v1382 = vadd.f32 %v1172, %v1332
      %v1383 = vadd.f32 %v1173, %v1371
      %v1384 = vadd.f32 %v1174, %v1373
      %v1385 = vld [vmem:[%s4] sm:$0xff]
      %1387 = vset.pattern.permute.xlu0 0
      %1388 = vperm.xlu0 %1387, %v1385
      %v1389 = vpop.permute.xlu0 %1388
      %v1391 = vadd.f32 %v1377, %v1389
      %v1392 = vadd.f32 %v1378, %v1389
      %v1393 = vadd.f32 %v1379, %v1389
      %v1394 = vadd.f32 %v1380, %v1389
      %v1395 = vadd.f32 %v1381, %v1389
      %v1396 = vadd.f32 %v1382, %v1389
      %v1397 = vadd.f32 %v1383, %v1389
      %v1398 = vadd.f32 %v1384, %v1389
      %v1399 = vld [vmem:[%s5] sm:$0xff]
      %1401 = vset.pattern.permute.xlu0 0
      %1402 = vperm.xlu0 %1401, %v1399
      %v1403 = vpop.permute.xlu0 %1402
      %v1405 = vmul.f32 %v1391, %v1403
      %v1406 = vmul.f32 %v1392, %v1403
      %v1407 = vmul.f32 %v1393, %v1403
      %v1408 = vmul.f32 %v1394, %v1403
      %v1409 = vmul.f32 %v1395, %v1403
      %v1410 = vmul.f32 %v1396, %v1403
      %v1411 = vmul.f32 %v1397, %v1403
      %v1412 = vmul.f32 %v1398, %v1403
      %v1413 = vld [vmem:[%s6] sm:$0xff]
      %1415 = vset.pattern.permute.xlu0 0
      %1416 = vperm.xlu0 %1415, %v1413
      %v1417 = vpop.permute.xlu0 %1416
      %v1419 = vadd.f32 %v1405, %v1417
      %v1420 = vadd.f32 %v1406, %v1417
      %v1421 = vadd.f32 %v1407, %v1417
      %v1422 = vadd.f32 %v1408, %v1417
      %v1423 = vadd.f32 %v1409, %v1417
      %v1424 = vadd.f32 %v1410, %v1417
      %v1425 = vadd.f32 %v1411, %v1417
      %v1426 = vadd.f32 %v1412, %v1417
      %1427 = vst [vmem:[%s278] sm:$0xff] %v1419
      %1428 = vst [vmem:[%s278 + $0x8] sm:$0xff] %v1420
      %1429 = vst [vmem:[%s278 + $0x10] sm:$0xff] %v1421
      %1430 = vst [vmem:[%s278 + $0x18] sm:$0xff] %v1422
      %1431 = vst [vmem:[%s278 + $0x20] sm:$0xff] %v1423
      %1432 = vst [vmem:[%s278 + $0x28] sm:$0xff] %v1424
      %1433 = vst [vmem:[%s278 + $0x30] sm:$0xff] %v1425
      %1434 = vst [vmem:[%s278 + $0x38] sm:$0xff] %v1426
      %p1435 = scmp.lt.s32.totalorder %s18, 1
      %s1436 = scalar_select %p1435, %s18, 1
      %s1437 = smul.addr %s1436, 8
      %s1438 = smul.addr %s1437, 8
      %s1439 = scalar_lea.vmem %s7, %s1438
      // Predicated region
      $region49: #{upconv.5} parent=47 // pred_check
        %p1440 = pneg %p188
      $region50: #{upconv.5} parent=47 // pred_check_branch
        %1442 = sbr.rel (%p1440) target = $region52
      $region51: #{upconv.5} parent=47 // pred_region
        _
      $region52: #{upconv.5} parent=47 // pred_fallthru
        _
    $region48: #{upconv.5} parent=5 // pred_fallthru
      _
    %p1443 = scmp.le.s32.totalorder 2, %s13
    // Predicated region
    $region53: #{upconv.5} parent=5 // pred_check
      %p1444 = pneg %p1443
    $region54: #{upconv.5} parent=5 // pred_check_branch
      %1446 = sbr.rel (%p1444) target = $region56
    $region55: #{upconv.5} parent=5 // pred_region
      %s1447 = ssub.s32 %s13, 2
      // Predicated region
      $region57: #{upconv.5} parent=55 // pred_check
        %p1448 = pneg %p194
      $region58: #{upconv.5} parent=55 // pred_check_branch
        %1450 = sbr.rel (%p1448) target = $region60
      $region59: #{upconv.5} parent=55 // pred_region
        %p1451 = scmp.lt.s32.totalorder %s19, 1
        %s1452 = scalar_select %p1451, %s19, 1
        %s1453 = smul.addr %s1452, 8
        %s1454 = smul.addr %s1453, 8
        %s1455 = scalar_lea.vmem %s7, %s1454
      $region60: #{upconv.5} parent=55 // pred_fallthru
        _
    $region56: #{upconv.5} parent=5 // pred_fallthru
      _
  $region6: #{upconv.5} parent=0 // loop_footer
    %s17 = sadd.s32 1, %s13
  $region7: #{upconv.5} parent=0 // loop_footer_branch
    %12 = sbr.rel target = $region3
  $region8: #{upconv.5} parent=0 // loop_exit
    _

</llo_original>
